<compile_context>
chip_gen: v7x
topology: tpu7x:2x2x1
jax: 0.10.0
libtpu: 0.0.40
codegen_flags: <defaults>
</compile_context>

<pallas_src>
import functools

import jax
import jax.numpy as jnp
from jax.experimental import pallas as pl
from jax.experimental.pallas import tpu as pltpu

NEG = -1e30            # finite "-inf": keeps the online softmax NaN-free
SLOPE_ATT = 0.2        # GATv2Conv negative_slope
SLOPE_GATE = 0.01      # torch.nn.LeakyReLU default

# f32 MXU dots at HIGHEST precision (review correctness concern: do not rely on
# the global jax_default_matmul_precision flag being set).
_dot = functools.partial(jnp.dot, preferred_element_type=jnp.float32,
                         precision=jax.lax.Precision.HIGHEST)


def _vmem_limit_bytes():
    """Per-generation scoped-VMEM budget: physical capacity minus ~16 MiB headroom."""
    cap = None
    try:
        cap = int(getattr(pltpu.get_tpu_info(), "vmem_capacity_bytes", 0)) or None
    except Exception:
        cap = None
    if cap is None:
        cap = 64 * 1024 * 1024                                # conservative fallback
    return max(32 * 1024 * 1024, cap - 16 * 1024 * 1024)      # v7x->48MiB, v5e/v6e->112MiB


# ----------------------------- GATv2 layer kernel -----------------------------
def _make_gat_layer_kernel(*, heads, d, tq, tk):
    HD = heads * d
    inv_heads = 1.0 / float(heads)

    def kernel(xq_ref, xk_ref, bq_ref, bk_ref,
               wl_ref, bl_ref, wr_ref, br_ref,
               attlin_ref, attrel_ref, bo_ref,
               out_ref, m_s, l_s, acc_s):
        kj = pl.program_id(1)

        @pl.when(kj == 0)
        def _():
            m_s[...] = jnp.full_like(m_s, NEG)
            l_s[...] = jnp.zeros_like(l_s)
            acc_s[...] = jnp.zeros_like(acc_s)

        # Per-tile projections (tiny MXU work, recomputed per key tile by design:
        # d*HD MACs per key element vs. heads*d per-pair VPU ops of attention).
        xr_q = _dot(xq_ref[...], wr_ref[...]) + br_ref[...]        # (tq, HD) target side
        xl_k = _dot(xk_ref[...], wl_ref[...]) + bl_ref[...]        # (tk, HD) source side
        xlT_k = jnp.transpose(xl_k)                                # (HD, tk) exact XLU transpose

        # Same-graph (incl. self-loop) mask for this tile only — never (N, N).
        mask = bq_ref[...] == bk_ref[...]                          # (tq, tk)

        # Linear half of the leaky-relu logits, fused over heads with the
        # block-diagonal attention matrix (slope already folded in):
        att_lin = attlin_ref[...]                                  # (heads, HD)
        r_cols = jax.lax.dot_general(                              # slope * att_h . xr_i
            xr_q, att_lin, (((1,), (1,)), ((), ())),
            preferred_element_type=jnp.float32,
            precision=jax.lax.Precision.HIGHEST)                   # (tq, heads)
        l_rows = _dot(att_lin, xlT_k)                              # (heads, tk)  slope * att_h . xl_j

        for h in range(heads):
            e = r_cols[:, h:h + 1] + l_rows[h:h + 1, :]            # (tq, tk)
            # Relu half: the hot per-channel VPU loop.  Coefficients are SMEM
            # scalars -> scalar-operand vmul, no re-emitted (1,1) broadcasts.
            # TODO(synk): convert to lax.fori_loop with ref channel slices once
            # d is large enough for vreg live-range pressure to matter (d=8 here).
            for c in range(d):
                ch = h * d + c
                s = xr_q[:, ch:ch + 1] + xlT_k[ch:ch + 1, :]       # (tq, tk)
                e = e + attrel_ref[h, c] * jnp.maximum(s, 0.0)

            e = jnp.where(mask, e, NEG)

            # Online softmax update (flash style) across key tiles.
            m_old = m_s[:, h:h + 1]
            m_new = jnp.maximum(m_old, jnp.max(e, axis=1, keepdims=True))
            scale = jnp.exp(m_old - m_new)
            p = jnp.exp(e - m_new)
            l_s[:, h:h + 1] = scale * l_s[:, h:h + 1] + jnp.sum(p, axis=1, keepdims=True)
            acc_s[:, h * d:(h + 1) * d] = (scale * acc_s[:, h * d:(h + 1) * d]
                                           + _dot(p, xl_k[:, h * d:(h + 1) * d]))
            m_s[:, h:h + 1] = m_new
            # TODO(synk): fuse the per-head p @ xl into one
            # (tq, heads*tk) @ (heads*tk, d) contraction when heads*tk grows.

        @pl.when(kj == pl.num_programs(1) - 1)
        def _():
            out = jnp.zeros((tq, d), jnp.float32)
            for h in range(heads):
                out = out + acc_s[:, h * d:(h + 1) * d] / l_s[:, h:h + 1]
            out_ref[...] = out * inv_heads + bo_ref[...]           # concat=False -> mean + bias

    return kernel


def _gat_layer(x, bcol, brow, lp, att_lin_bd, att_rel, *, heads, d, tq, tk, vmem_limit):
    N = x.shape[0]
    HD = heads * d
    kernel = _make_gat_layer_kernel(heads=heads, d=d, tq=tq, tk=tk)

    def full(shape):
        return pl.BlockSpec(shape, lambda i, k: (0, 0))

    return pl.pallas_call(
        kernel,
        out_shape=jax.ShapeDtypeStruct((N, d), jnp.float32),
        grid=(N // tq, N // tk),
        in_specs=[
            pl.BlockSpec((tq, d), lambda i, k: (i, 0)),          # x, query rows
            pl.BlockSpec((tk, d), lambda i, k: (k, 0)),          # x, key rows
            pl.BlockSpec((tq, 1), lambda i, k: (i, 0)),          # batch ids, query column
            pl.BlockSpec((1, tk), lambda i, k: (0, k)),          # batch ids, key row
            full((d, HD)),                                        # Wl
            full((1, HD)),                                        # bl
            full((d, HD)),                                        # Wr
            full((1, HD)),                                        # br
            full((heads, HD)),                                    # block-diag att (slope folded)
            pl.BlockSpec(memory_space=pltpu.MemorySpace.SMEM),    # (1-slope)*att scalars
            full((1, d)),                                         # bo
        ],
        out_specs=pl.BlockSpec((tq, d), lambda i, k: (i, 0)),
        scratch_shapes=[
            pltpu.VMEM((tq, heads), jnp.float32),    # running max per head
            pltpu.VMEM((tq, heads), jnp.float32),    # running sum per head
            pltpu.VMEM((tq, HD), jnp.float32),       # running weighted-value accumulator
        ],
        compiler_params=pltpu.CompilerParams(
            dimension_semantics=("parallel", "arbitrary"),
            vmem_limit_bytes=vmem_limit,
        ),
    )(x, x, bcol, brow, lp["Wl"], lp["bl"], lp["Wr"], lp["br"],
      att_lin_bd, att_rel, lp["bo"])


# ------------------------- gate MLP + scatter pooling -------------------------
def _make_gate_pool_kernel(*, N, B):
    def kernel(x_ref, bcol_ref, brow_ref,
               w1_ref, b1_ref, w2_ref, b2_ref, w3_ref, b3_ref,
               hpool_ref, scores_ref):
        x = x_ref[...]                                            # (N, d)
        bcol = bcol_ref[...]                                      # (N, 1)
        brow = brow_ref[...]                                      # (1, N)

        gt_bool = bcol == jax.lax.broadcasted_iota(jnp.int32, (N, B), 1)              # (N, B)
        gt_f = gt_bool.astype(jnp.float32)
        g_f = (jax.lax.broadcasted_iota(jnp.int32, (B, N), 0) == brow).astype(jnp.float32)  # (B, N)

        def lrelu(v):
            return jnp.where(v > 0, v, SLOPE_GATE * v)

        g1 = lrelu(_dot(x, w1_ref[...]) + b1_ref[...])
        g2 = lrelu(_dot(g1, w2_ref[...]) + b2_ref[...])
        hg = _dot(g2, w3_ref[...]) + b3_ref[...]                  # (N, 1)

        # scatter_softmax over graphs with per-group max (numerically stable)
        grp_max = jnp.max(jnp.where(gt_bool, hg, NEG), axis=0, keepdims=True)         # (1, B)
        node_max = jnp.max(jnp.where(gt_bool, grp_max, NEG), axis=1, keepdims=True)   # (N, 1)
        ex = jnp.exp(hg - node_max)
        grp_sum = _dot(g_f, ex)                                   # (B, 1)
        node_sum = _dot(gt_f, grp_sum)                            # (N, 1)
        scores = ex / node_sum                                    # (N, 1)

        # scatter_add pooling via the one-hot graph matrix
        hpool_ref[...] = _dot(g_f, x * scores)                    # (B, d)
        # TODO(synk): rework the gate tail row-major and emit scores lane-dense
        # as (1, N) (reshape in the wrapper) to avoid the lane-1 masked
        # writeback once N reaches the thousands.
        scores_ref[...] = scores

    return kernel


def _gate_pool(x, bcol, brow, gate, *, B, vmem_limit):
    N, d = x.shape
    kernel = _make_gate_pool_kernel(N=N, B=B)
    vmem = pl.BlockSpec(memory_space=pltpu.MemorySpace.VMEM)
    return pl.pallas_call(
        kernel,
        out_shape=(jax.ShapeDtypeStruct((B, d), jnp.float32),     # h_pool
                   jax.ShapeDtypeStruct((N, 1), jnp.float32)),    # scores
        in_specs=[vmem] * 9,
        out_specs=(vmem, vmem),
        compiler_params=pltpu.CompilerParams(vmem_limit_bytes=vmem_limit),
    )(x, bcol, brow, gate["W1"], gate["b1"], gate["W2"], gate["b2"],
      gate["W3"], gate["b3"])


# ------------------------------- public wrapper --------------------------------
def message_passing_attention_pool(H, batch, params, *, heads, d, hidden, B,
                                   tq=None, tk=None):
    N = H.shape[0]
    HD = heads * d
    batch = batch.astype(jnp.int32)
    bcol = batch.reshape(N, 1)
    brow = batch.reshape(1, N)

    vmem_limit = _vmem_limit_bytes()
    # Per-generation tile plan: bigger key tiles where VMEM is plentiful.
    if tq is None:
        tq = min(128, N)
    if tk is None:
        tk = min(256 if vmem_limit > (96 << 20) else 128, N)
    # TODO(synk): pad N to the tile size instead of asserting.
    assert N % tq == 0 and N % tk == 0, "N must be divisible by tile sizes"

    x = H.astype(jnp.float32)
    for lp in params["layers"]:
        att = lp["att"]                                           # (heads, d)
        # block-diagonal attention matrix with the leaky-relu linear slope folded in
        att_lin_bd = jnp.zeros((heads, HD), jnp.float32)
        for h in range(heads):
            att_lin_bd = att_lin_bd.at[h, h * d:(h + 1) * d].set(SLOPE_ATT * att[h])
        att_rel = ((1.0 - SLOPE_ATT) * att).astype(jnp.float32)   # (heads, d) SMEM scalars
        x = _gat_layer(x, bcol, brow, lp, att_lin_bd, att_rel,
                       heads=heads, d=d, tq=tq, tk=tk, vmem_limit=vmem_limit)

    h_pool, scores = _gate_pool(x, bcol, brow, params["gate"], B=B,
                                vmem_limit=vmem_limit)
    return h_pool, scores


# ---------------- pure-JAX reference (independent formulation) -----------------
def reference_forward(H, batch, params, *, heads, d, B):
    x = H
    mask = batch[:, None] == batch[None, :]
    for lp in params["layers"]:
        xl_all = x @ lp["Wl"] + lp["bl"]
        xr_all = x @ lp["Wr"] + lp["br"]
        acc = jnp.zeros_like(x)
        for h in range(heads):
            xl = xl_all[:, h * d:(h + 1) * d]
            xr = xr_all[:, h * d:(h + 1) * d]
            s = xr[:, None, :] + xl[None, :, :]
            s = jnp.where(s > 0, s, SLOPE_ATT * s)
            e = jnp.einsum("ijc,c->ij", s, lp["att"][h])
            e = jnp.where(mask, e, NEG)
            e = e - jnp.max(e, axis=1, keepdims=True)
            p = jnp.exp(e)
            alpha = p / jnp.sum(p, axis=1, keepdims=True)
            acc = acc + alpha @ xl
        x = acc / float(heads) + lp["bo"]
    g = params["gate"]
    lrelu = lambda v: jnp.where(v > 0, v, SLOPE_GATE * v)
    hg = lrelu(x @ g["W1"] + g["b1"])
    hg = lrelu(hg @ g["W2"] + g["b2"])
    hg = (hg @ g["W3"] + g["b3"])[:, 0]
    gmax = jax.ops.segment_max(hg, batch, num_segments=B)
    ex = jnp.exp(hg - gmax[batch])
    denom = jax.ops.segment_sum(ex, batch, num_segments=B)
    scores = (ex / denom[batch])[:, None]
    h_pool = jax.ops.segment_sum(x * scores, batch, num_segments=B)
    return h_pool, scores


def init_params(key, *, d, hidden, heads, n_layers):
    def dense(k, fan_in, shape):
        return jax.random.normal(k, shape, jnp.float32) / jnp.sqrt(float(fan_in))

    keys = list(jax.random.split(key, n_layers * 6 + 6))
    ki = iter(keys)
    params = {"layers": [], "gate": {}}
    for _ in range(n_layers):
        params["layers"].append({
            "Wl": dense(next(ki), d, (d, heads * d)),      # GATv2 lin_l
            "bl": dense(next(ki), d, (1, heads * d)),
            "Wr": dense(next(ki), d, (d, heads * d)),      # GATv2 lin_r
            "br": dense(next(ki), d, (1, heads * d)),
            "att": dense(next(ki), d, (heads, d)),         # attention vector per head
            "bo": dense(next(ki), d, (1, d)),              # output bias (concat=False)
        })
    params["gate"] = {
        "W1": dense(next(ki), d, (d, hidden)),
        "b1": dense(next(ki), d, (1, hidden)),
        "W2": dense(next(ki), hidden, (hidden, hidden)),
        "b2": dense(next(ki), hidden, (1, hidden)),
        "W3": dense(next(ki), hidden, (hidden, 1)),
        "b3": dense(next(ki), hidden, (1, 1)),
    }
    return params


if __name__ == "__main__":
    jax.config.update("jax_default_matmul_precision", "highest")

    d, hidden, heads, n_layers = 8, 16, 2, 2     # in_out_dimension, hidden_dimension, N_heads, N_layers
    N, B = 16, 4                                 # num nodes, num graphs

    key = jax.random.PRNGKey(0)
    k_h, k_p = jax.random.split(key)
    H = jax.random.normal(k_h, (N, d), jnp.float32)
    batch = jnp.repeat(jnp.arange(B, dtype=jnp.int32), N // B)   # graph id per node

    params = init_params(k_p, d=d, hidden=hidden, heads=heads, n_layers=n_layers)

    h_pool, scores = message_passing_attention_pool(
        H, batch, params, heads=heads, d=d, hidden=hidden, B=B)
    jax.block_until_ready((h_pool, scores))

    h_pool_ref, scores_ref = reference_forward(H, batch, params, heads=heads, d=d, B=B)
    assert h_pool.shape == (B, d) and scores.shape == (N, 1)
    assert jnp.allclose(h_pool, h_pool_ref, rtol=1e-3, atol=1e-3)
    assert jnp.allclose(scores, scores_ref, rtol=1e-3, atol=1e-3)

    print("KERNEL_OK")
</pallas_src>

<mosaic_0001>
module attributes {stable_mosaic.version = 11 : i64} {
  func.func @kernel(%arg0: i32, %arg1: i32, %arg2: memref<16x8xf32, #tpu.memory_space<vmem>>, %arg3: memref<16x8xf32, #tpu.memory_space<vmem>>, %arg4: memref<16x1xi32, #tpu.memory_space<vmem>>, %arg5: memref<1x16xi32, #tpu.memory_space<vmem>>, %arg6: memref<8x16xf32, #tpu.memory_space<vmem>>, %arg7: memref<1x16xf32, #tpu.memory_space<vmem>>, %arg8: memref<8x16xf32, #tpu.memory_space<vmem>>, %arg9: memref<1x16xf32, #tpu.memory_space<vmem>>, %arg10: memref<2x16xf32, #tpu.memory_space<vmem>>, %arg11: memref<2x8xf32, #tpu.memory_space<smem>>, %arg12: memref<1x8xf32, #tpu.memory_space<vmem>>, %arg13: memref<16x8xf32, #tpu.memory_space<vmem>>, %arg14: memref<16x2xf32, #tpu.memory_space<vmem>>, %arg15: memref<16x2xf32, #tpu.memory_space<vmem>>, %arg16: memref<16x16xf32, #tpu.memory_space<vmem>>) attributes {dimension_semantics = [#tpu.dimension_semantics<parallel>, #tpu.dimension_semantics<arbitrary>], iteration_bounds = array<i64: 1, 1>, scalar_prefetch = 0 : i64, scratch_operands = 3 : i64, tpu.core_type = #tpu.core_type<tc>, window_params = [{transform_indices = @transform_0, window_bounds = array<i64: 16, 8>}, {transform_indices = @transform_1, window_bounds = array<i64: 16, 8>}, {transform_indices = @transform_2, window_bounds = array<i64: 16, 1>}, {transform_indices = @transform_3, window_bounds = array<i64: 1, 16>}, {pipeline_mode = #tpu.pipeline_mode<synchronous>, transform_indices = @transform_4, window_bounds = array<i64: 8, 16>}, {pipeline_mode = #tpu.pipeline_mode<synchronous>, transform_indices = @transform_5, window_bounds = array<i64: 1, 16>}, {pipeline_mode = #tpu.pipeline_mode<synchronous>, transform_indices = @transform_6, window_bounds = array<i64: 8, 16>}, {pipeline_mode = #tpu.pipeline_mode<synchronous>, transform_indices = @transform_7, window_bounds = array<i64: 1, 16>}, {pipeline_mode = #tpu.pipeline_mode<synchronous>, transform_indices = @transform_8, window_bounds = array<i64: 2, 16>}, {transform_indices = @transform_9, window_bounds = array<i64: 2, 8>}, {pipeline_mode = #tpu.pipeline_mode<synchronous>, transform_indices = @transform_10, window_bounds = array<i64: 1, 8>}, {transform_indices = @transform_11, window_bounds = array<i64: 16, 8>}]} {
    %c0_i32 = arith.constant 0 : i32
    %0 = arith.cmpi eq, %arg1, %c0_i32 : i32
    %1 = arith.extui %0 : i1 to i32
    %c0_i32_0 = arith.constant 0 : i32
    %2 = arith.cmpi ne, %1, %c0_i32_0 : i32
    scf.if %2 {
      %cst_95 = arith.constant -1.000000e+30 : f32
      %263 = vector.broadcast %cst_95 : f32 to vector<16x2xf32>
      %c0_96 = arith.constant 0 : index
      %c0_97 = arith.constant 0 : index
      %264 = vector.load %arg14[%c0_96, %c0_97] : memref<16x2xf32, #tpu.memory_space<vmem>>, vector<16x2xf32>
      tpu.vector_store %arg14[%c0_96, %c0_97], %263 {strides = array<i32>} : memref<16x2xf32, #tpu.memory_space<vmem>>, vector<16x2xf32>,
      %cst_98 = arith.constant 0.000000e+00 : f32
      %265 = vector.broadcast %cst_98 : f32 to vector<16x2xf32>
      %c0_99 = arith.constant 0 : index
      %c0_100 = arith.constant 0 : index
      %266 = vector.load %arg15[%c0_99, %c0_100] : memref<16x2xf32, #tpu.memory_space<vmem>>, vector<16x2xf32>
      tpu.vector_store %arg15[%c0_99, %c0_100], %265 {strides = array<i32>} : memref<16x2xf32, #tpu.memory_space<vmem>>, vector<16x2xf32>,
      %cst_101 = arith.constant 0.000000e+00 : f32
      %267 = vector.broadcast %cst_101 : f32 to vector<16x16xf32>
      %c0_102 = arith.constant 0 : index
      %c0_103 = arith.constant 0 : index
      %268 = vector.load %arg16[%c0_102, %c0_103] : memref<16x16xf32, #tpu.memory_space<vmem>>, vector<16x16xf32>
      tpu.vector_store %arg16[%c0_102, %c0_103], %267 {strides = array<i32>} : memref<16x16xf32, #tpu.memory_space<vmem>>, vector<16x16xf32>,
    } else {
    }
    %c0 = arith.constant 0 : index
    %c0_1 = arith.constant 0 : index
    %3 = vector.load %arg2[%c0, %c0_1] : memref<16x8xf32, #tpu.memory_space<vmem>>, vector<16x8xf32>
    %c0_2 = arith.constant 0 : index
    %c0_3 = arith.constant 0 : index
    %4 = vector.load %arg8[%c0_2, %c0_3] : memref<8x16xf32, #tpu.memory_space<vmem>>, vector<8x16xf32>
    %cst = arith.constant dense<0.000000e+00> : vector<16x16xf32>
    %5 = tpu.matmul %3, %4, %cst {dimension_numbers = #tpu.dot_dimension_numbers<[1], [0], [0], [1], [0, 0, 1, 1], [], []>, precision = #tpu.contract_precision<fp32>} : vector<16x8xf32>, vector<8x16xf32>, vector<16x16xf32> -> vector<16x16xf32>
    %c0_4 = arith.constant 0 : index
    %c0_5 = arith.constant 0 : index
    %6 = vector.load %arg9[%c0_4, %c0_5] : memref<1x16xf32, #tpu.memory_space<vmem>>, vector<1x16xf32>
    %7 = vector.broadcast %6 : vector<1x16xf32> to vector<16x16xf32>
    %8 = arith.addf %5, %7 : vector<16x16xf32>
    %c0_6 = arith.constant 0 : index
    %c0_7 = arith.constant 0 : index
    %9 = vector.load %arg3[%c0_6, %c0_7] : memref<16x8xf32, #tpu.memory_space<vmem>>, vector<16x8xf32>
    %c0_8 = arith.constant 0 : index
    %c0_9 = arith.constant 0 : index
    %10 = vector.load %arg6[%c0_8, %c0_9] : memref<8x16xf32, #tpu.memory_space<vmem>>, vector<8x16xf32>
    %cst_10 = arith.constant dense<0.000000e+00> : vector<16x16xf32>
    %11 = tpu.matmul %9, %10, %cst_10 {dimension_numbers = #tpu.dot_dimension_numbers<[1], [0], [0], [1], [0, 0, 1, 1], [], []>, precision = #tpu.contract_precision<fp32>} : vector<16x8xf32>, vector<8x16xf32>, vector<16x16xf32> -> vector<16x16xf32>
    %c0_11 = arith.constant 0 : index
    %c0_12 = arith.constant 0 : index
    %12 = vector.load %arg7[%c0_11, %c0_12] : memref<1x16xf32, #tpu.memory_space<vmem>>, vector<1x16xf32>
    %13 = vector.broadcast %12 : vector<1x16xf32> to vector<16x16xf32>
    %14 = arith.addf %11, %13 : vector<16x16xf32>
    %15 = tpu.transpose %14, [1, 0] : vector<16x16xf32> -> vector<16x16xf32>
    %c0_13 = arith.constant 0 : index
    %c0_14 = arith.constant 0 : index
    %16 = vector.load %arg4[%c0_13, %c0_14] : memref<16x1xi32, #tpu.memory_space<vmem>>, vector<16x1xi32>
    %c0_15 = arith.constant 0 : index
    %c0_16 = arith.constant 0 : index
    %17 = vector.load %arg5[%c0_15, %c0_16] : memref<1x16xi32, #tpu.memory_space<vmem>>, vector<1x16xi32>
    %18 = vector.broadcast %16 : vector<16x1xi32> to vector<16x16xi32>
    %19 = vector.broadcast %17 : vector<1x16xi32> to vector<16x16xi32>
    %20 = arith.cmpi eq, %18, %19 : vector<16x16xi32>
    %c0_17 = arith.constant 0 : index
    %c0_18 = arith.constant 0 : index
    %21 = vector.load %arg10[%c0_17, %c0_18] : memref<2x16xf32, #tpu.memory_space<vmem>>, vector<2x16xf32>
    %cst_19 = arith.constant dense<0.000000e+00> : vector<16x2xf32>
    %22 = tpu.matmul %8, %21, %cst_19 {dimension_numbers = #tpu.dot_dimension_numbers<[1], [1], [0], [0], [0, 0, 1, 0], [], []>, precision = #tpu.contract_precision<fp32>} : vector<16x16xf32>, vector<2x16xf32>, vector<16x2xf32> -> vector<16x2xf32>
    %cst_20 = arith.constant dense<0.000000e+00> : vector<2x16xf32>
    %23 = tpu.matmul %21, %15, %cst_20 {dimension_numbers = #tpu.dot_dimension_numbers<[1], [0], [0], [1], [0, 0, 1, 1], [], []>, precision = #tpu.contract_precision<fp32>} : vector<2x16xf32>, vector<16x16xf32>, vector<2x16xf32> -> vector<2x16xf32>
    %24 = vector.extract_strided_slice %22 {offsets = [0, 0], sizes = [16, 1], strides = [1, 1]} : vector<16x2xf32> to vector<16x1xf32>
    %25 = vector.extract_strided_slice %23 {offsets = [0, 0], sizes = [1, 16], strides = [1, 1]} : vector<2x16xf32> to vector<1x16xf32>
    %26 = vector.broadcast %24 : vector<16x1xf32> to vector<16x16xf32>
    %27 = vector.broadcast %25 : vector<1x16xf32> to vector<16x16xf32>
    %28 = arith.addf %26, %27 : vector<16x16xf32>
    %29 = vector.extract_strided_slice %8 {offsets = [0, 0], sizes = [16, 1], strides = [1, 1]} : vector<16x16xf32> to vector<16x1xf32>
    %30 = vector.extract_strided_slice %15 {offsets = [0, 0], sizes = [1, 16], strides = [1, 1]} : vector<16x16xf32> to vector<1x16xf32>
    %31 = vector.broadcast %29 : vector<16x1xf32> to vector<16x16xf32>
    %32 = vector.broadcast %30 : vector<1x16xf32> to vector<16x16xf32>
    %33 = arith.addf %31, %32 : vector<16x16xf32>
    %c0_21 = arith.constant 0 : index
    %c0_22 = arith.constant 0 : index
    %34 = memref.load %arg11[%c0_21, %c0_22] : memref<2x8xf32, #tpu.memory_space<smem>>
    %cst_23 = arith.constant 0.000000e+00 : f32
    %35 = vector.broadcast %cst_23 : f32 to vector<16x16xf32>
    %36 = arith.maximumf %33, %35 : vector<16x16xf32>
    %37 = vector.broadcast %34 : f32 to vector<16x16xf32>
    %38 = arith.mulf %37, %36 : vector<16x16xf32>
    %39 = arith.addf %28, %38 : vector<16x16xf32>
    %40 = vector.extract_strided_slice %8 {offsets = [0, 1], sizes = [16, 1], strides = [1, 1]} : vector<16x16xf32> to vector<16x1xf32>
    %41 = vector.extract_strided_slice %15 {offsets = [1, 0], sizes = [1, 16], strides = [1, 1]} : vector<16x16xf32> to vector<1x16xf32>
    %42 = vector.broadcast %40 : vector<16x1xf32> to vector<16x16xf32>
    %43 = vector.broadcast %41 : vector<1x16xf32> to vector<16x16xf32>
    %44 = arith.addf %42, %43 : vector<16x16xf32>
    %c0_24 = arith.constant 0 : index
    %c1 = arith.constant 1 : index
    %45 = memref.load %arg11[%c0_24, %c1] : memref<2x8xf32, #tpu.memory_space<smem>>
    %cst_25 = arith.constant 0.000000e+00 : f32
    %46 = vector.broadcast %cst_25 : f32 to vector<16x16xf32>
    %47 = arith.maximumf %44, %46 : vector<16x16xf32>
    %48 = vector.broadcast %45 : f32 to vector<16x16xf32>
    %49 = arith.mulf %48, %47 : vector<16x16xf32>
    %50 = arith.addf %39, %49 : vector<16x16xf32>
    %51 = vector.extract_strided_slice %8 {offsets = [0, 2], sizes = [16, 1], strides = [1, 1]} : vector<16x16xf32> to vector<16x1xf32>
    %52 = vector.extract_strided_slice %15 {offsets = [2, 0], sizes = [1, 16], strides = [1, 1]} : vector<16x16xf32> to vector<1x16xf32>
    %53 = vector.broadcast %51 : vector<16x1xf32> to vector<16x16xf32>
    %54 = vector.broadcast %52 : vector<1x16xf32> to vector<16x16xf32>
    %55 = arith.addf %53, %54 : vector<16x16xf32>
    %c0_26 = arith.constant 0 : index
    %c2 = arith.constant 2 : index
    %56 = memref.load %arg11[%c0_26, %c2] : memref<2x8xf32, #tpu.memory_space<smem>>
    %cst_27 = arith.constant 0.000000e+00 : f32
    %57 = vector.broadcast %cst_27 : f32 to vector<16x16xf32>
    %58 = arith.maximumf %55, %57 : vector<16x16xf32>
    %59 = vector.broadcast %56 : f32 to vector<16x16xf32>
    %60 = arith.mulf %59, %58 : vector<16x16xf32>
    %61 = arith.addf %50, %60 : vector<16x16xf32>
    %62 = vector.extract_strided_slice %8 {offsets = [0, 3], sizes = [16, 1], strides = [1, 1]} : vector<16x16xf32> to vector<16x1xf32>
    %63 = vector.extract_strided_slice %15 {offsets = [3, 0], sizes = [1, 16], strides = [1, 1]} : vector<16x16xf32> to vector<1x16xf32>
    %64 = vector.broadcast %62 : vector<16x1xf32> to vector<16x16xf32>
    %65 = vector.broadcast %63 : vector<1x16xf32> to vector<16x16xf32>
    %66 = arith.addf %64, %65 : vector<16x16xf32>
    %c0_28 = arith.constant 0 : index
    %c3 = arith.constant 3 : index
    %67 = memref.load %arg11[%c0_28, %c3] : memref<2x8xf32, #tpu.memory_space<smem>>
    %cst_29 = arith.constant 0.000000e+00 : f32
    %68 = vector.broadcast %cst_29 : f32 to vector<16x16xf32>
    %69 = arith.maximumf %66, %68 : vector<16x16xf32>
    %70 = vector.broadcast %67 : f32 to vector<16x16xf32>
    %71 = arith.mulf %70, %69 : vector<16x16xf32>
    %72 = arith.addf %61, %71 : vector<16x16xf32>
    %73 = vector.extract_strided_slice %8 {offsets = [0, 4], sizes = [16, 1], strides = [1, 1]} : vector<16x16xf32> to vector<16x1xf32>
    %74 = vector.extract_strided_slice %15 {offsets = [4, 0], sizes = [1, 16], strides = [1, 1]} : vector<16x16xf32> to vector<1x16xf32>
    %75 = vector.broadcast %73 : vector<16x1xf32> to vector<16x16xf32>
    %76 = vector.broadcast %74 : vector<1x16xf32> to vector<16x16xf32>
    %77 = arith.addf %75, %76 : vector<16x16xf32>
    %c0_30 = arith.constant 0 : index
    %c4 = arith.constant 4 : index
    %78 = memref.load %arg11[%c0_30, %c4] : memref<2x8xf32, #tpu.memory_space<smem>>
    %cst_31 = arith.constant 0.000000e+00 : f32
    %79 = vector.broadcast %cst_31 : f32 to vector<16x16xf32>
    %80 = arith.maximumf %77, %79 : vector<16x16xf32>
    %81 = vector.broadcast %78 : f32 to vector<16x16xf32>
    %82 = arith.mulf %81, %80 : vector<16x16xf32>
    %83 = arith.addf %72, %82 : vector<16x16xf32>
    %84 = vector.extract_strided_slice %8 {offsets = [0, 5], sizes = [16, 1], strides = [1, 1]} : vector<16x16xf32> to vector<16x1xf32>
    %85 = vector.extract_strided_slice %15 {offsets = [5, 0], sizes = [1, 16], strides = [1, 1]} : vector<16x16xf32> to vector<1x16xf32>
    %86 = vector.broadcast %84 : vector<16x1xf32> to vector<16x16xf32>
    %87 = vector.broadcast %85 : vector<1x16xf32> to vector<16x16xf32>
    %88 = arith.addf %86, %87 : vector<16x16xf32>
    %c0_32 = arith.constant 0 : index
    %c5 = arith.constant 5 : index
    %89 = memref.load %arg11[%c0_32, %c5] : memref<2x8xf32, #tpu.memory_space<smem>>
    %cst_33 = arith.constant 0.000000e+00 : f32
    %90 = vector.broadcast %cst_33 : f32 to vector<16x16xf32>
    %91 = arith.maximumf %88, %90 : vector<16x16xf32>
    %92 = vector.broadcast %89 : f32 to vector<16x16xf32>
    %93 = arith.mulf %92, %91 : vector<16x16xf32>
    %94 = arith.addf %83, %93 : vector<16x16xf32>
    %95 = vector.extract_strided_slice %8 {offsets = [0, 6], sizes = [16, 1], strides = [1, 1]} : vector<16x16xf32> to vector<16x1xf32>
    %96 = vector.extract_strided_slice %15 {offsets = [6, 0], sizes = [1, 16], strides = [1, 1]} : vector<16x16xf32> to vector<1x16xf32>
    %97 = vector.broadcast %95 : vector<16x1xf32> to vector<16x16xf32>
    %98 = vector.broadcast %96 : vector<1x16xf32> to vector<16x16xf32>
    %99 = arith.addf %97, %98 : vector<16x16xf32>
    %c0_34 = arith.constant 0 : index
    %c6 = arith.constant 6 : index
    %100 = memref.load %arg11[%c0_34, %c6] : memref<2x8xf32, #tpu.memory_space<smem>>
    %cst_35 = arith.constant 0.000000e+00 : f32
    %101 = vector.broadcast %cst_35 : f32 to vector<16x16xf32>
    %102 = arith.maximumf %99, %101 : vector<16x16xf32>
    %103 = vector.broadcast %100 : f32 to vector<16x16xf32>
    %104 = arith.mulf %103, %102 : vector<16x16xf32>
    %105 = arith.addf %94, %104 : vector<16x16xf32>
    %106 = vector.extract_strided_slice %8 {offsets = [0, 7], sizes = [16, 1], strides = [1, 1]} : vector<16x16xf32> to vector<16x1xf32>
    %107 = vector.extract_strided_slice %15 {offsets = [7, 0], sizes = [1, 16], strides = [1, 1]} : vector<16x16xf32> to vector<1x16xf32>
    %108 = vector.broadcast %106 : vector<16x1xf32> to vector<16x16xf32>
    %109 = vector.broadcast %107 : vector<1x16xf32> to vector<16x16xf32>
    %110 = arith.addf %108, %109 : vector<16x16xf32>
    %c0_36 = arith.constant 0 : index
    %c7 = arith.constant 7 : index
    %111 = memref.load %arg11[%c0_36, %c7] : memref<2x8xf32, #tpu.memory_space<smem>>
    %cst_37 = arith.constant 0.000000e+00 : f32
    %112 = vector.broadcast %cst_37 : f32 to vector<16x16xf32>
    %113 = arith.maximumf %110, %112 : vector<16x16xf32>
    %114 = vector.broadcast %111 : f32 to vector<16x16xf32>
    %115 = arith.mulf %114, %113 : vector<16x16xf32>
    %116 = arith.addf %105, %115 : vector<16x16xf32>
    %cst_38 = arith.constant -1.000000e+30 : f32
    %117 = vector.broadcast %cst_38 : f32 to vector<16x16xf32>
    %118 = arith.select %20, %116, %117 : vector<16x16xi1>, vector<16x16xf32>
    %c0_39 = arith.constant 0 : index
    %c0_40 = arith.constant 0 : index
    %119 = vector.load %arg14[%c0_39, %c0_40] : memref<16x2xf32, #tpu.memory_space<vmem>>, vector<16x1xf32>
    %cst_41 = arith.constant dense<0xFF800000> : vector<16xf32>
    %120 = vector.multi_reduction <maximumf>, %118, %cst_41 [1] : vector<16x16xf32> to vector<16xf32>
    %121 = vector.shape_cast %120 : vector<16xf32> to vector<16x1xf32>
    %122 = arith.maximumf %119, %121 : vector<16x1xf32>
    %123 = arith.subf %119, %122 : vector<16x1xf32>
    %124 = math.exp %123 : vector<16x1xf32>
    %125 = vector.broadcast %122 : vector<16x1xf32> to vector<16x16xf32>
    %126 = arith.subf %118, %125 : vector<16x16xf32>
    %127 = math.exp %126 : vector<16x16xf32>
    %c0_42 = arith.constant 0 : index
    %c0_43 = arith.constant 0 : index
    %128 = vector.load %arg15[%c0_42, %c0_43] : memref<16x2xf32, #tpu.memory_space<vmem>>, vector<16x1xf32>
    %129 = arith.mulf %124, %128 : vector<16x1xf32>
    %cst_44 = arith.constant dense<0.000000e+00> : vector<16xf32>
    %130 = vector.multi_reduction <add>, %127, %cst_44 [1] : vector<16x16xf32> to vector<16xf32>
    %131 = vector.shape_cast %130 : vector<16xf32> to vector<16x1xf32>
    %132 = arith.addf %129, %131 : vector<16x1xf32>
    %c0_45 = arith.constant 0 : index
    %c0_46 = arith.constant 0 : index
    %133 = vector.load %arg15[%c0_45, %c0_46] : memref<16x2xf32, #tpu.memory_space<vmem>>, vector<16x1xf32>
    tpu.vector_store %arg15[%c0_45, %c0_46], %132 {strides = array<i32>} : memref<16x2xf32, #tpu.memory_space<vmem>>, vector<16x1xf32>,
    %c0_47 = arith.constant 0 : index
    %c0_48 = arith.constant 0 : index
    %134 = vector.load %arg16[%c0_47, %c0_48] : memref<16x16xf32, #tpu.memory_space<vmem>>, vector<16x8xf32>
    %135 = vector.broadcast %124 : vector<16x1xf32> to vector<16x8xf32>
    %136 = arith.mulf %135, %134 : vector<16x8xf32>
    %137 = vector.extract_strided_slice %14 {offsets = [0, 0], sizes = [16, 8], strides = [1, 1]} : vector<16x16xf32> to vector<16x8xf32>
    %cst_49 = arith.constant dense<0.000000e+00> : vector<16x8xf32>
    %138 = tpu.matmul %127, %137, %cst_49 {dimension_numbers = #tpu.dot_dimension_numbers<[1], [0], [0], [1], [0, 0, 1, 1], [], []>, precision = #tpu.contract_precision<fp32>} : vector<16x16xf32>, vector<16x8xf32>, vector<16x8xf32> -> vector<16x8xf32>
    %139 = arith.addf %136, %138 : vector<16x8xf32>
    %c0_50 = arith.constant 0 : index
    %c0_51 = arith.constant 0 : index
    %140 = vector.load %arg16[%c0_50, %c0_51] : memref<16x16xf32, #tpu.memory_space<vmem>>, vector<16x8xf32>
    tpu.vector_store %arg16[%c0_50, %c0_51], %139 {strides = array<i32>} : memref<16x16xf32, #tpu.memory_space<vmem>>, vector<16x8xf32>,
    %c0_52 = arith.constant 0 : index
    %c0_53 = arith.constant 0 : index
    %141 = vector.load %arg14[%c0_52, %c0_53] : memref<16x2xf32, #tpu.memory_space<vmem>>, vector<16x1xf32>
    tpu.vector_store %arg14[%c0_52, %c0_53], %122 {strides = array<i32>} : memref<16x2xf32, #tpu.memory_space<vmem>>, vector<16x1xf32>,
    %142 = vector.extract_strided_slice %22 {offsets = [0, 1], sizes = [16, 1], strides = [1, 1]} : vector<16x2xf32> to vector<16x1xf32>
    %143 = vector.extract_strided_slice %23 {offsets = [1, 0], sizes = [1, 16], strides = [1, 1]} : vector<2x16xf32> to vector<1x16xf32>
    %144 = vector.broadcast %142 : vector<16x1xf32> to vector<16x16xf32>
    %145 = vector.broadcast %143 : vector<1x16xf32> to vector<16x16xf32>
    %146 = arith.addf %144, %145 : vector<16x16xf32>
    %147 = vector.extract_strided_slice %8 {offsets = [0, 8], sizes = [16, 1], strides = [1, 1]} : vector<16x16xf32> to vector<16x1xf32>
    %148 = vector.extract_strided_slice %15 {offsets = [8, 0], sizes = [1, 16], strides = [1, 1]} : vector<16x16xf32> to vector<1x16xf32>
    %149 = vector.broadcast %147 : vector<16x1xf32> to vector<16x16xf32>
    %150 = vector.broadcast %148 : vector<1x16xf32> to vector<16x16xf32>
    %151 = arith.addf %149, %150 : vector<16x16xf32>
    %c1_54 = arith.constant 1 : index
    %c0_55 = arith.constant 0 : index
    %152 = memref.load %arg11[%c1_54, %c0_55] : memref<2x8xf32, #tpu.memory_space<smem>>
    %cst_56 = arith.constant 0.000000e+00 : f32
    %153 = vector.broadcast %cst_56 : f32 to vector<16x16xf32>
    %154 = arith.maximumf %151, %153 : vector<16x16xf32>
    %155 = vector.broadcast %152 : f32 to vector<16x16xf32>
    %156 = arith.mulf %155, %154 : vector<16x16xf32>
    %157 = arith.addf %146, %156 : vector<16x16xf32>
    %158 = vector.extract_strided_slice %8 {offsets = [0, 9], sizes = [16, 1], strides = [1, 1]} : vector<16x16xf32> to vector<16x1xf32>
    %159 = vector.extract_strided_slice %15 {offsets = [9, 0], sizes = [1, 16], strides = [1, 1]} : vector<16x16xf32> to vector<1x16xf32>
    %160 = vector.broadcast %158 : vector<16x1xf32> to vector<16x16xf32>
    %161 = vector.broadcast %159 : vector<1x16xf32> to vector<16x16xf32>
    %162 = arith.addf %160, %161 : vector<16x16xf32>
    %c1_57 = arith.constant 1 : index
    %c1_58 = arith.constant 1 : index
    %163 = memref.load %arg11[%c1_57, %c1_58] : memref<2x8xf32, #tpu.memory_space<smem>>
    %cst_59 = arith.constant 0.000000e+00 : f32
    %164 = vector.broadcast %cst_59 : f32 to vector<16x16xf32>
    %165 = arith.maximumf %162, %164 : vector<16x16xf32>
    %166 = vector.broadcast %163 : f32 to vector<16x16xf32>
    %167 = arith.mulf %166, %165 : vector<16x16xf32>
    %168 = arith.addf %157, %167 : vector<16x16xf32>
    %169 = vector.extract_strided_slice %8 {offsets = [0, 10], sizes = [16, 1], strides = [1, 1]} : vector<16x16xf32> to vector<16x1xf32>
    %170 = vector.extract_strided_slice %15 {offsets = [10, 0], sizes = [1, 16], strides = [1, 1]} : vector<16x16xf32> to vector<1x16xf32>
    %171 = vector.broadcast %169 : vector<16x1xf32> to vector<16x16xf32>
    %172 = vector.broadcast %170 : vector<1x16xf32> to vector<16x16xf32>
    %173 = arith.addf %171, %172 : vector<16x16xf32>
    %c1_60 = arith.constant 1 : index
    %c2_61 = arith.constant 2 : index
    %174 = memref.load %arg11[%c1_60, %c2_61] : memref<2x8xf32, #tpu.memory_space<smem>>
    %cst_62 = arith.constant 0.000000e+00 : f32
    %175 = vector.broadcast %cst_62 : f32 to vector<16x16xf32>
    %176 = arith.maximumf %173, %175 : vector<16x16xf32>
    %177 = vector.broadcast %174 : f32 to vector<16x16xf32>
    %178 = arith.mulf %177, %176 : vector<16x16xf32>
    %179 = arith.addf %168, %178 : vector<16x16xf32>
    %180 = vector.extract_strided_slice %8 {offsets = [0, 11], sizes = [16, 1], strides = [1, 1]} : vector<16x16xf32> to vector<16x1xf32>
    %181 = vector.extract_strided_slice %15 {offsets = [11, 0], sizes = [1, 16], strides = [1, 1]} : vector<16x16xf32> to vector<1x16xf32>
    %182 = vector.broadcast %180 : vector<16x1xf32> to vector<16x16xf32>
    %183 = vector.broadcast %181 : vector<1x16xf32> to vector<16x16xf32>
    %184 = arith.addf %182, %183 : vector<16x16xf32>
    %c1_63 = arith.constant 1 : index
    %c3_64 = arith.constant 3 : index
    %185 = memref.load %arg11[%c1_63, %c3_64] : memref<2x8xf32, #tpu.memory_space<smem>>
    %cst_65 = arith.constant 0.000000e+00 : f32
    %186 = vector.broadcast %cst_65 : f32 to vector<16x16xf32>
    %187 = arith.maximumf %184, %186 : vector<16x16xf32>
    %188 = vector.broadcast %185 : f32 to vector<16x16xf32>
    %189 = arith.mulf %188, %187 : vector<16x16xf32>
    %190 = arith.addf %179, %189 : vector<16x16xf32>
    %191 = vector.extract_strided_slice %8 {offsets = [0, 12], sizes = [16, 1], strides = [1, 1]} : vector<16x16xf32> to vector<16x1xf32>
    %192 = vector.extract_strided_slice %15 {offsets = [12, 0], sizes = [1, 16], strides = [1, 1]} : vector<16x16xf32> to vector<1x16xf32>
    %193 = vector.broadcast %191 : vector<16x1xf32> to vector<16x16xf32>
    %194 = vector.broadcast %192 : vector<1x16xf32> to vector<16x16xf32>
    %195 = arith.addf %193, %194 : vector<16x16xf32>
    %c1_66 = arith.constant 1 : index
    %c4_67 = arith.constant 4 : index
    %196 = memref.load %arg11[%c1_66, %c4_67] : memref<2x8xf32, #tpu.memory_space<smem>>
    %cst_68 = arith.constant 0.000000e+00 : f32
    %197 = vector.broadcast %cst_68 : f32 to vector<16x16xf32>
    %198 = arith.maximumf %195, %197 : vector<16x16xf32>
    %199 = vector.broadcast %196 : f32 to vector<16x16xf32>
    %200 = arith.mulf %199, %198 : vector<16x16xf32>
    %201 = arith.addf %190, %200 : vector<16x16xf32>
    %202 = vector.extract_strided_slice %8 {offsets = [0, 13], sizes = [16, 1], strides = [1, 1]} : vector<16x16xf32> to vector<16x1xf32>
    %203 = vector.extract_strided_slice %15 {offsets = [13, 0], sizes = [1, 16], strides = [1, 1]} : vector<16x16xf32> to vector<1x16xf32>
    %204 = vector.broadcast %202 : vector<16x1xf32> to vector<16x16xf32>
    %205 = vector.broadcast %203 : vector<1x16xf32> to vector<16x16xf32>
    %206 = arith.addf %204, %205 : vector<16x16xf32>
    %c1_69 = arith.constant 1 : index
    %c5_70 = arith.constant 5 : index
    %207 = memref.load %arg11[%c1_69, %c5_70] : memref<2x8xf32, #tpu.memory_space<smem>>
    %cst_71 = arith.constant 0.000000e+00 : f32
    %208 = vector.broadcast %cst_71 : f32 to vector<16x16xf32>
    %209 = arith.maximumf %206, %208 : vector<16x16xf32>
    %210 = vector.broadcast %207 : f32 to vector<16x16xf32>
    %211 = arith.mulf %210, %209 : vector<16x16xf32>
    %212 = arith.addf %201, %211 : vector<16x16xf32>
    %213 = vector.extract_strided_slice %8 {offsets = [0, 14], sizes = [16, 1], strides = [1, 1]} : vector<16x16xf32> to vector<16x1xf32>
    %214 = vector.extract_strided_slice %15 {offsets = [14, 0], sizes = [1, 16], strides = [1, 1]} : vector<16x16xf32> to vector<1x16xf32>
    %215 = vector.broadcast %213 : vector<16x1xf32> to vector<16x16xf32>
    %216 = vector.broadcast %214 : vector<1x16xf32> to vector<16x16xf32>
    %217 = arith.addf %215, %216 : vector<16x16xf32>
    %c1_72 = arith.constant 1 : index
    %c6_73 = arith.constant 6 : index
    %218 = memref.load %arg11[%c1_72, %c6_73] : memref<2x8xf32, #tpu.memory_space<smem>>
    %cst_74 = arith.constant 0.000000e+00 : f32
    %219 = vector.broadcast %cst_74 : f32 to vector<16x16xf32>
    %220 = arith.maximumf %217, %219 : vector<16x16xf32>
    %221 = vector.broadcast %218 : f32 to vector<16x16xf32>
    %222 = arith.mulf %221, %220 : vector<16x16xf32>
    %223 = arith.addf %212, %222 : vector<16x16xf32>
    %224 = vector.extract_strided_slice %8 {offsets = [0, 15], sizes = [16, 1], strides = [1, 1]} : vector<16x16xf32> to vector<16x1xf32>
    %225 = vector.extract_strided_slice %15 {offsets = [15, 0], sizes = [1, 16], strides = [1, 1]} : vector<16x16xf32> to vector<1x16xf32>
    %226 = vector.broadcast %224 : vector<16x1xf32> to vector<16x16xf32>
    %227 = vector.broadcast %225 : vector<1x16xf32> to vector<16x16xf32>
    %228 = arith.addf %226, %227 : vector<16x16xf32>
    %c1_75 = arith.constant 1 : index
    %c7_76 = arith.constant 7 : index
    %229 = memref.load %arg11[%c1_75, %c7_76] : memref<2x8xf32, #tpu.memory_space<smem>>
    %cst_77 = arith.constant 0.000000e+00 : f32
    %230 = vector.broadcast %cst_77 : f32 to vector<16x16xf32>
    %231 = arith.maximumf %228, %230 : vector<16x16xf32>
    %232 = vector.broadcast %229 : f32 to vector<16x16xf32>
    %233 = arith.mulf %232, %231 : vector<16x16xf32>
    %234 = arith.addf %223, %233 : vector<16x16xf32>
    %cst_78 = arith.constant -1.000000e+30 : f32
    %235 = vector.broadcast %cst_78 : f32 to vector<16x16xf32>
    %236 = arith.select %20, %234, %235 : vector<16x16xi1>, vector<16x16xf32>
    %c0_79 = arith.constant 0 : index
    %c1_80 = arith.constant 1 : index
    %237 = vector.load %arg14[%c0_79, %c1_80] : memref<16x2xf32, #tpu.memory_space<vmem>>, vector<16x1xf32>
    %cst_81 = arith.constant dense<0xFF800000> : vector<16xf32>
    %238 = vector.multi_reduction <maximumf>, %236, %cst_81 [1] : vector<16x16xf32> to vector<16xf32>
    %239 = vector.shape_cast %238 : vector<16xf32> to vector<16x1xf32>
    %240 = arith.maximumf %237, %239 : vector<16x1xf32>
    %241 = arith.subf %237, %240 : vector<16x1xf32>
    %242 = math.exp %241 : vector<16x1xf32>
    %243 = vector.broadcast %240 : vector<16x1xf32> to vector<16x16xf32>
    %244 = arith.subf %236, %243 : vector<16x16xf32>
    %245 = math.exp %244 : vector<16x16xf32>
    %c0_82 = arith.constant 0 : index
    %c1_83 = arith.constant 1 : index
    %246 = vector.load %arg15[%c0_82, %c1_83] : memref<16x2xf32, #tpu.memory_space<vmem>>, vector<16x1xf32>
    %247 = arith.mulf %242, %246 : vector<16x1xf32>
    %cst_84 = arith.constant dense<0.000000e+00> : vector<16xf32>
    %248 = vector.multi_reduction <add>, %245, %cst_84 [1] : vector<16x16xf32> to vector<16xf32>
    %249 = vector.shape_cast %248 : vector<16xf32> to vector<16x1xf32>
    %250 = arith.addf %247, %249 : vector<16x1xf32>
    %c0_85 = arith.constant 0 : index
    %c1_86 = arith.constant 1 : index
    %251 = vector.load %arg15[%c0_85, %c1_86] : memref<16x2xf32, #tpu.memory_space<vmem>>, vector<16x1xf32>
    tpu.vector_store %arg15[%c0_85, %c1_86], %250 {strides = array<i32>} : memref<16x2xf32, #tpu.memory_space<vmem>>, vector<16x1xf32>,
    %c0_87 = arith.constant 0 : index
    %c8 = arith.constant 8 : index
    %252 = vector.load %arg16[%c0_87, %c8] : memref<16x16xf32, #tpu.memory_space<vmem>>, vector<16x8xf32>
    %253 = vector.broadcast %242 : vector<16x1xf32> to vector<16x8xf32>
    %254 = arith.mulf %253, %252 : vector<16x8xf32>
    %255 = vector.extract_strided_slice %14 {offsets = [0, 8], sizes = [16, 8], strides = [1, 1]} : vector<16x16xf32> to vector<16x8xf32>
    %cst_88 = arith.constant dense<0.000000e+00> : vector<16x8xf32>
    %256 = tpu.matmul %245, %255, %cst_88 {dimension_numbers = #tpu.dot_dimension_numbers<[1], [0], [0], [1], [0, 0, 1, 1], [], []>, precision = #tpu.contract_precision<fp32>} : vector<16x16xf32>, vector<16x8xf32>, vector<16x8xf32> -> vector<16x8xf32>
    %257 = arith.addf %254, %256 : vector<16x8xf32>
    %c0_89 = arith.constant 0 : index
    %c8_90 = arith.constant 8 : index
    %258 = vector.load %arg16[%c0_89, %c8_90] : memref<16x16xf32, #tpu.memory_space<vmem>>, vector<16x8xf32>
    tpu.vector_store %arg16[%c0_89, %c8_90], %257 {strides = array<i32>} : memref<16x16xf32, #tpu.memory_space<vmem>>, vector<16x8xf32>,
    %c0_91 = arith.constant 0 : index
    %c1_92 = arith.constant 1 : index
    %259 = vector.load %arg14[%c0_91, %c1_92] : memref<16x2xf32, #tpu.memory_space<vmem>>, vector<16x1xf32>
    tpu.vector_store %arg14[%c0_91, %c1_92], %240 {strides = array<i32>} : memref<16x2xf32, #tpu.memory_space<vmem>>, vector<16x1xf32>,
    %c0_i32_93 = arith.constant 0 : i32
    %260 = arith.cmpi eq, %arg1, %c0_i32_93 : i32
    %261 = arith.extui %260 : i1 to i32
    %c0_i32_94 = arith.constant 0 : i32
    %262 = arith.cmpi ne, %261, %c0_i32_94 : i32
    scf.if %262 {
      %cst_95 = arith.constant 0.000000e+00 : f32
      %263 = vector.broadcast %cst_95 : f32 to vector<16x8xf32>
      %c0_96 = arith.constant 0 : index
      %c0_97 = arith.constant 0 : index
      %264 = vector.load %arg16[%c0_96, %c0_97] : memref<16x16xf32, #tpu.memory_space<vmem>>, vector<16x8xf32>
      %c0_98 = arith.constant 0 : index
      %c0_99 = arith.constant 0 : index
      %265 = vector.load %arg15[%c0_98, %c0_99] : memref<16x2xf32, #tpu.memory_space<vmem>>, vector<16x1xf32>
      %266 = vector.broadcast %265 : vector<16x1xf32> to vector<16x8xf32>
      %267 = arith.divf %264, %266 : vector<16x8xf32>
      %268 = arith.addf %263, %267 : vector<16x8xf32>
      %c0_100 = arith.constant 0 : index
      %c8_101 = arith.constant 8 : index
      %269 = vector.load %arg16[%c0_100, %c8_101] : memref<16x16xf32, #tpu.memory_space<vmem>>, vector<16x8xf32>
      %c0_102 = arith.constant 0 : index
      %c1_103 = arith.constant 1 : index
      %270 = vector.load %arg15[%c0_102, %c1_103] : memref<16x2xf32, #tpu.memory_space<vmem>>, vector<16x1xf32>
      %271 = vector.broadcast %270 : vector<16x1xf32> to vector<16x8xf32>
      %272 = arith.divf %269, %271 : vector<16x8xf32>
      %273 = arith.addf %268, %272 : vector<16x8xf32>
      %cst_104 = arith.constant 5.000000e-01 : f32
      %274 = vector.broadcast %cst_104 : f32 to vector<16x8xf32>
      %275 = arith.mulf %273, %274 : vector<16x8xf32>
      %c0_105 = arith.constant 0 : index
      %c0_106 = arith.constant 0 : index
      %276 = vector.load %arg12[%c0_105, %c0_106] : memref<1x8xf32, #tpu.memory_space<vmem>>, vector<1x8xf32>
      %277 = vector.broadcast %276 : vector<1x8xf32> to vector<16x8xf32>
      %278 = arith.addf %275, %277 : vector<16x8xf32>
      %c0_107 = arith.constant 0 : index
      %c0_108 = arith.constant 0 : index
      %279 = vector.load %arg13[%c0_107, %c0_108] : memref<16x8xf32, #tpu.memory_space<vmem>>, vector<16x8xf32>
      tpu.vector_store %arg13[%c0_107, %c0_108], %278 {strides = array<i32>} : memref<16x8xf32, #tpu.memory_space<vmem>>, vector<16x8xf32>,
    } else {
    }
    return
  }
  func.func @transform_0(%arg0: i32, %arg1: i32) -> (i32, i32) {
    %c0_i32 = arith.constant 0 : i32
    %c0_i32_0 = arith.constant 0 : i32
    return %arg0, %c0_i32 : i32, i32
  }
  func.func @transform_1(%arg0: i32, %arg1: i32) -> (i32, i32) {
    %c0_i32 = arith.constant 0 : i32
    %c0_i32_0 = arith.constant 0 : i32
    return %arg1, %c0_i32 : i32, i32
  }
  func.func @transform_2(%arg0: i32, %arg1: i32) -> (i32, i32) {
    %c0_i32 = arith.constant 0 : i32
    %c0_i32_0 = arith.constant 0 : i32
    return %arg0, %c0_i32 : i32, i32
  }
  func.func @transform_3(%arg0: i32, %arg1: i32) -> (i32, i32) {
    %c0_i32 = arith.constant 0 : i32
    %c0_i32_0 = arith.constant 0 : i32
    return %c0_i32, %arg1 : i32, i32
  }
  func.func @transform_4(%arg0: i32, %arg1: i32) -> (i32, i32) {
    %c0_i32 = arith.constant 0 : i32
    %c0_i32_0 = arith.constant 0 : i32
    %c0_i32_1 = arith.constant 0 : i32
    return %c0_i32, %c0_i32_0 : i32, i32
  }
  func.func @transform_5(%arg0: i32, %arg1: i32) -> (i32, i32) {
    %c0_i32 = arith.constant 0 : i32
    %c0_i32_0 = arith.constant 0 : i32
    %c0_i32_1 = arith.constant 0 : i32
    return %c0_i32, %c0_i32_0 : i32, i32
  }
  func.func @transform_6(%arg0: i32, %arg1: i32) -> (i32, i32) {
    %c0_i32 = arith.constant 0 : i32
    %c0_i32_0 = arith.constant 0 : i32
    %c0_i32_1 = arith.constant 0 : i32
    return %c0_i32, %c0_i32_0 : i32, i32
  }
  func.func @transform_7(%arg0: i32, %arg1: i32) -> (i32, i32) {
    %c0_i32 = arith.constant 0 : i32
    %c0_i32_0 = arith.constant 0 : i32
    %c0_i32_1 = arith.constant 0 : i32
    return %c0_i32, %c0_i32_0 : i32, i32
  }
  func.func @transform_8(%arg0: i32, %arg1: i32) -> (i32, i32) {
    %c0_i32 = arith.constant 0 : i32
    %c0_i32_0 = arith.constant 0 : i32
    %c0_i32_1 = arith.constant 0 : i32
    return %c0_i32, %c0_i32_0 : i32, i32
  }
  func.func @transform_9(%arg0: i32, %arg1: i32) -> (i32, i32) {
    %c0_i32 = arith.constant 0 : i32
    %c0_i32_0 = arith.constant 0 : i32
    %c0_i32_1 = arith.constant 0 : i32
    return %c0_i32, %c0_i32_0 : i32, i32
  }
  func.func @transform_10(%arg0: i32, %arg1: i32) -> (i32, i32) {
    %c0_i32 = arith.constant 0 : i32
    %c0_i32_0 = arith.constant 0 : i32
    %c0_i32_1 = arith.constant 0 : i32
    return %c0_i32, %c0_i32_0 : i32, i32
  }
  func.func @transform_11(%arg0: i32, %arg1: i32) -> (i32, i32) {
    %c0_i32 = arith.constant 0 : i32
    %c0_i32_0 = arith.constant 0 : i32
    return %arg0, %c0_i32 : i32, i32
  }
}

</mosaic_0001>

<llo_original>
// kernel: tpu_custom_call.1
$region0: #{tpu_custom_call.1}
  #allocation0 [shape = 'u32[]', space=smem, size = 0x4, offset = 0x4, fixed_abs, tag = 'smem constant byte address 0x4 - core index']
  #allocation1 [shape = 'u32[144,128]{1,0:T(1,128)}', space=vmem, size = 0x12000, scoped, tag = 'internal scratch']
  #allocation2 [shape = 'f32[16,2]{1,0:T(8,128)}', space=vmem, size = 0x2000, scoped, tag = 'scratch operand']
  #allocation3 [shape = 'f32[16,2]{1,0:T(8,128)}', space=vmem, size = 0x2000, scoped, tag = 'scratch operand']
  #allocation4 [shape = 'f32[16,16]{1,0:T(8,128)}', space=vmem, size = 0x2000, scoped, tag = 'scratch operand']
  %s0 = inlined_call_operand.vmem [shape: f32[16,8], index: 0, kind: input, shape index: {}]
  %s1 = inlined_call_operand.vmem [shape: f32[16,8], index: 1, kind: input, shape index: {}]
  %s2 = inlined_call_operand.vmem [shape: s32[16,1], index: 2, kind: input, shape index: {}]
  %s3 = inlined_call_operand.vmem [shape: s32[1,16], index: 3, kind: input, shape index: {}]
  %s4 = inlined_call_operand.vmem [shape: f32[8,16], index: 4, kind: input, shape index: {}]
  %s5 = inlined_call_operand.vmem [shape: f32[1,16], index: 5, kind: input, shape index: {}]
  %s6 = inlined_call_operand.vmem [shape: f32[8,16], index: 6, kind: input, shape index: {}]
  %s7 = inlined_call_operand.vmem [shape: f32[1,16], index: 7, kind: input, shape index: {}]
  %s8 = inlined_call_operand.vmem [shape: f32[2,16], index: 8, kind: input, shape index: {}]
  %s9 = inlined_call_operand.vmem [shape: f32[2,8], index: 9, kind: input, shape index: {}]
  %s10 = inlined_call_operand.vmem [shape: f32[1,8], index: 10, kind: input, shape index: {}]
  %s11 = inlined_call_operand.vmem [shape: f32[16,8], index: 11, kind: output, shape index: {}]
  %s12 = sld [smem:[#allocation0]]
  $region66: #{tpu_custom_call.1} parent=0
    _
  %s14 = ssub.s32 1, %s12
  %s15 = scalar_select 0, %s14, %s12
  $region1: #{tpu_custom_call.1} parent=0
    #allocation5 [shape = 'u8[1024]{0}', space=smem, size = 0x400, scoped, tag = 'input window, operand 9, single buffered']
    #allocation6 [shape = 's32[1]{0}', space=sflag, size = 0x4, scoped, tag = 'scoped memory for tpu_custom_call.1']
    %16 = vsyncpa [#allocation6], 0
    // Predicated region
    $region2: #{tpu_custom_call.1} parent=1 // pred_check
      _
    $region3: #{tpu_custom_call.1} parent=1 // pred_check_branch
      %18 = sbr.rel (0) target = $region5
    $region4: #{tpu_custom_call.1} parent=1 // pred_region
      _
    $region5: #{tpu_custom_call.1} parent=1 // pred_fallthru
      _
    // Predicated region
    $region6: #{tpu_custom_call.1} parent=1 // pred_check
      _
    $region7: #{tpu_custom_call.1} parent=1 // pred_check_branch
      %20 = sbr.rel (0) target = $region9
    $region8: #{tpu_custom_call.1} parent=1 // pred_region
      _
    $region9: #{tpu_custom_call.1} parent=1 // pred_fallthru
      _
    // Predicated region
    $region10: #{tpu_custom_call.1} parent=1 // pred_check
      _
    $region11: #{tpu_custom_call.1} parent=1 // pred_check_branch
      %22 = sbr.rel (0) target = $region13
    $region12: #{tpu_custom_call.1} parent=1 // pred_region
      _
    $region13: #{tpu_custom_call.1} parent=1 // pred_fallthru
      _
    // Predicated region
    $region14: #{tpu_custom_call.1} parent=1 // pred_check
      _
    $region15: #{tpu_custom_call.1} parent=1 // pred_check_branch
      %24 = sbr.rel (0) target = $region17
    $region16: #{tpu_custom_call.1} parent=1 // pred_region
      _
    $region17: #{tpu_custom_call.1} parent=1 // pred_fallthru
      _
    // Predicated region
    $region18: #{tpu_custom_call.1} parent=1 // pred_check
      _
    $region19: #{tpu_custom_call.1} parent=1 // pred_check_branch
      %26 = sbr.rel (0) target = $region21
    $region20: #{tpu_custom_call.1} parent=1 // pred_region
      _
    $region21: #{tpu_custom_call.1} parent=1 // pred_fallthru
      _
    // Predicated region
    $region22: #{tpu_custom_call.1} parent=1 // pred_check
      _
    $region23: #{tpu_custom_call.1} parent=1 // pred_check_branch
      %28 = sbr.rel (0) target = $region25
    $region24: #{tpu_custom_call.1} parent=1 // pred_region
      _
    $region25: #{tpu_custom_call.1} parent=1 // pred_fallthru
      _
    // Predicated region
    $region26: #{tpu_custom_call.1} parent=1 // pred_check
      _
    $region27: #{tpu_custom_call.1} parent=1 // pred_check_branch
      %30 = sbr.rel (0) target = $region29
    $region28: #{tpu_custom_call.1} parent=1 // pred_region
      _
    $region29: #{tpu_custom_call.1} parent=1 // pred_fallthru
      _
    // Predicated region
    $region30: #{tpu_custom_call.1} parent=1 // pred_check
      _
    $region31: #{tpu_custom_call.1} parent=1 // pred_check_branch
      %32 = sbr.rel (0) target = $region33
    $region32: #{tpu_custom_call.1} parent=1 // pred_region
      _
    $region33: #{tpu_custom_call.1} parent=1 // pred_fallthru
      _
    // Predicated region
    $region34: #{tpu_custom_call.1} parent=1 // pred_check
      _
    $region35: #{tpu_custom_call.1} parent=1 // pred_check_branch
      %34 = sbr.rel (0) target = $region37
    $region36: #{tpu_custom_call.1} parent=1 // pred_region
      _
    $region37: #{tpu_custom_call.1} parent=1 // pred_fallthru
      _
    // Predicated region
    $region38: #{tpu_custom_call.1} parent=1 // pred_check
      _
    $region39: #{tpu_custom_call.1} parent=1 // pred_check_branch
      %36 = sbr.rel (0) target = $region41
    $region40: #{tpu_custom_call.1} parent=1 // pred_region
      %s38 = ssub.s32 32, 32
      %39 = vsyncadd [#allocation6], %s38
      %s41 = sshll.u32 %s9, 4
      %s42 = int_to_ptr.vmem [resolvable:$true] %s41
      %44 = dma.vmem_to_smem %s42, 32, [#allocation5], [#allocation6]
    $region41: #{tpu_custom_call.1} parent=1 // pred_fallthru
      _
    // Predicated region
    $region42: #{tpu_custom_call.1} parent=1 // pred_check
      _
    $region43: #{tpu_custom_call.1} parent=1 // pred_check_branch
      %46 = sbr.rel (0) target = $region45
    $region44: #{tpu_custom_call.1} parent=1 // pred_region
      _
    $region45: #{tpu_custom_call.1} parent=1 // pred_fallthru
      _
    // Predicated region
    $region46: #{tpu_custom_call.1} parent=1 // pred_check
      _
    $region47: #{tpu_custom_call.1} parent=1 // pred_check_branch
      %48 = sbr.rel (0) target = $region49
    $region48: #{tpu_custom_call.1} parent=1 // pred_region
      %49 = dma.done [#allocation6], 32
    $region49: #{tpu_custom_call.1} parent=1 // pred_fallthru
      _
    %50 = sfence
    %p51 = scmp.eq.s32.totalorder 0, 0
    // Predicated region
    $region50: #{tpu_custom_call.1} parent=1 // pred_check
      %p52 = pneg %p51
    $region51: #{tpu_custom_call.1} parent=1 // pred_check_branch
      %54 = sbr.rel (%p52) target = $region53
    $region52: #{tpu_custom_call.1} parent=1 // pred_region
      %vm55 = vcmask 15360
      %56 = vst.msk [vmem:[#allocation2] sm:$0xff] %vm55, -1e+30
      %57 = vst.msk [vmem:[#allocation2 + $0x8] sm:$0xff] %vm55, -1e+30
      %58 = vst.msk [vmem:[#allocation3] sm:$0xff] %vm55, 0.0
      %59 = vst.msk [vmem:[#allocation3 + $0x8] sm:$0xff] %vm55, 0.0
      %vm60 = vcmask 130048
      %61 = vst.msk [vmem:[#allocation4] sm:$0xff] %vm60, 0.0
      %62 = vst.msk [vmem:[#allocation4 + $0x8] sm:$0xff] %vm60, 0.0
    $region53: #{tpu_custom_call.1} parent=1 // pred_fallthru
      _
    %v63 = vld [vmem:[%s0] sm:$0xff]
    %v64 = vld [vmem:[%s0 + $0x8] sm:$0xff]
    %v65 = vld [vmem:[%s6] sm:$0xff]
    %v66 = vld [vmem:[%s7] sm:$0x1]
    %v68 = vlaneseq
    %v69 = vshrl.u32 %v68, 7
    %v70 = vsub.s32 0, %v69
    %v71 = vrot.slane %v66, %v70
    %vm73 = vcmask 64512
    %v75 = vsel %vm73, %v63, 0
    %v78 = vsel %vm73, %v64, 0
    %80 = vmatprep.subr.mxu0 0.0
    %v81 = vand.u32 %v65, 4294901760
    %82 = vmatpush1.msra.mxu0 %v81
    %83 = vmatprep.subr.mxu0 0.0
    %84 = vmatpush1.msra.mxu0 0.0
    %85 = vmatprep.subr.mxu0 0.0
    %86 = vmatpush1.msra.mxu0 0.0
    %87 = vmatprep.subr.mxu0 0.0
    %88 = vmatpush1.msra.mxu0 0.0
    %89 = vmatprep.subr.mxu0 0.0
    %90 = vmatpush1.msra.mxu0 0.0
    %91 = vmatprep.subr.mxu0 0.0
    %92 = vmatpush1.msra.mxu0 0.0
    %93 = vmatprep.subr.mxu0 0.0
    %94 = vmatpush1.msra.mxu0 0.0
    %95 = vmatprep.subr.mxu0 0.0
    %96 = vmatpush1.msra.mxu0 0.0
    %97 = vmatprep.subr.mxu0 0.0
    %98 = vmatpush1.msra.mxu0 0.0
    %99 = vmatprep.subr.mxu0 0.0
    %100 = vmatpush1.msra.mxu0 0.0
    %101 = vmatprep.subr.mxu0 0.0
    %102 = vmatpush1.msra.mxu0 0.0
    %103 = vmatprep.subr.mxu0 0.0
    %104 = vmatpush1.msra.mxu0 0.0
    %105 = vmatprep.subr.mxu0 0.0
    %106 = vmatpush1.msra.mxu0 0.0
    %107 = vmatprep.subr.mxu0 0.0
    %108 = vmatpush1.msra.mxu0 0.0
    %109 = vmatprep.subr.mxu0 0.0
    %110 = vmatpush1.msra.mxu0 0.0
    %111 = vmatprep.subr.mxu0 0.0
    %112 = vmatpush1.msra.mxu0 0.0
    %113 = vmatprep.subr.mxu0 0.0
    %114 = vmatpush1.msra.mxu0 0.0
    %115 = vmatprep.subr.mxu0 0.0
    %116 = vmatpush1.msra.mxu0 0.0
    %117 = vmatprep.subr.mxu0 0.0
    %118 = vmatpush1.msra.mxu0 0.0
    %119 = vmatprep.subr.mxu0 0.0
    %120 = vmatpush1.msra.mxu0 0.0
    %121 = vmatprep.subr.mxu0 0.0
    %122 = vmatpush1.msra.mxu0 0.0
    %123 = vmatprep.subr.mxu0 0.0
    %124 = vmatpush1.msra.mxu0 0.0
    %125 = vmatprep.subr.mxu0 0.0
    %126 = vmatpush1.msra.mxu0 0.0
    %127 = vmatprep.subr.mxu0 0.0
    %128 = vmatpush1.msra.mxu0 0.0
    %129 = vmatprep.subr.mxu0 0.0
    %130 = vmatpush1.msra.mxu0 0.0
    %131 = vmatprep.subr.mxu0 0.0
    %132 = vmatpush1.msra.mxu0 0.0
    %133 = vmatprep.subr.mxu0 0.0
    %134 = vmatpush1.msra.mxu0 0.0
    %135 = vmatprep.subr.mxu0 0.0
    %136 = vmatpush1.msra.mxu0 0.0
    %137 = vmatprep.subr.mxu0 0.0
    %138 = vmatpush1.msra.mxu0 0.0
    %139 = vmatprep.subr.mxu0 0.0
    %140 = vmatpush1.msra.mxu0 0.0
    %141 = vmatprep.subr.mxu0 0.0
    %142 = vmatpush1.msra.mxu0 0.0
    %143 = vmatprep.subr.mxu0 0.0
    %144 = vmatpush1.msra.mxu0 0.0
    %145 = vmatprep.mubr.f32.mxu0 0.0
    %v146 = vand.u32 %v75, 4294901760
    %v147 = vsub.f32 %v75, %v146
    %v148 = vand.u32 %v147, 4294901760
    %v149 = vsub.f32 %v147, %v148
    %v150 = vand.u32 %v149, 4294901760
    %151 = vmatmul.mubr.f32.gmra.mrb[0].mxu0 %v150
    %v152 = vpop.f32.mrb[0].mxu0
    %v153 = vadd.f32 %v71, %v152
    %v154 = vpop.f32.mrb[0].mxu0
    %155 = vmatprep.mubr.f32.mxu0 0.0
    %v156 = vand.u32 %v78, 4294901760
    %v157 = vsub.f32 %v78, %v156
    %v158 = vand.u32 %v157, 4294901760
    %v159 = vsub.f32 %v157, %v158
    %v160 = vand.u32 %v159, 4294901760
    %161 = vmatmul.mubr.f32.gmra.mrb[0].mxu0 %v160
    %v162 = vpop.f32.mrb[0].mxu0
    %v163 = vadd.f32 %v71, %v162
    %v164 = vpop.f32.mrb[0].mxu0
    %165 = vdwg.mxu0
    %166 = vmatprep.subr.mxu0 0.0
    %v167 = vand.u32 %v65, 4294901760
    %v168 = vsub.f32 %v65, %v167
    %v169 = vand.u32 %v168, 4294901760
    %v170 = vsub.f32 %v168, %v169
    %v171 = vand.u32 %v170, 4294901760
    %172 = vmatpush1.msra.mxu0 %v171
    %173 = vmatprep.subr.mxu0 0.0
    %174 = vmatpush1.msra.mxu0 0.0
    %175 = vmatprep.subr.mxu0 0.0
    %176 = vmatpush1.msra.mxu0 0.0
    %177 = vmatprep.subr.mxu0 0.0
    %178 = vmatpush1.msra.mxu0 0.0
    %179 = vmatprep.subr.mxu0 0.0
    %180 = vmatpush1.msra.mxu0 0.0
    %181 = vmatprep.subr.mxu0 0.0
    %182 = vmatpush1.msra.mxu0 0.0
    %183 = vmatprep.subr.mxu0 0.0
    %184 = vmatpush1.msra.mxu0 0.0
    %185 = vmatprep.subr.mxu0 0.0
    %186 = vmatpush1.msra.mxu0 0.0
    %187 = vmatprep.subr.mxu0 0.0
    %188 = vmatpush1.msra.mxu0 0.0
    %189 = vmatprep.subr.mxu0 0.0
    %190 = vmatpush1.msra.mxu0 0.0
    %191 = vmatprep.subr.mxu0 0.0
    %192 = vmatpush1.msra.mxu0 0.0
    %193 = vmatprep.subr.mxu0 0.0
    %194 = vmatpush1.msra.mxu0 0.0
    %195 = vmatprep.subr.mxu0 0.0
    %196 = vmatpush1.msra.mxu0 0.0
    %197 = vmatprep.subr.mxu0 0.0
    %198 = vmatpush1.msra.mxu0 0.0
    %199 = vmatprep.subr.mxu0 0.0
    %200 = vmatpush1.msra.mxu0 0.0
    %201 = vmatprep.subr.mxu0 0.0
    %202 = vmatpush1.msra.mxu0 0.0
    %203 = vmatprep.subr.mxu0 0.0
    %204 = vmatpush1.msra.mxu0 0.0
    %205 = vmatprep.subr.mxu0 0.0
    %206 = vmatpush1.msra.mxu0 0.0
    %207 = vmatprep.subr.mxu0 0.0
    %208 = vmatpush1.msra.mxu0 0.0
    %209 = vmatprep.subr.mxu0 0.0
    %210 = vmatpush1.msra.mxu0 0.0
    %211 = vmatprep.subr.mxu0 0.0
    %212 = vmatpush1.msra.mxu0 0.0
    %213 = vmatprep.subr.mxu0 0.0
    %214 = vmatpush1.msra.mxu0 0.0
    %215 = vmatprep.subr.mxu0 0.0
    %216 = vmatpush1.msra.mxu0 0.0
    %217 = vmatprep.subr.mxu0 0.0
    %218 = vmatpush1.msra.mxu0 0.0
    %219 = vmatprep.subr.mxu0 0.0
    %220 = vmatpush1.msra.mxu0 0.0
    %221 = vmatprep.subr.mxu0 0.0
    %222 = vmatpush1.msra.mxu0 0.0
    %223 = vmatprep.subr.mxu0 0.0
    %224 = vmatpush1.msra.mxu0 0.0
    %225 = vmatprep.subr.mxu0 0.0
    %226 = vmatpush1.msra.mxu0 0.0
    %227 = vmatprep.subr.mxu0 0.0
    %228 = vmatpush1.msra.mxu0 0.0
    %229 = vmatprep.subr.mxu0 0.0
    %230 = vmatpush1.msra.mxu0 0.0
    %231 = vmatprep.subr.mxu0 0.0
    %232 = vmatpush1.msra.mxu0 0.0
    %233 = vmatprep.subr.mxu0 0.0
    %234 = vmatpush1.msra.mxu0 0.0
    %235 = vmatprep.mubr.f32.mxu0 0.0
    %v236 = vand.u32 %v75, 4294901760
    %237 = vmatmul.mubr.f32.gmra.mrb[0].mxu0 %v236
    %v238 = vpop.f32.mrb[0].mxu0
    %v239 = vadd.f32 %v153, %v238
    %v240 = vpop.f32.mrb[0].mxu0
    %241 = vmatprep.mubr.f32.mxu0 0.0
    %v242 = vand.u32 %v78, 4294901760
    %243 = vmatmul.mubr.f32.gmra.mrb[0].mxu0 %v242
    %v244 = vpop.f32.mrb[0].mxu0
    %v245 = vadd.f32 %v163, %v244
    %v246 = vpop.f32.mrb[0].mxu0
    %247 = vdwg.mxu0
    %248 = vmatprep.subr.mxu0 0.0
    %v249 = vand.u32 %v65, 4294901760
    %v250 = vsub.f32 %v65, %v249
    %251 = vmatpush1.msra.mxu0 %v250
    %252 = vmatprep.subr.mxu0 0.0
    %253 = vmatpush1.msra.mxu0 0.0
    %254 = vmatprep.subr.mxu0 0.0
    %255 = vmatpush1.msra.mxu0 0.0
    %256 = vmatprep.subr.mxu0 0.0
    %257 = vmatpush1.msra.mxu0 0.0
    %258 = vmatprep.subr.mxu0 0.0
    %259 = vmatpush1.msra.mxu0 0.0
    %260 = vmatprep.subr.mxu0 0.0
    %261 = vmatpush1.msra.mxu0 0.0
    %262 = vmatprep.subr.mxu0 0.0
    %263 = vmatpush1.msra.mxu0 0.0
    %264 = vmatprep.subr.mxu0 0.0
    %265 = vmatpush1.msra.mxu0 0.0
    %266 = vmatprep.subr.mxu0 0.0
    %267 = vmatpush1.msra.mxu0 0.0
    %268 = vmatprep.subr.mxu0 0.0
    %269 = vmatpush1.msra.mxu0 0.0
    %270 = vmatprep.subr.mxu0 0.0
    %271 = vmatpush1.msra.mxu0 0.0
    %272 = vmatprep.subr.mxu0 0.0
    %273 = vmatpush1.msra.mxu0 0.0
    %274 = vmatprep.subr.mxu0 0.0
    %275 = vmatpush1.msra.mxu0 0.0
    %276 = vmatprep.subr.mxu0 0.0
    %277 = vmatpush1.msra.mxu0 0.0
    %278 = vmatprep.subr.mxu0 0.0
    %279 = vmatpush1.msra.mxu0 0.0
    %280 = vmatprep.subr.mxu0 0.0
    %281 = vmatpush1.msra.mxu0 0.0
    %282 = vmatprep.subr.mxu0 0.0
    %283 = vmatpush1.msra.mxu0 0.0
    %284 = vmatprep.subr.mxu0 0.0
    %285 = vmatpush1.msra.mxu0 0.0
    %286 = vmatprep.subr.mxu0 0.0
    %287 = vmatpush1.msra.mxu0 0.0
    %288 = vmatprep.subr.mxu0 0.0
    %289 = vmatpush1.msra.mxu0 0.0
    %290 = vmatprep.subr.mxu0 0.0
    %291 = vmatpush1.msra.mxu0 0.0
    %292 = vmatprep.subr.mxu0 0.0
    %293 = vmatpush1.msra.mxu0 0.0
    %294 = vmatprep.subr.mxu0 0.0
    %295 = vmatpush1.msra.mxu0 0.0
    %296 = vmatprep.subr.mxu0 0.0
    %297 = vmatpush1.msra.mxu0 0.0
    %298 = vmatprep.subr.mxu0 0.0
    %299 = vmatpush1.msra.mxu0 0.0
    %300 = vmatprep.subr.mxu0 0.0
    %301 = vmatpush1.msra.mxu0 0.0
    %302 = vmatprep.subr.mxu0 0.0
    %303 = vmatpush1.msra.mxu0 0.0
    %304 = vmatprep.subr.mxu0 0.0
    %305 = vmatpush1.msra.mxu0 0.0
    %306 = vmatprep.subr.mxu0 0.0
    %307 = vmatpush1.msra.mxu0 0.0
    %308 = vmatprep.subr.mxu0 0.0
    %309 = vmatpush1.msra.mxu0 0.0
    %310 = vmatprep.subr.mxu0 0.0
    %311 = vmatpush1.msra.mxu0 0.0
    %312 = vmatprep.subr.mxu0 0.0
    %313 = vmatpush1.msra.mxu0 0.0
    %314 = vmatprep.mubr.f32.mxu0 0.0
    %v315 = vand.u32 %v75, 4294901760
    %v316 = vsub.f32 %v75, %v315
    %317 = vmatmul.mubr.f32.gmra.mrb[0].mxu0 %v316
    %v318 = vpop.f32.mrb[0].mxu0
    %v319 = vadd.f32 %v239, %v318
    %v320 = vpop.f32.mrb[0].mxu0
    %321 = vmatprep.mubr.f32.mxu0 0.0
    %v322 = vand.u32 %v78, 4294901760
    %v323 = vsub.f32 %v78, %v322
    %324 = vmatmul.mubr.f32.gmra.mrb[0].mxu0 %v323
    %v325 = vpop.f32.mrb[0].mxu0
    %v326 = vadd.f32 %v245, %v325
    %v327 = vpop.f32.mrb[0].mxu0
    %328 = vdwg.mxu0
    %329 = vmatprep.subr.mxu0 0.0
    %v330 = vand.u32 %v65, 4294901760
    %331 = vmatpush1.msra.mxu0 %v330
    %332 = vmatprep.subr.mxu0 0.0
    %333 = vmatpush1.msra.mxu0 0.0
    %334 = vmatprep.subr.mxu0 0.0
    %335 = vmatpush1.msra.mxu0 0.0
    %336 = vmatprep.subr.mxu0 0.0
    %337 = vmatpush1.msra.mxu0 0.0
    %338 = vmatprep.subr.mxu0 0.0
    %339 = vmatpush1.msra.mxu0 0.0
    %340 = vmatprep.subr.mxu0 0.0
    %341 = vmatpush1.msra.mxu0 0.0
    %342 = vmatprep.subr.mxu0 0.0
    %343 = vmatpush1.msra.mxu0 0.0
    %344 = vmatprep.subr.mxu0 0.0
    %345 = vmatpush1.msra.mxu0 0.0
    %346 = vmatprep.subr.mxu0 0.0
    %347 = vmatpush1.msra.mxu0 0.0
    %348 = vmatprep.subr.mxu0 0.0
    %349 = vmatpush1.msra.mxu0 0.0
    %350 = vmatprep.subr.mxu0 0.0
    %351 = vmatpush1.msra.mxu0 0.0
    %352 = vmatprep.subr.mxu0 0.0
    %353 = vmatpush1.msra.mxu0 0.0
    %354 = vmatprep.subr.mxu0 0.0
    %355 = vmatpush1.msra.mxu0 0.0
    %356 = vmatprep.subr.mxu0 0.0
    %357 = vmatpush1.msra.mxu0 0.0
    %358 = vmatprep.subr.mxu0 0.0
    %359 = vmatpush1.msra.mxu0 0.0
    %360 = vmatprep.subr.mxu0 0.0
    %361 = vmatpush1.msra.mxu0 0.0
    %362 = vmatprep.subr.mxu0 0.0
    %363 = vmatpush1.msra.mxu0 0.0
    %364 = vmatprep.subr.mxu0 0.0
    %365 = vmatpush1.msra.mxu0 0.0
    %366 = vmatprep.subr.mxu0 0.0
    %367 = vmatpush1.msra.mxu0 0.0
    %368 = vmatprep.subr.mxu0 0.0
    %369 = vmatpush1.msra.mxu0 0.0
    %370 = vmatprep.subr.mxu0 0.0
    %371 = vmatpush1.msra.mxu0 0.0
    %372 = vmatprep.subr.mxu0 0.0
    %373 = vmatpush1.msra.mxu0 0.0
    %374 = vmatprep.subr.mxu0 0.0
    %375 = vmatpush1.msra.mxu0 0.0
    %376 = vmatprep.subr.mxu0 0.0
    %377 = vmatpush1.msra.mxu0 0.0
    %378 = vmatprep.subr.mxu0 0.0
    %379 = vmatpush1.msra.mxu0 0.0
    %380 = vmatprep.subr.mxu0 0.0
    %381 = vmatpush1.msra.mxu0 0.0
    %382 = vmatprep.subr.mxu0 0.0
    %383 = vmatpush1.msra.mxu0 0.0
    %384 = vmatprep.subr.mxu0 0.0
    %385 = vmatpush1.msra.mxu0 0.0
    %386 = vmatprep.subr.mxu0 0.0
    %387 = vmatpush1.msra.mxu0 0.0
    %388 = vmatprep.subr.mxu0 0.0
    %389 = vmatpush1.msra.mxu0 0.0
    %390 = vmatprep.subr.mxu0 0.0
    %391 = vmatpush1.msra.mxu0 0.0
    %392 = vmatprep.subr.mxu0 0.0
    %393 = vmatpush1.msra.mxu0 0.0
    %394 = vmatprep.mubr.f32.mxu0 0.0
    %v395 = vand.u32 %v75, 4294901760
    %v396 = vsub.f32 %v75, %v395
    %v397 = vand.u32 %v396, 4294901760
    %398 = vmatmul.mubr.f32.gmra.mrb[0].mxu0 %v397
    %v399 = vpop.f32.mrb[0].mxu0
    %v400 = vadd.f32 %v319, %v399
    %v401 = vpop.f32.mrb[0].mxu0
    %402 = vmatprep.mubr.f32.mxu0 0.0
    %v403 = vand.u32 %v78, 4294901760
    %v404 = vsub.f32 %v78, %v403
    %v405 = vand.u32 %v404, 4294901760
    %406 = vmatmul.mubr.f32.gmra.mrb[0].mxu0 %v405
    %v407 = vpop.f32.mrb[0].mxu0
    %v408 = vadd.f32 %v326, %v407
    %v409 = vpop.f32.mrb[0].mxu0
    %410 = vdwg.mxu0
    %411 = vmatprep.subr.mxu0 0.0
    %v412 = vand.u32 %v65, 4294901760
    %v413 = vsub.f32 %v65, %v412
    %v414 = vand.u32 %v413, 4294901760
    %415 = vmatpush1.msra.mxu0 %v414
    %416 = vmatprep.subr.mxu0 0.0
    %417 = vmatpush1.msra.mxu0 0.0
    %418 = vmatprep.subr.mxu0 0.0
    %419 = vmatpush1.msra.mxu0 0.0
    %420 = vmatprep.subr.mxu0 0.0
    %421 = vmatpush1.msra.mxu0 0.0
    %422 = vmatprep.subr.mxu0 0.0
    %423 = vmatpush1.msra.mxu0 0.0
    %424 = vmatprep.subr.mxu0 0.0
    %425 = vmatpush1.msra.mxu0 0.0
    %426 = vmatprep.subr.mxu0 0.0
    %427 = vmatpush1.msra.mxu0 0.0
    %428 = vmatprep.subr.mxu0 0.0
    %429 = vmatpush1.msra.mxu0 0.0
    %430 = vmatprep.subr.mxu0 0.0
    %431 = vmatpush1.msra.mxu0 0.0
    %432 = vmatprep.subr.mxu0 0.0
    %433 = vmatpush1.msra.mxu0 0.0
    %434 = vmatprep.subr.mxu0 0.0
    %435 = vmatpush1.msra.mxu0 0.0
    %436 = vmatprep.subr.mxu0 0.0
    %437 = vmatpush1.msra.mxu0 0.0
    %438 = vmatprep.subr.mxu0 0.0
    %439 = vmatpush1.msra.mxu0 0.0
    %440 = vmatprep.subr.mxu0 0.0
    %441 = vmatpush1.msra.mxu0 0.0
    %442 = vmatprep.subr.mxu0 0.0
    %443 = vmatpush1.msra.mxu0 0.0
    %444 = vmatprep.subr.mxu0 0.0
    %445 = vmatpush1.msra.mxu0 0.0
    %446 = vmatprep.subr.mxu0 0.0
    %447 = vmatpush1.msra.mxu0 0.0
    %448 = vmatprep.subr.mxu0 0.0
    %449 = vmatpush1.msra.mxu0 0.0
    %450 = vmatprep.subr.mxu0 0.0
    %451 = vmatpush1.msra.mxu0 0.0
    %452 = vmatprep.subr.mxu0 0.0
    %453 = vmatpush1.msra.mxu0 0.0
    %454 = vmatprep.subr.mxu0 0.0
    %455 = vmatpush1.msra.mxu0 0.0
    %456 = vmatprep.subr.mxu0 0.0
    %457 = vmatpush1.msra.mxu0 0.0
    %458 = vmatprep.subr.mxu0 0.0
    %459 = vmatpush1.msra.mxu0 0.0
    %460 = vmatprep.subr.mxu0 0.0
    %461 = vmatpush1.msra.mxu0 0.0
    %462 = vmatprep.subr.mxu0 0.0
    %463 = vmatpush1.msra.mxu0 0.0
    %464 = vmatprep.subr.mxu0 0.0
    %465 = vmatpush1.msra.mxu0 0.0
    %466 = vmatprep.subr.mxu0 0.0
    %467 = vmatpush1.msra.mxu0 0.0
    %468 = vmatprep.subr.mxu0 0.0
    %469 = vmatpush1.msra.mxu0 0.0
    %470 = vmatprep.subr.mxu0 0.0
    %471 = vmatpush1.msra.mxu0 0.0
    %472 = vmatprep.subr.mxu0 0.0
    %473 = vmatpush1.msra.mxu0 0.0
    %474 = vmatprep.subr.mxu0 0.0
    %475 = vmatpush1.msra.mxu0 0.0
    %476 = vmatprep.subr.mxu0 0.0
    %477 = vmatpush1.msra.mxu0 0.0
    %478 = vmatprep.mubr.f32.mxu0 0.0
    %v479 = vand.u32 %v75, 4294901760
    %480 = vmatmul.mubr.f32.gmra.mrb[0].mxu0 %v479
    %v481 = vpop.f32.mrb[0].mxu0
    %v482 = vadd.f32 %v400, %v481
    %v483 = vpop.f32.mrb[0].mxu0
    %484 = vmatprep.mubr.f32.mxu0 0.0
    %v485 = vand.u32 %v78, 4294901760
    %486 = vmatmul.mubr.f32.gmra.mrb[0].mxu0 %v485
    %v487 = vpop.f32.mrb[0].mxu0
    %v488 = vadd.f32 %v408, %v487
    %v489 = vpop.f32.mrb[0].mxu0
    %490 = vdwg.mxu0
    %491 = vmatprep.subr.mxu0 0.0
    %v492 = vand.u32 %v65, 4294901760
    %493 = vmatpush1.msra.mxu0 %v492
    %494 = vmatprep.subr.mxu0 0.0
    %495 = vmatpush1.msra.mxu0 0.0
    %496 = vmatprep.subr.mxu0 0.0
    %497 = vmatpush1.msra.mxu0 0.0
    %498 = vmatprep.subr.mxu0 0.0
    %499 = vmatpush1.msra.mxu0 0.0
    %500 = vmatprep.subr.mxu0 0.0
    %501 = vmatpush1.msra.mxu0 0.0
    %502 = vmatprep.subr.mxu0 0.0
    %503 = vmatpush1.msra.mxu0 0.0
    %504 = vmatprep.subr.mxu0 0.0
    %505 = vmatpush1.msra.mxu0 0.0
    %506 = vmatprep.subr.mxu0 0.0
    %507 = vmatpush1.msra.mxu0 0.0
    %508 = vmatprep.subr.mxu0 0.0
    %509 = vmatpush1.msra.mxu0 0.0
    %510 = vmatprep.subr.mxu0 0.0
    %511 = vmatpush1.msra.mxu0 0.0
    %512 = vmatprep.subr.mxu0 0.0
    %513 = vmatpush1.msra.mxu0 0.0
    %514 = vmatprep.subr.mxu0 0.0
    %515 = vmatpush1.msra.mxu0 0.0
    %516 = vmatprep.subr.mxu0 0.0
    %517 = vmatpush1.msra.mxu0 0.0
    %518 = vmatprep.subr.mxu0 0.0
    %519 = vmatpush1.msra.mxu0 0.0
    %520 = vmatprep.subr.mxu0 0.0
    %521 = vmatpush1.msra.mxu0 0.0
    %522 = vmatprep.subr.mxu0 0.0
    %523 = vmatpush1.msra.mxu0 0.0
    %524 = vmatprep.subr.mxu0 0.0
    %525 = vmatpush1.msra.mxu0 0.0
    %526 = vmatprep.subr.mxu0 0.0
    %527 = vmatpush1.msra.mxu0 0.0
    %528 = vmatprep.subr.mxu0 0.0
    %529 = vmatpush1.msra.mxu0 0.0
    %530 = vmatprep.subr.mxu0 0.0
    %531 = vmatpush1.msra.mxu0 0.0
    %532 = vmatprep.subr.mxu0 0.0
    %533 = vmatpush1.msra.mxu0 0.0
    %534 = vmatprep.subr.mxu0 0.0
    %535 = vmatpush1.msra.mxu0 0.0
    %536 = vmatprep.subr.mxu0 0.0
    %537 = vmatpush1.msra.mxu0 0.0
    %538 = vmatprep.subr.mxu0 0.0
    %539 = vmatpush1.msra.mxu0 0.0
    %540 = vmatprep.subr.mxu0 0.0
    %541 = vmatpush1.msra.mxu0 0.0
    %542 = vmatprep.subr.mxu0 0.0
    %543 = vmatpush1.msra.mxu0 0.0
    %544 = vmatprep.subr.mxu0 0.0
    %545 = vmatpush1.msra.mxu0 0.0
    %546 = vmatprep.subr.mxu0 0.0
    %547 = vmatpush1.msra.mxu0 0.0
    %548 = vmatprep.subr.mxu0 0.0
    %549 = vmatpush1.msra.mxu0 0.0
    %550 = vmatprep.subr.mxu0 0.0
    %551 = vmatpush1.msra.mxu0 0.0
    %552 = vmatprep.subr.mxu0 0.0
    %553 = vmatpush1.msra.mxu0 0.0
    %554 = vmatprep.subr.mxu0 0.0
    %555 = vmatpush1.msra.mxu0 0.0
    %556 = vmatprep.mubr.f32.mxu0 0.0
    %v557 = vand.u32 %v75, 4294901760
    %558 = vmatmul.mubr.f32.gmra.mrb[0].mxu0 %v557
    %v559 = vpop.f32.mrb[0].mxu0
    %v560 = vadd.f32 %v482, %v559
    %v561 = vpop.f32.mrb[0].mxu0
    %562 = vmatprep.mubr.f32.mxu0 0.0
    %v563 = vand.u32 %v78, 4294901760
    %564 = vmatmul.mubr.f32.gmra.mrb[0].mxu0 %v563
    %v565 = vpop.f32.mrb[0].mxu0
    %v566 = vadd.f32 %v488, %v565
    %v567 = vpop.f32.mrb[0].mxu0
    %568 = vdwg.mxu0
    %v569 = vld [vmem:[%s1] sm:$0xff]
    %v570 = vld [vmem:[%s1 + $0x8] sm:$0xff]
    %v571 = vld [vmem:[%s4] sm:$0xff]
    %v572 = vld [vmem:[%s5] sm:$0x1]
    %v574 = vlaneseq
    %v575 = vshrl.u32 %v574, 7
    %v576 = vsub.s32 0, %v575
    %v577 = vrot.slane %v572, %v576
    %v580 = vsel %vm73, %v569, 0
    %v583 = vsel %vm73, %v570, 0
    %585 = vmatprep.subr.mxu0 0.0
    %v586 = vand.u32 %v571, 4294901760
    %587 = vmatpush1.msra.mxu0 %v586
    %588 = vmatprep.subr.mxu0 0.0
    %589 = vmatpush1.msra.mxu0 0.0
    %590 = vmatprep.subr.mxu0 0.0
    %591 = vmatpush1.msra.mxu0 0.0
    %592 = vmatprep.subr.mxu0 0.0
    %593 = vmatpush1.msra.mxu0 0.0
    %594 = vmatprep.subr.mxu0 0.0
    %595 = vmatpush1.msra.mxu0 0.0
    %596 = vmatprep.subr.mxu0 0.0
    %597 = vmatpush1.msra.mxu0 0.0
    %598 = vmatprep.subr.mxu0 0.0
    %599 = vmatpush1.msra.mxu0 0.0
    %600 = vmatprep.subr.mxu0 0.0
    %601 = vmatpush1.msra.mxu0 0.0
    %602 = vmatprep.subr.mxu0 0.0
    %603 = vmatpush1.msra.mxu0 0.0
    %604 = vmatprep.subr.mxu0 0.0
    %605 = vmatpush1.msra.mxu0 0.0
    %606 = vmatprep.subr.mxu0 0.0
    %607 = vmatpush1.msra.mxu0 0.0
    %608 = vmatprep.subr.mxu0 0.0
    %609 = vmatpush1.msra.mxu0 0.0
    %610 = vmatprep.subr.mxu0 0.0
    %611 = vmatpush1.msra.mxu0 0.0
    %612 = vmatprep.subr.mxu0 0.0
    %613 = vmatpush1.msra.mxu0 0.0
    %614 = vmatprep.subr.mxu0 0.0
    %615 = vmatpush1.msra.mxu0 0.0
    %616 = vmatprep.subr.mxu0 0.0
    %617 = vmatpush1.msra.mxu0 0.0
    %618 = vmatprep.subr.mxu0 0.0
    %619 = vmatpush1.msra.mxu0 0.0
    %620 = vmatprep.subr.mxu0 0.0
    %621 = vmatpush1.msra.mxu0 0.0
    %622 = vmatprep.subr.mxu0 0.0
    %623 = vmatpush1.msra.mxu0 0.0
    %624 = vmatprep.subr.mxu0 0.0
    %625 = vmatpush1.msra.mxu0 0.0
    %626 = vmatprep.subr.mxu0 0.0
    %627 = vmatpush1.msra.mxu0 0.0
    %628 = vmatprep.subr.mxu0 0.0
    %629 = vmatpush1.msra.mxu0 0.0
    %630 = vmatprep.subr.mxu0 0.0
    %631 = vmatpush1.msra.mxu0 0.0
    %632 = vmatprep.subr.mxu0 0.0
    %633 = vmatpush1.msra.mxu0 0.0
    %634 = vmatprep.subr.mxu0 0.0
    %635 = vmatpush1.msra.mxu0 0.0
    %636 = vmatprep.subr.mxu0 0.0
    %637 = vmatpush1.msra.mxu0 0.0
    %638 = vmatprep.subr.mxu0 0.0
    %639 = vmatpush1.msra.mxu0 0.0
    %640 = vmatprep.subr.mxu0 0.0
    %641 = vmatpush1.msra.mxu0 0.0
    %642 = vmatprep.subr.mxu0 0.0
    %643 = vmatpush1.msra.mxu0 0.0
    %644 = vmatprep.subr.mxu0 0.0
    %645 = vmatpush1.msra.mxu0 0.0
    %646 = vmatprep.subr.mxu0 0.0
    %647 = vmatpush1.msra.mxu0 0.0
    %648 = vmatprep.subr.mxu0 0.0
    %649 = vmatpush1.msra.mxu0 0.0
    %650 = vmatprep.mubr.f32.mxu0 0.0
    %v651 = vand.u32 %v580, 4294901760
    %v652 = vsub.f32 %v580, %v651
    %v653 = vand.u32 %v652, 4294901760
    %v654 = vsub.f32 %v652, %v653
    %v655 = vand.u32 %v654, 4294901760
    %656 = vmatmul.mubr.f32.gmra.mrb[0].mxu0 %v655
    %v657 = vpop.f32.mrb[0].mxu0
    %v658 = vadd.f32 %v577, %v657
    %v659 = vpop.f32.mrb[0].mxu0
    %660 = vmatprep.mubr.f32.mxu0 0.0
    %v661 = vand.u32 %v583, 4294901760
    %v662 = vsub.f32 %v583, %v661
    %v663 = vand.u32 %v662, 4294901760
    %v664 = vsub.f32 %v662, %v663
    %v665 = vand.u32 %v664, 4294901760
    %666 = vmatmul.mubr.f32.gmra.mrb[0].mxu0 %v665
    %v667 = vpop.f32.mrb[0].mxu0
    %v668 = vadd.f32 %v577, %v667
    %v669 = vpop.f32.mrb[0].mxu0
    %670 = vdwg.mxu0
    %671 = vmatprep.subr.mxu0 0.0
    %v672 = vand.u32 %v571, 4294901760
    %v673 = vsub.f32 %v571, %v672
    %v674 = vand.u32 %v673, 4294901760
    %v675 = vsub.f32 %v673, %v674
    %v676 = vand.u32 %v675, 4294901760
    %677 = vmatpush1.msra.mxu0 %v676
    %678 = vmatprep.subr.mxu0 0.0
    %679 = vmatpush1.msra.mxu0 0.0
    %680 = vmatprep.subr.mxu0 0.0
    %681 = vmatpush1.msra.mxu0 0.0
    %682 = vmatprep.subr.mxu0 0.0
    %683 = vmatpush1.msra.mxu0 0.0
    %684 = vmatprep.subr.mxu0 0.0
    %685 = vmatpush1.msra.mxu0 0.0
    %686 = vmatprep.subr.mxu0 0.0
    %687 = vmatpush1.msra.mxu0 0.0
    %688 = vmatprep.subr.mxu0 0.0
    %689 = vmatpush1.msra.mxu0 0.0
    %690 = vmatprep.subr.mxu0 0.0
    %691 = vmatpush1.msra.mxu0 0.0
    %692 = vmatprep.subr.mxu0 0.0
    %693 = vmatpush1.msra.mxu0 0.0
    %694 = vmatprep.subr.mxu0 0.0
    %695 = vmatpush1.msra.mxu0 0.0
    %696 = vmatprep.subr.mxu0 0.0
    %697 = vmatpush1.msra.mxu0 0.0
    %698 = vmatprep.subr.mxu0 0.0
    %699 = vmatpush1.msra.mxu0 0.0
    %700 = vmatprep.subr.mxu0 0.0
    %701 = vmatpush1.msra.mxu0 0.0
    %702 = vmatprep.subr.mxu0 0.0
    %703 = vmatpush1.msra.mxu0 0.0
    %704 = vmatprep.subr.mxu0 0.0
    %705 = vmatpush1.msra.mxu0 0.0
    %706 = vmatprep.subr.mxu0 0.0
    %707 = vmatpush1.msra.mxu0 0.0
    %708 = vmatprep.subr.mxu0 0.0
    %709 = vmatpush1.msra.mxu0 0.0
    %710 = vmatprep.subr.mxu0 0.0
    %711 = vmatpush1.msra.mxu0 0.0
    %712 = vmatprep.subr.mxu0 0.0
    %713 = vmatpush1.msra.mxu0 0.0
    %714 = vmatprep.subr.mxu0 0.0
    %715 = vmatpush1.msra.mxu0 0.0
    %716 = vmatprep.subr.mxu0 0.0
    %717 = vmatpush1.msra.mxu0 0.0
    %718 = vmatprep.subr.mxu0 0.0
    %719 = vmatpush1.msra.mxu0 0.0
    %720 = vmatprep.subr.mxu0 0.0
    %721 = vmatpush1.msra.mxu0 0.0
    %722 = vmatprep.subr.mxu0 0.0
    %723 = vmatpush1.msra.mxu0 0.0
    %724 = vmatprep.subr.mxu0 0.0
    %725 = vmatpush1.msra.mxu0 0.0
    %726 = vmatprep.subr.mxu0 0.0
    %727 = vmatpush1.msra.mxu0 0.0
    %728 = vmatprep.subr.mxu0 0.0
    %729 = vmatpush1.msra.mxu0 0.0
    %730 = vmatprep.subr.mxu0 0.0
    %731 = vmatpush1.msra.mxu0 0.0
    %732 = vmatprep.subr.mxu0 0.0
    %733 = vmatpush1.msra.mxu0 0.0
    %734 = vmatprep.subr.mxu0 0.0
    %735 = vmatpush1.msra.mxu0 0.0
    %736 = vmatprep.subr.mxu0 0.0
    %737 = vmatpush1.msra.mxu0 0.0
    %738 = vmatprep.subr.mxu0 0.0
    %739 = vmatpush1.msra.mxu0 0.0
    %740 = vmatprep.mubr.f32.mxu0 0.0
    %v741 = vand.u32 %v580, 4294901760
    %742 = vmatmul.mubr.f32.gmra.mrb[0].mxu0 %v741
    %v743 = vpop.f32.mrb[0].mxu0
    %v744 = vadd.f32 %v658, %v743
    %v745 = vpop.f32.mrb[0].mxu0
    %746 = vmatprep.mubr.f32.mxu0 0.0
    %v747 = vand.u32 %v583, 4294901760
    %748 = vmatmul.mubr.f32.gmra.mrb[0].mxu0 %v747
    %v749 = vpop.f32.mrb[0].mxu0
    %v750 = vadd.f32 %v668, %v749
    %v751 = vpop.f32.mrb[0].mxu0
    %752 = vdwg.mxu0
    %753 = vmatprep.subr.mxu0 0.0
    %v754 = vand.u32 %v571, 4294901760
    %v755 = vsub.f32 %v571, %v754
    %756 = vmatpush1.msra.mxu0 %v755
    %757 = vmatprep.subr.mxu0 0.0
    %758 = vmatpush1.msra.mxu0 0.0
    %759 = vmatprep.subr.mxu0 0.0
    %760 = vmatpush1.msra.mxu0 0.0
    %761 = vmatprep.subr.mxu0 0.0
    %762 = vmatpush1.msra.mxu0 0.0
    %763 = vmatprep.subr.mxu0 0.0
    %764 = vmatpush1.msra.mxu0 0.0
    %765 = vmatprep.subr.mxu0 0.0
    %766 = vmatpush1.msra.mxu0 0.0
    %767 = vmatprep.subr.mxu0 0.0
    %768 = vmatpush1.msra.mxu0 0.0
    %769 = vmatprep.subr.mxu0 0.0
    %770 = vmatpush1.msra.mxu0 0.0
    %771 = vmatprep.subr.mxu0 0.0
    %772 = vmatpush1.msra.mxu0 0.0
    %773 = vmatprep.subr.mxu0 0.0
    %774 = vmatpush1.msra.mxu0 0.0
    %775 = vmatprep.subr.mxu0 0.0
    %776 = vmatpush1.msra.mxu0 0.0
    %777 = vmatprep.subr.mxu0 0.0
    %778 = vmatpush1.msra.mxu0 0.0
    %779 = vmatprep.subr.mxu0 0.0
    %780 = vmatpush1.msra.mxu0 0.0
    %781 = vmatprep.subr.mxu0 0.0
    %782 = vmatpush1.msra.mxu0 0.0
    %783 = vmatprep.subr.mxu0 0.0
    %784 = vmatpush1.msra.mxu0 0.0
    %785 = vmatprep.subr.mxu0 0.0
    %786 = vmatpush1.msra.mxu0 0.0
    %787 = vmatprep.subr.mxu0 0.0
    %788 = vmatpush1.msra.mxu0 0.0
    %789 = vmatprep.subr.mxu0 0.0
    %790 = vmatpush1.msra.mxu0 0.0
    %791 = vmatprep.subr.mxu0 0.0
    %792 = vmatpush1.msra.mxu0 0.0
    %793 = vmatprep.subr.mxu0 0.0
    %794 = vmatpush1.msra.mxu0 0.0
    %795 = vmatprep.subr.mxu0 0.0
    %796 = vmatpush1.msra.mxu0 0.0
    %797 = vmatprep.subr.mxu0 0.0
    %798 = vmatpush1.msra.mxu0 0.0
    %799 = vmatprep.subr.mxu0 0.0
    %800 = vmatpush1.msra.mxu0 0.0
    %801 = vmatprep.subr.mxu0 0.0
    %802 = vmatpush1.msra.mxu0 0.0
    %803 = vmatprep.subr.mxu0 0.0
    %804 = vmatpush1.msra.mxu0 0.0
    %805 = vmatprep.subr.mxu0 0.0
    %806 = vmatpush1.msra.mxu0 0.0
    %807 = vmatprep.subr.mxu0 0.0
    %808 = vmatpush1.msra.mxu0 0.0
    %809 = vmatprep.subr.mxu0 0.0
    %810 = vmatpush1.msra.mxu0 0.0
    %811 = vmatprep.subr.mxu0 0.0
    %812 = vmatpush1.msra.mxu0 0.0
    %813 = vmatprep.subr.mxu0 0.0
    %814 = vmatpush1.msra.mxu0 0.0
    %815 = vmatprep.subr.mxu0 0.0
    %816 = vmatpush1.msra.mxu0 0.0
    %817 = vmatprep.subr.mxu0 0.0
    %818 = vmatpush1.msra.mxu0 0.0
    %819 = vmatprep.mubr.f32.mxu0 0.0
    %v820 = vand.u32 %v580, 4294901760
    %v821 = vsub.f32 %v580, %v820
    %822 = vmatmul.mubr.f32.gmra.mrb[0].mxu0 %v821
    %v823 = vpop.f32.mrb[0].mxu0
    %v824 = vadd.f32 %v744, %v823
    %v825 = vpop.f32.mrb[0].mxu0
    %826 = vmatprep.mubr.f32.mxu0 0.0
    %v827 = vand.u32 %v583, 4294901760
    %v828 = vsub.f32 %v583, %v827
    %829 = vmatmul.mubr.f32.gmra.mrb[0].mxu0 %v828
    %v830 = vpop.f32.mrb[0].mxu0
    %v831 = vadd.f32 %v750, %v830
    %v832 = vpop.f32.mrb[0].mxu0
    %833 = vdwg.mxu0
    %834 = vmatprep.subr.mxu0 0.0
    %v835 = vand.u32 %v571, 4294901760
    %836 = vmatpush1.msra.mxu0 %v835
    %837 = vmatprep.subr.mxu0 0.0
    %838 = vmatpush1.msra.mxu0 0.0
    %839 = vmatprep.subr.mxu0 0.0
    %840 = vmatpush1.msra.mxu0 0.0
    %841 = vmatprep.subr.mxu0 0.0
    %842 = vmatpush1.msra.mxu0 0.0
    %843 = vmatprep.subr.mxu0 0.0
    %844 = vmatpush1.msra.mxu0 0.0
    %845 = vmatprep.subr.mxu0 0.0
    %846 = vmatpush1.msra.mxu0 0.0
    %847 = vmatprep.subr.mxu0 0.0
    %848 = vmatpush1.msra.mxu0 0.0
    %849 = vmatprep.subr.mxu0 0.0
    %850 = vmatpush1.msra.mxu0 0.0
    %851 = vmatprep.subr.mxu0 0.0
    %852 = vmatpush1.msra.mxu0 0.0
    %853 = vmatprep.subr.mxu0 0.0
    %854 = vmatpush1.msra.mxu0 0.0
    %855 = vmatprep.subr.mxu0 0.0
    %856 = vmatpush1.msra.mxu0 0.0
    %857 = vmatprep.subr.mxu0 0.0
    %858 = vmatpush1.msra.mxu0 0.0
    %859 = vmatprep.subr.mxu0 0.0
    %860 = vmatpush1.msra.mxu0 0.0
    %861 = vmatprep.subr.mxu0 0.0
    %862 = vmatpush1.msra.mxu0 0.0
    %863 = vmatprep.subr.mxu0 0.0
    %864 = vmatpush1.msra.mxu0 0.0
    %865 = vmatprep.subr.mxu0 0.0
    %866 = vmatpush1.msra.mxu0 0.0
    %867 = vmatprep.subr.mxu0 0.0
    %868 = vmatpush1.msra.mxu0 0.0
    %869 = vmatprep.subr.mxu0 0.0
    %870 = vmatpush1.msra.mxu0 0.0
    %871 = vmatprep.subr.mxu0 0.0
    %872 = vmatpush1.msra.mxu0 0.0
    %873 = vmatprep.subr.mxu0 0.0
    %874 = vmatpush1.msra.mxu0 0.0
    %875 = vmatprep.subr.mxu0 0.0
    %876 = vmatpush1.msra.mxu0 0.0
    %877 = vmatprep.subr.mxu0 0.0
    %878 = vmatpush1.msra.mxu0 0.0
    %879 = vmatprep.subr.mxu0 0.0
    %880 = vmatpush1.msra.mxu0 0.0
    %881 = vmatprep.subr.mxu0 0.0
    %882 = vmatpush1.msra.mxu0 0.0
    %883 = vmatprep.subr.mxu0 0.0
    %884 = vmatpush1.msra.mxu0 0.0
    %885 = vmatprep.subr.mxu0 0.0
    %886 = vmatpush1.msra.mxu0 0.0
    %887 = vmatprep.subr.mxu0 0.0
    %888 = vmatpush1.msra.mxu0 0.0
    %889 = vmatprep.subr.mxu0 0.0
    %890 = vmatpush1.msra.mxu0 0.0
    %891 = vmatprep.subr.mxu0 0.0
    %892 = vmatpush1.msra.mxu0 0.0
    %893 = vmatprep.subr.mxu0 0.0
    %894 = vmatpush1.msra.mxu0 0.0
    %895 = vmatprep.subr.mxu0 0.0
    %896 = vmatpush1.msra.mxu0 0.0
    %897 = vmatprep.subr.mxu0 0.0
    %898 = vmatpush1.msra.mxu0 0.0
    %899 = vmatprep.mubr.f32.mxu0 0.0
    %v900 = vand.u32 %v580, 4294901760
    %v901 = vsub.f32 %v580, %v900
    %v902 = vand.u32 %v901, 4294901760
    %903 = vmatmul.mubr.f32.gmra.mrb[0].mxu0 %v902
    %v904 = vpop.f32.mrb[0].mxu0
    %v905 = vadd.f32 %v824, %v904
    %v906 = vpop.f32.mrb[0].mxu0
    %907 = vmatprep.mubr.f32.mxu0 0.0
    %v908 = vand.u32 %v583, 4294901760
    %v909 = vsub.f32 %v583, %v908
    %v910 = vand.u32 %v909, 4294901760
    %911 = vmatmul.mubr.f32.gmra.mrb[0].mxu0 %v910
    %v912 = vpop.f32.mrb[0].mxu0
    %v913 = vadd.f32 %v831, %v912
    %v914 = vpop.f32.mrb[0].mxu0
    %915 = vdwg.mxu0
    %916 = vmatprep.subr.mxu0 0.0
    %v917 = vand.u32 %v571, 4294901760
    %v918 = vsub.f32 %v571, %v917
    %v919 = vand.u32 %v918, 4294901760
    %920 = vmatpush1.msra.mxu0 %v919
    %921 = vmatprep.subr.mxu0 0.0
    %922 = vmatpush1.msra.mxu0 0.0
    %923 = vmatprep.subr.mxu0 0.0
    %924 = vmatpush1.msra.mxu0 0.0
    %925 = vmatprep.subr.mxu0 0.0
    %926 = vmatpush1.msra.mxu0 0.0
    %927 = vmatprep.subr.mxu0 0.0
    %928 = vmatpush1.msra.mxu0 0.0
    %929 = vmatprep.subr.mxu0 0.0
    %930 = vmatpush1.msra.mxu0 0.0
    %931 = vmatprep.subr.mxu0 0.0
    %932 = vmatpush1.msra.mxu0 0.0
    %933 = vmatprep.subr.mxu0 0.0
    %934 = vmatpush1.msra.mxu0 0.0
    %935 = vmatprep.subr.mxu0 0.0
    %936 = vmatpush1.msra.mxu0 0.0
    %937 = vmatprep.subr.mxu0 0.0
    %938 = vmatpush1.msra.mxu0 0.0
    %939 = vmatprep.subr.mxu0 0.0
    %940 = vmatpush1.msra.mxu0 0.0
    %941 = vmatprep.subr.mxu0 0.0
    %942 = vmatpush1.msra.mxu0 0.0
    %943 = vmatprep.subr.mxu0 0.0
    %944 = vmatpush1.msra.mxu0 0.0
    %945 = vmatprep.subr.mxu0 0.0
    %946 = vmatpush1.msra.mxu0 0.0
    %947 = vmatprep.subr.mxu0 0.0
    %948 = vmatpush1.msra.mxu0 0.0
    %949 = vmatprep.subr.mxu0 0.0
    %950 = vmatpush1.msra.mxu0 0.0
    %951 = vmatprep.subr.mxu0 0.0
    %952 = vmatpush1.msra.mxu0 0.0
    %953 = vmatprep.subr.mxu0 0.0
    %954 = vmatpush1.msra.mxu0 0.0
    %955 = vmatprep.subr.mxu0 0.0
    %956 = vmatpush1.msra.mxu0 0.0
    %957 = vmatprep.subr.mxu0 0.0
    %958 = vmatpush1.msra.mxu0 0.0
    %959 = vmatprep.subr.mxu0 0.0
    %960 = vmatpush1.msra.mxu0 0.0
    %961 = vmatprep.subr.mxu0 0.0
    %962 = vmatpush1.msra.mxu0 0.0
    %963 = vmatprep.subr.mxu0 0.0
    %964 = vmatpush1.msra.mxu0 0.0
    %965 = vmatprep.subr.mxu0 0.0
    %966 = vmatpush1.msra.mxu0 0.0
    %967 = vmatprep.subr.mxu0 0.0
    %968 = vmatpush1.msra.mxu0 0.0
    %969 = vmatprep.subr.mxu0 0.0
    %970 = vmatpush1.msra.mxu0 0.0
    %971 = vmatprep.subr.mxu0 0.0
    %972 = vmatpush1.msra.mxu0 0.0
    %973 = vmatprep.subr.mxu0 0.0
    %974 = vmatpush1.msra.mxu0 0.0
    %975 = vmatprep.subr.mxu0 0.0
    %976 = vmatpush1.msra.mxu0 0.0
    %977 = vmatprep.subr.mxu0 0.0
    %978 = vmatpush1.msra.mxu0 0.0
    %979 = vmatprep.subr.mxu0 0.0
    %980 = vmatpush1.msra.mxu0 0.0
    %981 = vmatprep.subr.mxu0 0.0
    %982 = vmatpush1.msra.mxu0 0.0
    %983 = vmatprep.mubr.f32.mxu0 0.0
    %v984 = vand.u32 %v580, 4294901760
    %985 = vmatmul.mubr.f32.gmra.mrb[0].mxu0 %v984
    %v986 = vpop.f32.mrb[0].mxu0
    %v987 = vadd.f32 %v905, %v986
    %v988 = vpop.f32.mrb[0].mxu0
    %989 = vmatprep.mubr.f32.mxu0 0.0
    %v990 = vand.u32 %v583, 4294901760
    %991 = vmatmul.mubr.f32.gmra.mrb[0].mxu0 %v990
    %v992 = vpop.f32.mrb[0].mxu0
    %v993 = vadd.f32 %v913, %v992
    %v994 = vpop.f32.mrb[0].mxu0
    %995 = vdwg.mxu0
    %996 = vmatprep.subr.mxu0 0.0
    %v997 = vand.u32 %v571, 4294901760
    %998 = vmatpush1.msra.mxu0 %v997
    %999 = vmatprep.subr.mxu0 0.0
    %1000 = vmatpush1.msra.mxu0 0.0
    %1001 = vmatprep.subr.mxu0 0.0
    %1002 = vmatpush1.msra.mxu0 0.0
    %1003 = vmatprep.subr.mxu0 0.0
    %1004 = vmatpush1.msra.mxu0 0.0
    %1005 = vmatprep.subr.mxu0 0.0
    %1006 = vmatpush1.msra.mxu0 0.0
    %1007 = vmatprep.subr.mxu0 0.0
    %1008 = vmatpush1.msra.mxu0 0.0
    %1009 = vmatprep.subr.mxu0 0.0
    %1010 = vmatpush1.msra.mxu0 0.0
    %1011 = vmatprep.subr.mxu0 0.0
    %1012 = vmatpush1.msra.mxu0 0.0
    %1013 = vmatprep.subr.mxu0 0.0
    %1014 = vmatpush1.msra.mxu0 0.0
    %1015 = vmatprep.subr.mxu0 0.0
    %1016 = vmatpush1.msra.mxu0 0.0
    %1017 = vmatprep.subr.mxu0 0.0
    %1018 = vmatpush1.msra.mxu0 0.0
    %1019 = vmatprep.subr.mxu0 0.0
    %1020 = vmatpush1.msra.mxu0 0.0
    %1021 = vmatprep.subr.mxu0 0.0
    %1022 = vmatpush1.msra.mxu0 0.0
    %1023 = vmatprep.subr.mxu0 0.0
    %1024 = vmatpush1.msra.mxu0 0.0
    %1025 = vmatprep.subr.mxu0 0.0
    %1026 = vmatpush1.msra.mxu0 0.0
    %1027 = vmatprep.subr.mxu0 0.0
    %1028 = vmatpush1.msra.mxu0 0.0
    %1029 = vmatprep.subr.mxu0 0.0
    %1030 = vmatpush1.msra.mxu0 0.0
    %1031 = vmatprep.subr.mxu0 0.0
    %1032 = vmatpush1.msra.mxu0 0.0
    %1033 = vmatprep.subr.mxu0 0.0
    %1034 = vmatpush1.msra.mxu0 0.0
    %1035 = vmatprep.subr.mxu0 0.0
    %1036 = vmatpush1.msra.mxu0 0.0
    %1037 = vmatprep.subr.mxu0 0.0
    %1038 = vmatpush1.msra.mxu0 0.0
    %1039 = vmatprep.subr.mxu0 0.0
    %1040 = vmatpush1.msra.mxu0 0.0
    %1041 = vmatprep.subr.mxu0 0.0
    %1042 = vmatpush1.msra.mxu0 0.0
    %1043 = vmatprep.subr.mxu0 0.0
    %1044 = vmatpush1.msra.mxu0 0.0
    %1045 = vmatprep.subr.mxu0 0.0
    %1046 = vmatpush1.msra.mxu0 0.0
    %1047 = vmatprep.subr.mxu0 0.0
    %1048 = vmatpush1.msra.mxu0 0.0
    %1049 = vmatprep.subr.mxu0 0.0
    %1050 = vmatpush1.msra.mxu0 0.0
    %1051 = vmatprep.subr.mxu0 0.0
    %1052 = vmatpush1.msra.mxu0 0.0
    %1053 = vmatprep.subr.mxu0 0.0
    %1054 = vmatpush1.msra.mxu0 0.0
    %1055 = vmatprep.subr.mxu0 0.0
    %1056 = vmatpush1.msra.mxu0 0.0
    %1057 = vmatprep.subr.mxu0 0.0
    %1058 = vmatpush1.msra.mxu0 0.0
    %1059 = vmatprep.subr.mxu0 0.0
    %1060 = vmatpush1.msra.mxu0 0.0
    %1061 = vmatprep.mubr.f32.mxu0 0.0
    %v1062 = vand.u32 %v580, 4294901760
    %1063 = vmatmul.mubr.f32.gmra.mrb[0].mxu0 %v1062
    %v1064 = vpop.f32.mrb[0].mxu0
    %v1065 = vadd.f32 %v987, %v1064
    %v1066 = vpop.f32.mrb[0].mxu0
    %1067 = vmatprep.mubr.f32.mxu0 0.0
    %v1068 = vand.u32 %v583, 4294901760
    %1069 = vmatmul.mubr.f32.gmra.mrb[0].mxu0 %v1068
    %v1070 = vpop.f32.mrb[0].mxu0
    %v1071 = vadd.f32 %v993, %v1070
    %v1072 = vpop.f32.mrb[0].mxu0
    %1073 = vdwg.mxu0
    %1074 = vxpose.xlu0.b32.start [1/16] %v1065, 128
    %1075 = vxpose.xlu0.b32.cont [2/16] %v1071, 128
    %1076 = vxpose.xlu0.b32.cont [3/16] 0.0, 128
    %1077 = vxpose.xlu0.b32.cont [4/16] 0.0, 128
    %1078 = vxpose.xlu0.b32.cont [5/16] 0.0, 128
    %1079 = vxpose.xlu0.b32.cont [6/16] 0.0, 128
    %1080 = vxpose.xlu0.b32.cont [7/16] 0.0, 128
    %1081 = vxpose.xlu0.b32.cont [8/16] 0.0, 128
    %1082 = vxpose.xlu0.b32.cont [9/16] 0.0, 128
    %1083 = vxpose.xlu0.b32.cont [10/16] 0.0, 128
    %1084 = vxpose.xlu0.b32.cont [11/16] 0.0, 128
    %1085 = vxpose.xlu0.b32.cont [12/16] 0.0, 128
    %1086 = vxpose.xlu0.b32.cont [13/16] 0.0, 128
    %1087 = vxpose.xlu0.b32.cont [14/16] 0.0, 128
    %1088 = vxpose.xlu0.b32.cont [15/16] 0.0, 128
    %1089 = vxpose.xlu0.b32.end [16/16] 0.0, 128
    %v1090 = vpop.trf.xlu0
    %v1091 = vpop.trf.xlu0
    %v1092 = vpop.trf.xlu0
    %v1093 = vpop.trf.xlu0
    %v1094 = vpop.trf.xlu0
    %v1095 = vpop.trf.xlu0
    %v1096 = vpop.trf.xlu0
    %v1097 = vpop.trf.xlu0
    %v1098 = vpop.trf.xlu0
    %v1099 = vpop.trf.xlu0
    %v1100 = vpop.trf.xlu0
    %v1101 = vpop.trf.xlu0
    %v1102 = vpop.trf.xlu0
    %v1103 = vpop.trf.xlu0
    %v1104 = vpop.trf.xlu0
    %v1105 = vpop.trf.xlu0
    %v1106 = vld [vmem:[%s2] sm:$0xff]
    %v1107 = vld [vmem:[%s2 + $0x8] sm:$0xff]
    %v1108 = vld [vmem:[%s3] sm:$0x1]
    %1109 = vset.pattern.permute.xlu0 0
    %1110 = vperm.xlu0 %1109, %v1106
    %v1111 = vpop.permute.xlu0 %1110
    %1112 = vset.pattern.permute.xlu0 0
    %1113 = vperm.xlu0 %1112, %v1107
    %v1114 = vpop.permute.xlu0 %1113
    %v1115 = vlaneseq
    %v1116 = vshrl.u32 %v1115, 7
    %v1117 = vsub.s32 0, %v1116
    %v1118 = vrot.slane %v1108, %v1117
    %vm1119 = vcmp.eq.s32.totalorder %v1111, %v1118
    %vm1120 = vcmp.eq.s32.totalorder %v1114, %v1118
    %v1121 = vld [vmem:[%s8] sm:$0x3]
    %vm1122 = vcmask 130048
    %v1124 = vsel %vm1122, %v560, 0
    %v1127 = vsel %vm1122, %v566, 0
    %v1130 = vsel %vm1122, %v1121, 0
    %1132 = vmatprep.subr.mxu0 0.0
    %v1133 = vand.u32 %v1130, 4294901760
    %1134 = vmatpush1.xpose.msra.mxu0 %v1133
    %1135 = vmatprep.subr.mxu0 0.0
    %1136 = vmatpush1.xpose.msra.mxu0 0.0
    %1137 = vmatprep.subr.mxu0 0.0
    %1138 = vmatpush1.xpose.msra.mxu0 0.0
    %1139 = vmatprep.subr.mxu0 0.0
    %1140 = vmatpush1.xpose.msra.mxu0 0.0
    %1141 = vmatprep.subr.mxu0 0.0
    %1142 = vmatpush1.xpose.msra.mxu0 0.0
    %1143 = vmatprep.subr.mxu0 0.0
    %1144 = vmatpush1.xpose.msra.mxu0 0.0
    %1145 = vmatprep.subr.mxu0 0.0
    %1146 = vmatpush1.xpose.msra.mxu0 0.0
    %1147 = vmatprep.subr.mxu0 0.0
    %1148 = vmatpush1.xpose.msra.mxu0 0.0
    %1149 = vmatprep.subr.mxu0 0.0
    %1150 = vmatpush1.xpose.msra.mxu0 0.0
    %1151 = vmatprep.subr.mxu0 0.0
    %1152 = vmatpush1.xpose.msra.mxu0 0.0
    %1153 = vmatprep.subr.mxu0 0.0
    %1154 = vmatpush1.xpose.msra.mxu0 0.0
    %1155 = vmatprep.subr.mxu0 0.0
    %1156 = vmatpush1.xpose.msra.mxu0 0.0
    %1157 = vmatprep.subr.mxu0 0.0
    %1158 = vmatpush1.xpose.msra.mxu0 0.0
    %1159 = vmatprep.subr.mxu0 0.0
    %1160 = vmatpush1.xpose.msra.mxu0 0.0
    %1161 = vmatprep.subr.mxu0 0.0
    %1162 = vmatpush1.xpose.msra.mxu0 0.0
    %1163 = vmatprep.subr.mxu0 0.0
    %1164 = vmatpush1.xpose.msra.mxu0 0.0
    %1165 = vmatprep.subr.mxu0 0.0
    %1166 = vmatpush1.xpose.msra.mxu0 0.0
    %1167 = vmatprep.subr.mxu0 0.0
    %1168 = vmatpush1.xpose.msra.mxu0 0.0
    %1169 = vmatprep.subr.mxu0 0.0
    %1170 = vmatpush1.xpose.msra.mxu0 0.0
    %1171 = vmatprep.subr.mxu0 0.0
    %1172 = vmatpush1.xpose.msra.mxu0 0.0
    %1173 = vmatprep.subr.mxu0 0.0
    %1174 = vmatpush1.xpose.msra.mxu0 0.0
    %1175 = vmatprep.subr.mxu0 0.0
    %1176 = vmatpush1.xpose.msra.mxu0 0.0
    %1177 = vmatprep.subr.mxu0 0.0
    %1178 = vmatpush1.xpose.msra.mxu0 0.0
    %1179 = vmatprep.subr.mxu0 0.0
    %1180 = vmatpush1.xpose.msra.mxu0 0.0
    %1181 = vmatprep.subr.mxu0 0.0
    %1182 = vmatpush1.xpose.msra.mxu0 0.0
    %1183 = vmatprep.subr.mxu0 0.0
    %1184 = vmatpush1.xpose.msra.mxu0 0.0
    %1185 = vmatprep.subr.mxu0 0.0
    %1186 = vmatpush1.xpose.msra.mxu0 0.0
    %1187 = vmatprep.subr.mxu0 0.0
    %1188 = vmatpush1.xpose.msra.mxu0 0.0
    %1189 = vmatprep.subr.mxu0 0.0
    %1190 = vmatpush1.xpose.msra.mxu0 0.0
    %1191 = vmatprep.subr.mxu0 0.0
    %1192 = vmatpush1.xpose.msra.mxu0 0.0
    %1193 = vmatprep.subr.mxu0 0.0
    %1194 = vmatpush1.xpose.msra.mxu0 0.0
    %1195 = vmatprep.subr.mxu0 0.0
    %1196 = vmatpush1.xpose.msra.mxu0 0.0
    %1197 = vmatprep.mubr.f32.mxu0 0.0
    %v1198 = vand.u32 %v1124, 4294901760
    %v1199 = vsub.f32 %v1124, %v1198
    %v1200 = vand.u32 %v1199, 4294901760
    %v1201 = vsub.f32 %v1199, %v1200
    %v1202 = vand.u32 %v1201, 4294901760
    %1203 = vmatmul.mubr.f32.gmra.mrb[0].mxu0 %v1202
    %v1204 = vpop.f32.mrb[0].mxu0
    %v1205 = vadd.f32 0.0, %v1204
    %v1206 = vpop.f32.mrb[0].mxu0
    %1207 = vmatprep.mubr.f32.mxu0 0.0
    %v1208 = vand.u32 %v1127, 4294901760
    %v1209 = vsub.f32 %v1127, %v1208
    %v1210 = vand.u32 %v1209, 4294901760
    %v1211 = vsub.f32 %v1209, %v1210
    %v1212 = vand.u32 %v1211, 4294901760
    %1213 = vmatmul.mubr.f32.gmra.mrb[0].mxu0 %v1212
    %v1214 = vpop.f32.mrb[0].mxu0
    %v1215 = vadd.f32 0.0, %v1214
    %v1216 = vpop.f32.mrb[0].mxu0
    %1217 = vdwg.mxu0
    %1218 = vmatprep.subr.mxu0 0.0
    %v1219 = vand.u32 %v1130, 4294901760
    %v1220 = vsub.f32 %v1130, %v1219
    %v1221 = vand.u32 %v1220, 4294901760
    %v1222 = vsub.f32 %v1220, %v1221
    %v1223 = vand.u32 %v1222, 4294901760
    %1224 = vmatpush1.xpose.msra.mxu0 %v1223
    %1225 = vmatprep.subr.mxu0 0.0
    %1226 = vmatpush1.xpose.msra.mxu0 0.0
    %1227 = vmatprep.subr.mxu0 0.0
    %1228 = vmatpush1.xpose.msra.mxu0 0.0
    %1229 = vmatprep.subr.mxu0 0.0
    %1230 = vmatpush1.xpose.msra.mxu0 0.0
    %1231 = vmatprep.subr.mxu0 0.0
    %1232 = vmatpush1.xpose.msra.mxu0 0.0
    %1233 = vmatprep.subr.mxu0 0.0
    %1234 = vmatpush1.xpose.msra.mxu0 0.0
    %1235 = vmatprep.subr.mxu0 0.0
    %1236 = vmatpush1.xpose.msra.mxu0 0.0
    %1237 = vmatprep.subr.mxu0 0.0
    %1238 = vmatpush1.xpose.msra.mxu0 0.0
    %1239 = vmatprep.subr.mxu0 0.0
    %1240 = vmatpush1.xpose.msra.mxu0 0.0
    %1241 = vmatprep.subr.mxu0 0.0
    %1242 = vmatpush1.xpose.msra.mxu0 0.0
    %1243 = vmatprep.subr.mxu0 0.0
    %1244 = vmatpush1.xpose.msra.mxu0 0.0
    %1245 = vmatprep.subr.mxu0 0.0
    %1246 = vmatpush1.xpose.msra.mxu0 0.0
    %1247 = vmatprep.subr.mxu0 0.0
    %1248 = vmatpush1.xpose.msra.mxu0 0.0
    %1249 = vmatprep.subr.mxu0 0.0
    %1250 = vmatpush1.xpose.msra.mxu0 0.0
    %1251 = vmatprep.subr.mxu0 0.0
    %1252 = vmatpush1.xpose.msra.mxu0 0.0
    %1253 = vmatprep.subr.mxu0 0.0
    %1254 = vmatpush1.xpose.msra.mxu0 0.0
    %1255 = vmatprep.subr.mxu0 0.0
    %1256 = vmatpush1.xpose.msra.mxu0 0.0
    %1257 = vmatprep.subr.mxu0 0.0
    %1258 = vmatpush1.xpose.msra.mxu0 0.0
    %1259 = vmatprep.subr.mxu0 0.0
    %1260 = vmatpush1.xpose.msra.mxu0 0.0
    %1261 = vmatprep.subr.mxu0 0.0
    %1262 = vmatpush1.xpose.msra.mxu0 0.0
    %1263 = vmatprep.subr.mxu0 0.0
    %1264 = vmatpush1.xpose.msra.mxu0 0.0
    %1265 = vmatprep.subr.mxu0 0.0
    %1266 = vmatpush1.xpose.msra.mxu0 0.0
    %1267 = vmatprep.subr.mxu0 0.0
    %1268 = vmatpush1.xpose.msra.mxu0 0.0
    %1269 = vmatprep.subr.mxu0 0.0
    %1270 = vmatpush1.xpose.msra.mxu0 0.0
    %1271 = vmatprep.subr.mxu0 0.0
    %1272 = vmatpush1.xpose.msra.mxu0 0.0
    %1273 = vmatprep.subr.mxu0 0.0
    %1274 = vmatpush1.xpose.msra.mxu0 0.0
    %1275 = vmatprep.subr.mxu0 0.0
    %1276 = vmatpush1.xpose.msra.mxu0 0.0
    %1277 = vmatprep.subr.mxu0 0.0
    %1278 = vmatpush1.xpose.msra.mxu0 0.0
    %1279 = vmatprep.subr.mxu0 0.0
    %1280 = vmatpush1.xpose.msra.mxu0 0.0
    %1281 = vmatprep.subr.mxu0 0.0
    %1282 = vmatpush1.xpose.msra.mxu0 0.0
    %1283 = vmatprep.subr.mxu0 0.0
    %1284 = vmatpush1.xpose.msra.mxu0 0.0
    %1285 = vmatprep.subr.mxu0 0.0
    %1286 = vmatpush1.xpose.msra.mxu0 0.0
    %1287 = vmatprep.mubr.f32.mxu0 0.0
    %v1288 = vand.u32 %v1124, 4294901760
    %1289 = vmatmul.mubr.f32.gmra.mrb[0].mxu0 %v1288
    %v1290 = vpop.f32.mrb[0].mxu0
    %v1291 = vadd.f32 %v1205, %v1290
    %v1292 = vpop.f32.mrb[0].mxu0
    %1293 = vmatprep.mubr.f32.mxu0 0.0
    %v1294 = vand.u32 %v1127, 4294901760
    %1295 = vmatmul.mubr.f32.gmra.mrb[0].mxu0 %v1294
    %v1296 = vpop.f32.mrb[0].mxu0
    %v1297 = vadd.f32 %v1215, %v1296
    %v1298 = vpop.f32.mrb[0].mxu0
    %1299 = vdwg.mxu0
    %1300 = vmatprep.subr.mxu0 0.0
    %v1301 = vand.u32 %v1130, 4294901760
    %v1302 = vsub.f32 %v1130, %v1301
    %1303 = vmatpush1.xpose.msra.mxu0 %v1302
    %1304 = vmatprep.subr.mxu0 0.0
    %1305 = vmatpush1.xpose.msra.mxu0 0.0
    %1306 = vmatprep.subr.mxu0 0.0
    %1307 = vmatpush1.xpose.msra.mxu0 0.0
    %1308 = vmatprep.subr.mxu0 0.0
    %1309 = vmatpush1.xpose.msra.mxu0 0.0
    %1310 = vmatprep.subr.mxu0 0.0
    %1311 = vmatpush1.xpose.msra.mxu0 0.0
    %1312 = vmatprep.subr.mxu0 0.0
    %1313 = vmatpush1.xpose.msra.mxu0 0.0
    %1314 = vmatprep.subr.mxu0 0.0
    %1315 = vmatpush1.xpose.msra.mxu0 0.0
    %1316 = vmatprep.subr.mxu0 0.0
    %1317 = vmatpush1.xpose.msra.mxu0 0.0
    %1318 = vmatprep.subr.mxu0 0.0
    %1319 = vmatpush1.xpose.msra.mxu0 0.0
    %1320 = vmatprep.subr.mxu0 0.0
    %1321 = vmatpush1.xpose.msra.mxu0 0.0
    %1322 = vmatprep.subr.mxu0 0.0
    %1323 = vmatpush1.xpose.msra.mxu0 0.0
    %1324 = vmatprep.subr.mxu0 0.0
    %1325 = vmatpush1.xpose.msra.mxu0 0.0
    %1326 = vmatprep.subr.mxu0 0.0
    %1327 = vmatpush1.xpose.msra.mxu0 0.0
    %1328 = vmatprep.subr.mxu0 0.0
    %1329 = vmatpush1.xpose.msra.mxu0 0.0
    %1330 = vmatprep.subr.mxu0 0.0
    %1331 = vmatpush1.xpose.msra.mxu0 0.0
    %1332 = vmatprep.subr.mxu0 0.0
    %1333 = vmatpush1.xpose.msra.mxu0 0.0
    %1334 = vmatprep.subr.mxu0 0.0
    %1335 = vmatpush1.xpose.msra.mxu0 0.0
    %1336 = vmatprep.subr.mxu0 0.0
    %1337 = vmatpush1.xpose.msra.mxu0 0.0
    %1338 = vmatprep.subr.mxu0 0.0
    %1339 = vmatpush1.xpose.msra.mxu0 0.0
    %1340 = vmatprep.subr.mxu0 0.0
    %1341 = vmatpush1.xpose.msra.mxu0 0.0
    %1342 = vmatprep.subr.mxu0 0.0
    %1343 = vmatpush1.xpose.msra.mxu0 0.0
    %1344 = vmatprep.subr.mxu0 0.0
    %1345 = vmatpush1.xpose.msra.mxu0 0.0
    %1346 = vmatprep.subr.mxu0 0.0
    %1347 = vmatpush1.xpose.msra.mxu0 0.0
    %1348 = vmatprep.subr.mxu0 0.0
    %1349 = vmatpush1.xpose.msra.mxu0 0.0
    %1350 = vmatprep.subr.mxu0 0.0
    %1351 = vmatpush1.xpose.msra.mxu0 0.0
    %1352 = vmatprep.subr.mxu0 0.0
    %1353 = vmatpush1.xpose.msra.mxu0 0.0
    %1354 = vmatprep.subr.mxu0 0.0
    %1355 = vmatpush1.xpose.msra.mxu0 0.0
    %1356 = vmatprep.subr.mxu0 0.0
    %1357 = vmatpush1.xpose.msra.mxu0 0.0
    %1358 = vmatprep.subr.mxu0 0.0
    %1359 = vmatpush1.xpose.msra.mxu0 0.0
    %1360 = vmatprep.subr.mxu0 0.0
    %1361 = vmatpush1.xpose.msra.mxu0 0.0
    %1362 = vmatprep.subr.mxu0 0.0
    %1363 = vmatpush1.xpose.msra.mxu0 0.0
    %1364 = vmatprep.subr.mxu0 0.0
    %1365 = vmatpush1.xpose.msra.mxu0 0.0
    %1366 = vmatprep.mubr.f32.mxu0 0.0
    %v1367 = vand.u32 %v1124, 4294901760
    %v1368 = vsub.f32 %v1124, %v1367
    %1369 = vmatmul.mubr.f32.gmra.mrb[0].mxu0 %v1368
    %v1370 = vpop.f32.mrb[0].mxu0
    %v1371 = vadd.f32 %v1291, %v1370
    %v1372 = vpop.f32.mrb[0].mxu0
    %1373 = vmatprep.mubr.f32.mxu0 0.0
    %v1374 = vand.u32 %v1127, 4294901760
    %v1375 = vsub.f32 %v1127, %v1374
    %1376 = vmatmul.mubr.f32.gmra.mrb[0].mxu0 %v1375
    %v1377 = vpop.f32.mrb[0].mxu0
    %v1378 = vadd.f32 %v1297, %v1377
    %v1379 = vpop.f32.mrb[0].mxu0
    %1380 = vdwg.mxu0
    %1381 = vmatprep.subr.mxu0 0.0
    %v1382 = vand.u32 %v1130, 4294901760
    %1383 = vmatpush1.xpose.msra.mxu0 %v1382
    %1384 = vmatprep.subr.mxu0 0.0
    %1385 = vmatpush1.xpose.msra.mxu0 0.0
    %1386 = vmatprep.subr.mxu0 0.0
    %1387 = vmatpush1.xpose.msra.mxu0 0.0
    %1388 = vmatprep.subr.mxu0 0.0
    %1389 = vmatpush1.xpose.msra.mxu0 0.0
    %1390 = vmatprep.subr.mxu0 0.0
    %1391 = vmatpush1.xpose.msra.mxu0 0.0
    %1392 = vmatprep.subr.mxu0 0.0
    %1393 = vmatpush1.xpose.msra.mxu0 0.0
    %1394 = vmatprep.subr.mxu0 0.0
    %1395 = vmatpush1.xpose.msra.mxu0 0.0
    %1396 = vmatprep.subr.mxu0 0.0
    %1397 = vmatpush1.xpose.msra.mxu0 0.0
    %1398 = vmatprep.subr.mxu0 0.0
    %1399 = vmatpush1.xpose.msra.mxu0 0.0
    %1400 = vmatprep.subr.mxu0 0.0
    %1401 = vmatpush1.xpose.msra.mxu0 0.0
    %1402 = vmatprep.subr.mxu0 0.0
    %1403 = vmatpush1.xpose.msra.mxu0 0.0
    %1404 = vmatprep.subr.mxu0 0.0
    %1405 = vmatpush1.xpose.msra.mxu0 0.0
    %1406 = vmatprep.subr.mxu0 0.0
    %1407 = vmatpush1.xpose.msra.mxu0 0.0
    %1408 = vmatprep.subr.mxu0 0.0
    %1409 = vmatpush1.xpose.msra.mxu0 0.0
    %1410 = vmatprep.subr.mxu0 0.0
    %1411 = vmatpush1.xpose.msra.mxu0 0.0
    %1412 = vmatprep.subr.mxu0 0.0
    %1413 = vmatpush1.xpose.msra.mxu0 0.0
    %1414 = vmatprep.subr.mxu0 0.0
    %1415 = vmatpush1.xpose.msra.mxu0 0.0
    %1416 = vmatprep.subr.mxu0 0.0
    %1417 = vmatpush1.xpose.msra.mxu0 0.0
    %1418 = vmatprep.subr.mxu0 0.0
    %1419 = vmatpush1.xpose.msra.mxu0 0.0
    %1420 = vmatprep.subr.mxu0 0.0
    %1421 = vmatpush1.xpose.msra.mxu0 0.0
    %1422 = vmatprep.subr.mxu0 0.0
    %1423 = vmatpush1.xpose.msra.mxu0 0.0
    %1424 = vmatprep.subr.mxu0 0.0
    %1425 = vmatpush1.xpose.msra.mxu0 0.0
    %1426 = vmatprep.subr.mxu0 0.0
    %1427 = vmatpush1.xpose.msra.mxu0 0.0
    %1428 = vmatprep.subr.mxu0 0.0
    %1429 = vmatpush1.xpose.msra.mxu0 0.0
    %1430 = vmatprep.subr.mxu0 0.0
    %1431 = vmatpush1.xpose.msra.mxu0 0.0
    %1432 = vmatprep.subr.mxu0 0.0
    %1433 = vmatpush1.xpose.msra.mxu0 0.0
    %1434 = vmatprep.subr.mxu0 0.0
    %1435 = vmatpush1.xpose.msra.mxu0 0.0
    %1436 = vmatprep.subr.mxu0 0.0
    %1437 = vmatpush1.xpose.msra.mxu0 0.0
    %1438 = vmatprep.subr.mxu0 0.0
    %1439 = vmatpush1.xpose.msra.mxu0 0.0
    %1440 = vmatprep.subr.mxu0 0.0
    %1441 = vmatpush1.xpose.msra.mxu0 0.0
    %1442 = vmatprep.subr.mxu0 0.0
    %1443 = vmatpush1.xpose.msra.mxu0 0.0
    %1444 = vmatprep.subr.mxu0 0.0
    %1445 = vmatpush1.xpose.msra.mxu0 0.0
    %1446 = vmatprep.mubr.f32.mxu0 0.0
    %v1447 = vand.u32 %v1124, 4294901760
    %v1448 = vsub.f32 %v1124, %v1447
    %v1449 = vand.u32 %v1448, 4294901760
    %1450 = vmatmul.mubr.f32.gmra.mrb[0].mxu0 %v1449
    %v1451 = vpop.f32.mrb[0].mxu0
    %v1452 = vadd.f32 %v1371, %v1451
    %v1453 = vpop.f32.mrb[0].mxu0
    %1454 = vmatprep.mubr.f32.mxu0 0.0
    %v1455 = vand.u32 %v1127, 4294901760
    %v1456 = vsub.f32 %v1127, %v1455
    %v1457 = vand.u32 %v1456, 4294901760
    %1458 = vmatmul.mubr.f32.gmra.mrb[0].mxu0 %v1457
    %v1459 = vpop.f32.mrb[0].mxu0
    %v1460 = vadd.f32 %v1378, %v1459
    %v1461 = vpop.f32.mrb[0].mxu0
    %1462 = vdwg.mxu0
    %1463 = vmatprep.subr.mxu0 0.0
    %v1464 = vand.u32 %v1130, 4294901760
    %v1465 = vsub.f32 %v1130, %v1464
    %v1466 = vand.u32 %v1465, 4294901760
    %1467 = vmatpush1.xpose.msra.mxu0 %v1466
    %1468 = vmatprep.subr.mxu0 0.0
    %1469 = vmatpush1.xpose.msra.mxu0 0.0
    %1470 = vmatprep.subr.mxu0 0.0
    %1471 = vmatpush1.xpose.msra.mxu0 0.0
    %1472 = vmatprep.subr.mxu0 0.0
    %1473 = vmatpush1.xpose.msra.mxu0 0.0
    %1474 = vmatprep.subr.mxu0 0.0
    %1475 = vmatpush1.xpose.msra.mxu0 0.0
    %1476 = vmatprep.subr.mxu0 0.0
    %1477 = vmatpush1.xpose.msra.mxu0 0.0
    %1478 = vmatprep.subr.mxu0 0.0
    %1479 = vmatpush1.xpose.msra.mxu0 0.0
    %1480 = vmatprep.subr.mxu0 0.0
    %1481 = vmatpush1.xpose.msra.mxu0 0.0
    %1482 = vmatprep.subr.mxu0 0.0
    %1483 = vmatpush1.xpose.msra.mxu0 0.0
    %1484 = vmatprep.subr.mxu0 0.0
    %1485 = vmatpush1.xpose.msra.mxu0 0.0
    %1486 = vmatprep.subr.mxu0 0.0
    %1487 = vmatpush1.xpose.msra.mxu0 0.0
    %1488 = vmatprep.subr.mxu0 0.0
    %1489 = vmatpush1.xpose.msra.mxu0 0.0
    %1490 = vmatprep.subr.mxu0 0.0
    %1491 = vmatpush1.xpose.msra.mxu0 0.0
    %1492 = vmatprep.subr.mxu0 0.0
    %1493 = vmatpush1.xpose.msra.mxu0 0.0
    %1494 = vmatprep.subr.mxu0 0.0
    %1495 = vmatpush1.xpose.msra.mxu0 0.0
    %1496 = vmatprep.subr.mxu0 0.0
    %1497 = vmatpush1.xpose.msra.mxu0 0.0
    %1498 = vmatprep.subr.mxu0 0.0
    %1499 = vmatpush1.xpose.msra.mxu0 0.0
    %1500 = vmatprep.subr.mxu0 0.0
    %1501 = vmatpush1.xpose.msra.mxu0 0.0
    %1502 = vmatprep.subr.mxu0 0.0
    %1503 = vmatpush1.xpose.msra.mxu0 0.0
    %1504 = vmatprep.subr.mxu0 0.0
    %1505 = vmatpush1.xpose.msra.mxu0 0.0
    %1506 = vmatprep.subr.mxu0 0.0
    %1507 = vmatpush1.xpose.msra.mxu0 0.0
    %1508 = vmatprep.subr.mxu0 0.0
    %1509 = vmatpush1.xpose.msra.mxu0 0.0
    %1510 = vmatprep.subr.mxu0 0.0
    %1511 = vmatpush1.xpose.msra.mxu0 0.0
    %1512 = vmatprep.subr.mxu0 0.0
    %1513 = vmatpush1.xpose.msra.mxu0 0.0
    %1514 = vmatprep.subr.mxu0 0.0
    %1515 = vmatpush1.xpose.msra.mxu0 0.0
    %1516 = vmatprep.subr.mxu0 0.0
    %1517 = vmatpush1.xpose.msra.mxu0 0.0
    %1518 = vmatprep.subr.mxu0 0.0
    %1519 = vmatpush1.xpose.msra.mxu0 0.0
    %1520 = vmatprep.subr.mxu0 0.0
    %1521 = vmatpush1.xpose.msra.mxu0 0.0
    %1522 = vmatprep.subr.mxu0 0.0
    %1523 = vmatpush1.xpose.msra.mxu0 0.0
    %1524 = vmatprep.subr.mxu0 0.0
    %1525 = vmatpush1.xpose.msra.mxu0 0.0
    %1526 = vmatprep.subr.mxu0 0.0
    %1527 = vmatpush1.xpose.msra.mxu0 0.0
    %1528 = vmatprep.subr.mxu0 0.0
    %1529 = vmatpush1.xpose.msra.mxu0 0.0
    %1530 = vmatprep.mubr.f32.mxu0 0.0
    %v1531 = vand.u32 %v1124, 4294901760
    %1532 = vmatmul.mubr.f32.gmra.mrb[0].mxu0 %v1531
    %v1533 = vpop.f32.mrb[0].mxu0
    %v1534 = vadd.f32 %v1452, %v1533
    %v1535 = vpop.f32.mrb[0].mxu0
    %1536 = vmatprep.mubr.f32.mxu0 0.0
    %v1537 = vand.u32 %v1127, 4294901760
    %1538 = vmatmul.mubr.f32.gmra.mrb[0].mxu0 %v1537
    %v1539 = vpop.f32.mrb[0].mxu0
    %v1540 = vadd.f32 %v1460, %v1539
    %v1541 = vpop.f32.mrb[0].mxu0
    %1542 = vdwg.mxu0
    %1543 = vmatprep.subr.mxu0 0.0
    %v1544 = vand.u32 %v1130, 4294901760
    %1545 = vmatpush1.xpose.msra.mxu0 %v1544
    %1546 = vmatprep.subr.mxu0 0.0
    %1547 = vmatpush1.xpose.msra.mxu0 0.0
    %1548 = vmatprep.subr.mxu0 0.0
    %1549 = vmatpush1.xpose.msra.mxu0 0.0
    %1550 = vmatprep.subr.mxu0 0.0
    %1551 = vmatpush1.xpose.msra.mxu0 0.0
    %1552 = vmatprep.subr.mxu0 0.0
    %1553 = vmatpush1.xpose.msra.mxu0 0.0
    %1554 = vmatprep.subr.mxu0 0.0
    %1555 = vmatpush1.xpose.msra.mxu0 0.0
    %1556 = vmatprep.subr.mxu0 0.0
    %1557 = vmatpush1.xpose.msra.mxu0 0.0
    %1558 = vmatprep.subr.mxu0 0.0
    %1559 = vmatpush1.xpose.msra.mxu0 0.0
    %1560 = vmatprep.subr.mxu0 0.0
    %1561 = vmatpush1.xpose.msra.mxu0 0.0
    %1562 = vmatprep.subr.mxu0 0.0
    %1563 = vmatpush1.xpose.msra.mxu0 0.0
    %1564 = vmatprep.subr.mxu0 0.0
    %1565 = vmatpush1.xpose.msra.mxu0 0.0
    %1566 = vmatprep.subr.mxu0 0.0
    %1567 = vmatpush1.xpose.msra.mxu0 0.0
    %1568 = vmatprep.subr.mxu0 0.0
    %1569 = vmatpush1.xpose.msra.mxu0 0.0
    %1570 = vmatprep.subr.mxu0 0.0
    %1571 = vmatpush1.xpose.msra.mxu0 0.0
    %1572 = vmatprep.subr.mxu0 0.0
    %1573 = vmatpush1.xpose.msra.mxu0 0.0
    %1574 = vmatprep.subr.mxu0 0.0
    %1575 = vmatpush1.xpose.msra.mxu0 0.0
    %1576 = vmatprep.subr.mxu0 0.0
    %1577 = vmatpush1.xpose.msra.mxu0 0.0
    %1578 = vmatprep.subr.mxu0 0.0
    %1579 = vmatpush1.xpose.msra.mxu0 0.0
    %1580 = vmatprep.subr.mxu0 0.0
    %1581 = vmatpush1.xpose.msra.mxu0 0.0
    %1582 = vmatprep.subr.mxu0 0.0
    %1583 = vmatpush1.xpose.msra.mxu0 0.0
    %1584 = vmatprep.subr.mxu0 0.0
    %1585 = vmatpush1.xpose.msra.mxu0 0.0
    %1586 = vmatprep.subr.mxu0 0.0
    %1587 = vmatpush1.xpose.msra.mxu0 0.0
    %1588 = vmatprep.subr.mxu0 0.0
    %1589 = vmatpush1.xpose.msra.mxu0 0.0
    %1590 = vmatprep.subr.mxu0 0.0
    %1591 = vmatpush1.xpose.msra.mxu0 0.0
    %1592 = vmatprep.subr.mxu0 0.0
    %1593 = vmatpush1.xpose.msra.mxu0 0.0
    %1594 = vmatprep.subr.mxu0 0.0
    %1595 = vmatpush1.xpose.msra.mxu0 0.0
    %1596 = vmatprep.subr.mxu0 0.0
    %1597 = vmatpush1.xpose.msra.mxu0 0.0
    %1598 = vmatprep.subr.mxu0 0.0
    %1599 = vmatpush1.xpose.msra.mxu0 0.0
    %1600 = vmatprep.subr.mxu0 0.0
    %1601 = vmatpush1.xpose.msra.mxu0 0.0
    %1602 = vmatprep.subr.mxu0 0.0
    %1603 = vmatpush1.xpose.msra.mxu0 0.0
    %1604 = vmatprep.subr.mxu0 0.0
    %1605 = vmatpush1.xpose.msra.mxu0 0.0
    %1606 = vmatprep.subr.mxu0 0.0
    %1607 = vmatpush1.xpose.msra.mxu0 0.0
    %1608 = vmatprep.mubr.f32.mxu0 0.0
    %v1609 = vand.u32 %v1124, 4294901760
    %1610 = vmatmul.mubr.f32.gmra.mrb[0].mxu0 %v1609
    %v1611 = vpop.f32.mrb[0].mxu0
    %v1612 = vadd.f32 %v1534, %v1611
    %v1613 = vpop.f32.mrb[0].mxu0
    %1614 = vmatprep.mubr.f32.mxu0 0.0
    %v1615 = vand.u32 %v1127, 4294901760
    %1616 = vmatmul.mubr.f32.gmra.mrb[0].mxu0 %v1615
    %v1617 = vpop.f32.mrb[0].mxu0
    %v1618 = vadd.f32 %v1540, %v1617
    %v1619 = vpop.f32.mrb[0].mxu0
    %1620 = vdwg.mxu0
    %1621 = vmatprep.subr.mxu0 0.0
    %v1622 = vand.u32 %v1090, 4294901760
    %1623 = vmatpush1.msra.mxu0 %v1622
    %1624 = vmatprep.subr.mxu0 0.0
    %v1625 = vand.u32 %v1091, 4294901760
    %1626 = vmatpush1.msra.mxu0 %v1625
    %1627 = vmatprep.subr.mxu0 0.0
    %1628 = vmatpush1.msra.mxu0 0.0
    %1629 = vmatprep.subr.mxu0 0.0
    %1630 = vmatpush1.msra.mxu0 0.0
    %1631 = vmatprep.subr.mxu0 0.0
    %1632 = vmatpush1.msra.mxu0 0.0
    %1633 = vmatprep.subr.mxu0 0.0
    %1634 = vmatpush1.msra.mxu0 0.0
    %1635 = vmatprep.subr.mxu0 0.0
    %1636 = vmatpush1.msra.mxu0 0.0
    %1637 = vmatprep.subr.mxu0 0.0
    %1638 = vmatpush1.msra.mxu0 0.0
    %1639 = vmatprep.subr.mxu0 0.0
    %1640 = vmatpush1.msra.mxu0 0.0
    %1641 = vmatprep.subr.mxu0 0.0
    %1642 = vmatpush1.msra.mxu0 0.0
    %1643 = vmatprep.subr.mxu0 0.0
    %1644 = vmatpush1.msra.mxu0 0.0
    %1645 = vmatprep.subr.mxu0 0.0
    %1646 = vmatpush1.msra.mxu0 0.0
    %1647 = vmatprep.subr.mxu0 0.0
    %1648 = vmatpush1.msra.mxu0 0.0
    %1649 = vmatprep.subr.mxu0 0.0
    %1650 = vmatpush1.msra.mxu0 0.0
    %1651 = vmatprep.subr.mxu0 0.0
    %1652 = vmatpush1.msra.mxu0 0.0
    %1653 = vmatprep.subr.mxu0 0.0
    %1654 = vmatpush1.msra.mxu0 0.0
    %1655 = vmatprep.subr.mxu0 0.0
    %1656 = vmatpush1.msra.mxu0 0.0
    %1657 = vmatprep.subr.mxu0 0.0
    %1658 = vmatpush1.msra.mxu0 0.0
    %1659 = vmatprep.subr.mxu0 0.0
    %1660 = vmatpush1.msra.mxu0 0.0
    %1661 = vmatprep.subr.mxu0 0.0
    %1662 = vmatpush1.msra.mxu0 0.0
    %1663 = vmatprep.subr.mxu0 0.0
    %1664 = vmatpush1.msra.mxu0 0.0
    %1665 = vmatprep.subr.mxu0 0.0
    %1666 = vmatpush1.msra.mxu0 0.0
    %1667 = vmatprep.subr.mxu0 0.0
    %1668 = vmatpush1.msra.mxu0 0.0
    %1669 = vmatprep.subr.mxu0 0.0
    %1670 = vmatpush1.msra.mxu0 0.0
    %1671 = vmatprep.subr.mxu0 0.0
    %1672 = vmatpush1.msra.mxu0 0.0
    %1673 = vmatprep.subr.mxu0 0.0
    %1674 = vmatpush1.msra.mxu0 0.0
    %1675 = vmatprep.subr.mxu0 0.0
    %1676 = vmatpush1.msra.mxu0 0.0
    %1677 = vmatprep.subr.mxu0 0.0
    %1678 = vmatpush1.msra.mxu0 0.0
    %1679 = vmatprep.subr.mxu0 0.0
    %1680 = vmatpush1.msra.mxu0 0.0
    %1681 = vmatprep.subr.mxu0 0.0
    %1682 = vmatpush1.msra.mxu0 0.0
    %1683 = vmatprep.subr.mxu0 0.0
    %1684 = vmatpush1.msra.mxu0 0.0
    %1685 = vmatprep.subr.mxu0 0.0
    %1686 = vmatpush1.msra.mxu0 0.0
    %1687 = vmatprep.mubr.f32.mxu0 0.0
    %v1688 = vand.u32 %v1130, 4294901760
    %v1689 = vsub.f32 %v1130, %v1688
    %v1690 = vand.u32 %v1689, 4294901760
    %v1691 = vsub.f32 %v1689, %v1690
    %v1692 = vand.u32 %v1691, 4294901760
    %1693 = vmatmul.mubr.f32.gmra.mrb[0].mxu0 %v1692
    %v1694 = vpop.f32.mrb[0].mxu0
    %v1695 = vadd.f32 0.0, %v1694
    %v1696 = vpop.f32.mrb[0].mxu0
    %1697 = vdwg.mxu0
    %1698 = vmatprep.subr.mxu0 0.0
    %v1699 = vand.u32 %v1090, 4294901760
    %v1700 = vsub.f32 %v1090, %v1699
    %v1701 = vand.u32 %v1700, 4294901760
    %v1702 = vsub.f32 %v1700, %v1701
    %v1703 = vand.u32 %v1702, 4294901760
    %1704 = vmatpush1.msra.mxu0 %v1703
    %1705 = vmatprep.subr.mxu0 0.0
    %v1706 = vand.u32 %v1091, 4294901760
    %v1707 = vsub.f32 %v1091, %v1706
    %v1708 = vand.u32 %v1707, 4294901760
    %v1709 = vsub.f32 %v1707, %v1708
    %v1710 = vand.u32 %v1709, 4294901760
    %1711 = vmatpush1.msra.mxu0 %v1710
    %1712 = vmatprep.subr.mxu0 0.0
    %1713 = vmatpush1.msra.mxu0 0.0
    %1714 = vmatprep.subr.mxu0 0.0
    %1715 = vmatpush1.msra.mxu0 0.0
    %1716 = vmatprep.subr.mxu0 0.0
    %1717 = vmatpush1.msra.mxu0 0.0
    %1718 = vmatprep.subr.mxu0 0.0
    %1719 = vmatpush1.msra.mxu0 0.0
    %1720 = vmatprep.subr.mxu0 0.0
    %1721 = vmatpush1.msra.mxu0 0.0
    %1722 = vmatprep.subr.mxu0 0.0
    %1723 = vmatpush1.msra.mxu0 0.0
    %1724 = vmatprep.subr.mxu0 0.0
    %1725 = vmatpush1.msra.mxu0 0.0
    %1726 = vmatprep.subr.mxu0 0.0
    %1727 = vmatpush1.msra.mxu0 0.0
    %1728 = vmatprep.subr.mxu0 0.0
    %1729 = vmatpush1.msra.mxu0 0.0
    %1730 = vmatprep.subr.mxu0 0.0
    %1731 = vmatpush1.msra.mxu0 0.0
    %1732 = vmatprep.subr.mxu0 0.0
    %1733 = vmatpush1.msra.mxu0 0.0
    %1734 = vmatprep.subr.mxu0 0.0
    %1735 = vmatpush1.msra.mxu0 0.0
    %1736 = vmatprep.subr.mxu0 0.0
    %1737 = vmatpush1.msra.mxu0 0.0
    %1738 = vmatprep.subr.mxu0 0.0
    %1739 = vmatpush1.msra.mxu0 0.0
    %1740 = vmatprep.subr.mxu0 0.0
    %1741 = vmatpush1.msra.mxu0 0.0
    %1742 = vmatprep.subr.mxu0 0.0
    %1743 = vmatpush1.msra.mxu0 0.0
    %1744 = vmatprep.subr.mxu0 0.0
    %1745 = vmatpush1.msra.mxu0 0.0
    %1746 = vmatprep.subr.mxu0 0.0
    %1747 = vmatpush1.msra.mxu0 0.0
    %1748 = vmatprep.subr.mxu0 0.0
    %1749 = vmatpush1.msra.mxu0 0.0
    %1750 = vmatprep.subr.mxu0 0.0
    %1751 = vmatpush1.msra.mxu0 0.0
    %1752 = vmatprep.subr.mxu0 0.0
    %1753 = vmatpush1.msra.mxu0 0.0
    %1754 = vmatprep.subr.mxu0 0.0
    %1755 = vmatpush1.msra.mxu0 0.0
    %1756 = vmatprep.subr.mxu0 0.0
    %1757 = vmatpush1.msra.mxu0 0.0
    %1758 = vmatprep.subr.mxu0 0.0
    %1759 = vmatpush1.msra.mxu0 0.0
    %1760 = vmatprep.subr.mxu0 0.0
    %1761 = vmatpush1.msra.mxu0 0.0
    %1762 = vmatprep.subr.mxu0 0.0
    %1763 = vmatpush1.msra.mxu0 0.0
    %1764 = vmatprep.subr.mxu0 0.0
    %1765 = vmatpush1.msra.mxu0 0.0
    %1766 = vmatprep.subr.mxu0 0.0
    %1767 = vmatpush1.msra.mxu0 0.0
    %1768 = vmatprep.subr.mxu0 0.0
    %1769 = vmatpush1.msra.mxu0 0.0
    %1770 = vmatprep.subr.mxu0 0.0
    %1771 = vmatpush1.msra.mxu0 0.0
    %1772 = vmatprep.mubr.f32.mxu0 0.0
    %v1773 = vand.u32 %v1130, 4294901760
    %1774 = vmatmul.mubr.f32.gmra.mrb[0].mxu0 %v1773
    %v1775 = vpop.f32.mrb[0].mxu0
    %v1776 = vadd.f32 %v1695, %v1775
    %v1777 = vpop.f32.mrb[0].mxu0
    %1778 = vdwg.mxu0
    %1779 = vmatprep.subr.mxu0 0.0
    %v1780 = vand.u32 %v1090, 4294901760
    %v1781 = vsub.f32 %v1090, %v1780
    %1782 = vmatpush1.msra.mxu0 %v1781
    %1783 = vmatprep.subr.mxu0 0.0
    %v1784 = vand.u32 %v1091, 4294901760
    %v1785 = vsub.f32 %v1091, %v1784
    %1786 = vmatpush1.msra.mxu0 %v1785
    %1787 = vmatprep.subr.mxu0 0.0
    %1788 = vmatpush1.msra.mxu0 0.0
    %1789 = vmatprep.subr.mxu0 0.0
    %1790 = vmatpush1.msra.mxu0 0.0
    %1791 = vmatprep.subr.mxu0 0.0
    %1792 = vmatpush1.msra.mxu0 0.0
    %1793 = vmatprep.subr.mxu0 0.0
    %1794 = vmatpush1.msra.mxu0 0.0
    %1795 = vmatprep.subr.mxu0 0.0
    %1796 = vmatpush1.msra.mxu0 0.0
    %1797 = vmatprep.subr.mxu0 0.0
    %1798 = vmatpush1.msra.mxu0 0.0
    %1799 = vmatprep.subr.mxu0 0.0
    %1800 = vmatpush1.msra.mxu0 0.0
    %1801 = vmatprep.subr.mxu0 0.0
    %1802 = vmatpush1.msra.mxu0 0.0
    %1803 = vmatprep.subr.mxu0 0.0
    %1804 = vmatpush1.msra.mxu0 0.0
    %1805 = vmatprep.subr.mxu0 0.0
    %1806 = vmatpush1.msra.mxu0 0.0
    %1807 = vmatprep.subr.mxu0 0.0
    %1808 = vmatpush1.msra.mxu0 0.0
    %1809 = vmatprep.subr.mxu0 0.0
    %1810 = vmatpush1.msra.mxu0 0.0
    %1811 = vmatprep.subr.mxu0 0.0
    %1812 = vmatpush1.msra.mxu0 0.0
    %1813 = vmatprep.subr.mxu0 0.0
    %1814 = vmatpush1.msra.mxu0 0.0
    %1815 = vmatprep.subr.mxu0 0.0
    %1816 = vmatpush1.msra.mxu0 0.0
    %1817 = vmatprep.subr.mxu0 0.0
    %1818 = vmatpush1.msra.mxu0 0.0
    %1819 = vmatprep.subr.mxu0 0.0
    %1820 = vmatpush1.msra.mxu0 0.0
    %1821 = vmatprep.subr.mxu0 0.0
    %1822 = vmatpush1.msra.mxu0 0.0
    %1823 = vmatprep.subr.mxu0 0.0
    %1824 = vmatpush1.msra.mxu0 0.0
    %1825 = vmatprep.subr.mxu0 0.0
    %1826 = vmatpush1.msra.mxu0 0.0
    %1827 = vmatprep.subr.mxu0 0.0
    %1828 = vmatpush1.msra.mxu0 0.0
    %1829 = vmatprep.subr.mxu0 0.0
    %1830 = vmatpush1.msra.mxu0 0.0
    %1831 = vmatprep.subr.mxu0 0.0
    %1832 = vmatpush1.msra.mxu0 0.0
    %1833 = vmatprep.subr.mxu0 0.0
    %1834 = vmatpush1.msra.mxu0 0.0
    %1835 = vmatprep.subr.mxu0 0.0
    %1836 = vmatpush1.msra.mxu0 0.0
    %1837 = vmatprep.subr.mxu0 0.0
    %1838 = vmatpush1.msra.mxu0 0.0
    %1839 = vmatprep.subr.mxu0 0.0
    %1840 = vmatpush1.msra.mxu0 0.0
    %1841 = vmatprep.subr.mxu0 0.0
    %1842 = vmatpush1.msra.mxu0 0.0
    %1843 = vmatprep.subr.mxu0 0.0
    %1844 = vmatpush1.msra.mxu0 0.0
    %1845 = vmatprep.subr.mxu0 0.0
    %1846 = vmatpush1.msra.mxu0 0.0
    %1847 = vmatprep.mubr.f32.mxu0 0.0
    %v1848 = vand.u32 %v1130, 4294901760
    %v1849 = vsub.f32 %v1130, %v1848
    %1850 = vmatmul.mubr.f32.gmra.mrb[0].mxu0 %v1849
    %v1851 = vpop.f32.mrb[0].mxu0
    %v1852 = vadd.f32 %v1776, %v1851
    %v1853 = vpop.f32.mrb[0].mxu0
    %1854 = vdwg.mxu0
    %1855 = vmatprep.subr.mxu0 0.0
    %v1856 = vand.u32 %v1090, 4294901760
    %1857 = vmatpush1.msra.mxu0 %v1856
    %1858 = vmatprep.subr.mxu0 0.0
    %v1859 = vand.u32 %v1091, 4294901760
    %1860 = vmatpush1.msra.mxu0 %v1859
    %1861 = vmatprep.subr.mxu0 0.0
    %1862 = vmatpush1.msra.mxu0 0.0
    %1863 = vmatprep.subr.mxu0 0.0
    %1864 = vmatpush1.msra.mxu0 0.0
    %1865 = vmatprep.subr.mxu0 0.0
    %1866 = vmatpush1.msra.mxu0 0.0
    %1867 = vmatprep.subr.mxu0 0.0
    %1868 = vmatpush1.msra.mxu0 0.0
    %1869 = vmatprep.subr.mxu0 0.0
    %1870 = vmatpush1.msra.mxu0 0.0
    %1871 = vmatprep.subr.mxu0 0.0
    %1872 = vmatpush1.msra.mxu0 0.0
    %1873 = vmatprep.subr.mxu0 0.0
    %1874 = vmatpush1.msra.mxu0 0.0
    %1875 = vmatprep.subr.mxu0 0.0
    %1876 = vmatpush1.msra.mxu0 0.0
    %1877 = vmatprep.subr.mxu0 0.0
    %1878 = vmatpush1.msra.mxu0 0.0
    %1879 = vmatprep.subr.mxu0 0.0
    %1880 = vmatpush1.msra.mxu0 0.0
    %1881 = vmatprep.subr.mxu0 0.0
    %1882 = vmatpush1.msra.mxu0 0.0
    %1883 = vmatprep.subr.mxu0 0.0
    %1884 = vmatpush1.msra.mxu0 0.0
    %1885 = vmatprep.subr.mxu0 0.0
    %1886 = vmatpush1.msra.mxu0 0.0
    %1887 = vmatprep.subr.mxu0 0.0
    %1888 = vmatpush1.msra.mxu0 0.0
    %1889 = vmatprep.subr.mxu0 0.0
    %1890 = vmatpush1.msra.mxu0 0.0
    %1891 = vmatprep.subr.mxu0 0.0
    %1892 = vmatpush1.msra.mxu0 0.0
    %1893 = vmatprep.subr.mxu0 0.0
    %1894 = vmatpush1.msra.mxu0 0.0
    %1895 = vmatprep.subr.mxu0 0.0
    %1896 = vmatpush1.msra.mxu0 0.0
    %1897 = vmatprep.subr.mxu0 0.0
    %1898 = vmatpush1.msra.mxu0 0.0
    %1899 = vmatprep.subr.mxu0 0.0
    %1900 = vmatpush1.msra.mxu0 0.0
    %1901 = vmatprep.subr.mxu0 0.0
    %1902 = vmatpush1.msra.mxu0 0.0
    %1903 = vmatprep.subr.mxu0 0.0
    %1904 = vmatpush1.msra.mxu0 0.0
    %1905 = vmatprep.subr.mxu0 0.0
    %1906 = vmatpush1.msra.mxu0 0.0
    %1907 = vmatprep.subr.mxu0 0.0
    %1908 = vmatpush1.msra.mxu0 0.0
    %1909 = vmatprep.subr.mxu0 0.0
    %1910 = vmatpush1.msra.mxu0 0.0
    %1911 = vmatprep.subr.mxu0 0.0
    %1912 = vmatpush1.msra.mxu0 0.0
    %1913 = vmatprep.subr.mxu0 0.0
    %1914 = vmatpush1.msra.mxu0 0.0
    %1915 = vmatprep.subr.mxu0 0.0
    %1916 = vmatpush1.msra.mxu0 0.0
    %1917 = vmatprep.subr.mxu0 0.0
    %1918 = vmatpush1.msra.mxu0 0.0
    %1919 = vmatprep.subr.mxu0 0.0
    %1920 = vmatpush1.msra.mxu0 0.0
    %1921 = vmatprep.mubr.f32.mxu0 0.0
    %v1922 = vand.u32 %v1130, 4294901760
    %v1923 = vsub.f32 %v1130, %v1922
    %v1924 = vand.u32 %v1923, 4294901760
    %1925 = vmatmul.mubr.f32.gmra.mrb[0].mxu0 %v1924
    %v1926 = vpop.f32.mrb[0].mxu0
    %v1927 = vadd.f32 %v1852, %v1926
    %v1928 = vpop.f32.mrb[0].mxu0
    %1929 = vdwg.mxu0
    %1930 = vmatprep.subr.mxu0 0.0
    %v1931 = vand.u32 %v1090, 4294901760
    %v1932 = vsub.f32 %v1090, %v1931
    %v1933 = vand.u32 %v1932, 4294901760
    %1934 = vmatpush1.msra.mxu0 %v1933
    %1935 = vmatprep.subr.mxu0 0.0
    %v1936 = vand.u32 %v1091, 4294901760
    %v1937 = vsub.f32 %v1091, %v1936
    %v1938 = vand.u32 %v1937, 4294901760
    %1939 = vmatpush1.msra.mxu0 %v1938
    %1940 = vmatprep.subr.mxu0 0.0
    %1941 = vmatpush1.msra.mxu0 0.0
    %1942 = vmatprep.subr.mxu0 0.0
    %1943 = vmatpush1.msra.mxu0 0.0
    %1944 = vmatprep.subr.mxu0 0.0
    %1945 = vmatpush1.msra.mxu0 0.0
    %1946 = vmatprep.subr.mxu0 0.0
    %1947 = vmatpush1.msra.mxu0 0.0
    %1948 = vmatprep.subr.mxu0 0.0
    %1949 = vmatpush1.msra.mxu0 0.0
    %1950 = vmatprep.subr.mxu0 0.0
    %1951 = vmatpush1.msra.mxu0 0.0
    %1952 = vmatprep.subr.mxu0 0.0
    %1953 = vmatpush1.msra.mxu0 0.0
    %1954 = vmatprep.subr.mxu0 0.0
    %1955 = vmatpush1.msra.mxu0 0.0
    %1956 = vmatprep.subr.mxu0 0.0
    %1957 = vmatpush1.msra.mxu0 0.0
    %1958 = vmatprep.subr.mxu0 0.0
    %1959 = vmatpush1.msra.mxu0 0.0
    %1960 = vmatprep.subr.mxu0 0.0
    %1961 = vmatpush1.msra.mxu0 0.0
    %1962 = vmatprep.subr.mxu0 0.0
    %1963 = vmatpush1.msra.mxu0 0.0
    %1964 = vmatprep.subr.mxu0 0.0
    %1965 = vmatpush1.msra.mxu0 0.0
    %1966 = vmatprep.subr.mxu0 0.0
    %1967 = vmatpush1.msra.mxu0 0.0
    %1968 = vmatprep.subr.mxu0 0.0
    %1969 = vmatpush1.msra.mxu0 0.0
    %1970 = vmatprep.subr.mxu0 0.0
    %1971 = vmatpush1.msra.mxu0 0.0
    %1972 = vmatprep.subr.mxu0 0.0
    %1973 = vmatpush1.msra.mxu0 0.0
    %1974 = vmatprep.subr.mxu0 0.0
    %1975 = vmatpush1.msra.mxu0 0.0
    %1976 = vmatprep.subr.mxu0 0.0
    %1977 = vmatpush1.msra.mxu0 0.0
    %1978 = vmatprep.subr.mxu0 0.0
    %1979 = vmatpush1.msra.mxu0 0.0
    %1980 = vmatprep.subr.mxu0 0.0
    %1981 = vmatpush1.msra.mxu0 0.0
    %1982 = vmatprep.subr.mxu0 0.0
    %1983 = vmatpush1.msra.mxu0 0.0
    %1984 = vmatprep.subr.mxu0 0.0
    %1985 = vmatpush1.msra.mxu0 0.0
    %1986 = vmatprep.subr.mxu0 0.0
    %1987 = vmatpush1.msra.mxu0 0.0
    %1988 = vmatprep.subr.mxu0 0.0
    %1989 = vmatpush1.msra.mxu0 0.0
    %1990 = vmatprep.subr.mxu0 0.0
    %1991 = vmatpush1.msra.mxu0 0.0
    %1992 = vmatprep.subr.mxu0 0.0
    %1993 = vmatpush1.msra.mxu0 0.0
    %1994 = vmatprep.subr.mxu0 0.0
    %1995 = vmatpush1.msra.mxu0 0.0
    %1996 = vmatprep.subr.mxu0 0.0
    %1997 = vmatpush1.msra.mxu0 0.0
    %1998 = vmatprep.subr.mxu0 0.0
    %1999 = vmatpush1.msra.mxu0 0.0
    %2000 = vmatprep.mubr.f32.mxu0 0.0
    %v2001 = vand.u32 %v1130, 4294901760
    %2002 = vmatmul.mubr.f32.gmra.mrb[0].mxu0 %v2001
    %v2003 = vpop.f32.mrb[0].mxu0
    %v2004 = vadd.f32 %v1927, %v2003
    %v2005 = vpop.f32.mrb[0].mxu0
    %2006 = vdwg.mxu0
    %2007 = vmatprep.subr.mxu0 0.0
    %v2008 = vand.u32 %v1090, 4294901760
    %2009 = vmatpush1.msra.mxu0 %v2008
    %2010 = vmatprep.subr.mxu0 0.0
    %v2011 = vand.u32 %v1091, 4294901760
    %2012 = vmatpush1.msra.mxu0 %v2011
    %2013 = vmatprep.subr.mxu0 0.0
    %2014 = vmatpush1.msra.mxu0 0.0
    %2015 = vmatprep.subr.mxu0 0.0
    %2016 = vmatpush1.msra.mxu0 0.0
    %2017 = vmatprep.subr.mxu0 0.0
    %2018 = vmatpush1.msra.mxu0 0.0
    %2019 = vmatprep.subr.mxu0 0.0
    %2020 = vmatpush1.msra.mxu0 0.0
    %2021 = vmatprep.subr.mxu0 0.0
    %2022 = vmatpush1.msra.mxu0 0.0
    %2023 = vmatprep.subr.mxu0 0.0
    %2024 = vmatpush1.msra.mxu0 0.0
    %2025 = vmatprep.subr.mxu0 0.0
    %2026 = vmatpush1.msra.mxu0 0.0
    %2027 = vmatprep.subr.mxu0 0.0
    %2028 = vmatpush1.msra.mxu0 0.0
    %2029 = vmatprep.subr.mxu0 0.0
    %2030 = vmatpush1.msra.mxu0 0.0
    %2031 = vmatprep.subr.mxu0 0.0
    %2032 = vmatpush1.msra.mxu0 0.0
    %2033 = vmatprep.subr.mxu0 0.0
    %2034 = vmatpush1.msra.mxu0 0.0
    %2035 = vmatprep.subr.mxu0 0.0
    %2036 = vmatpush1.msra.mxu0 0.0
    %2037 = vmatprep.subr.mxu0 0.0
    %2038 = vmatpush1.msra.mxu0 0.0
    %2039 = vmatprep.subr.mxu0 0.0
    %2040 = vmatpush1.msra.mxu0 0.0
    %2041 = vmatprep.subr.mxu0 0.0
    %2042 = vmatpush1.msra.mxu0 0.0
    %2043 = vmatprep.subr.mxu0 0.0
    %2044 = vmatpush1.msra.mxu0 0.0
    %2045 = vmatprep.subr.mxu0 0.0
    %2046 = vmatpush1.msra.mxu0 0.0
    %2047 = vmatprep.subr.mxu0 0.0
    %2048 = vmatpush1.msra.mxu0 0.0
    %2049 = vmatprep.subr.mxu0 0.0
    %2050 = vmatpush1.msra.mxu0 0.0
    %2051 = vmatprep.subr.mxu0 0.0
    %2052 = vmatpush1.msra.mxu0 0.0
    %2053 = vmatprep.subr.mxu0 0.0
    %2054 = vmatpush1.msra.mxu0 0.0
    %2055 = vmatprep.subr.mxu0 0.0
    %2056 = vmatpush1.msra.mxu0 0.0
    %2057 = vmatprep.subr.mxu0 0.0
    %2058 = vmatpush1.msra.mxu0 0.0
    %2059 = vmatprep.subr.mxu0 0.0
    %2060 = vmatpush1.msra.mxu0 0.0
    %2061 = vmatprep.subr.mxu0 0.0
    %2062 = vmatpush1.msra.mxu0 0.0
    %2063 = vmatprep.subr.mxu0 0.0
    %2064 = vmatpush1.msra.mxu0 0.0
    %2065 = vmatprep.subr.mxu0 0.0
    %2066 = vmatpush1.msra.mxu0 0.0
    %2067 = vmatprep.subr.mxu0 0.0
    %2068 = vmatpush1.msra.mxu0 0.0
    %2069 = vmatprep.subr.mxu0 0.0
    %2070 = vmatpush1.msra.mxu0 0.0
    %2071 = vmatprep.subr.mxu0 0.0
    %2072 = vmatpush1.msra.mxu0 0.0
    %2073 = vmatprep.mubr.f32.mxu0 0.0
    %v2074 = vand.u32 %v1130, 4294901760
    %2075 = vmatmul.mubr.f32.gmra.mrb[0].mxu0 %v2074
    %v2076 = vpop.f32.mrb[0].mxu0
    %v2077 = vadd.f32 %v2004, %v2076
    %v2078 = vpop.f32.mrb[0].mxu0
    %2079 = vdwg.mxu0
    %2081 = vset.pattern.permute.xlu0 0
    %2082 = vperm.xlu0 %2081, %v1612
    %v2083 = vpop.permute.xlu0 %2082
    %2086 = vset.pattern.permute.xlu0 0
    %2087 = vperm.xlu0 %2086, %v1618
    %v2088 = vpop.permute.xlu0 %2087
    %v2090 = vlaneseq
    %v2091 = vshrl.u32 %v2090, 7
    %v2092 = vsub.s32 0, %v2091
    %v2093 = vrot.slane %v2077, %v2092
    %v2094 = vadd.f32 %v2083, %v2093
    %v2095 = vadd.f32 %v2088, %v2093
    %2096 = vset.pattern.permute.xlu0 0
    %2097 = vperm.xlu0 %2096, %v560
    %v2098 = vpop.permute.xlu0 %2097
    %2100 = vset.pattern.permute.xlu0 0
    %2101 = vperm.xlu0 %2100, %v566
    %v2102 = vpop.permute.xlu0 %2101
    %v2104 = vlaneseq
    %v2105 = vshrl.u32 %v2104, 7
    %v2106 = vsub.s32 0, %v2105
    %v2107 = vrot.slane %v1090, %v2106
    %v2108 = vadd.f32 %v2098, %v2107
    %v2109 = vadd.f32 %v2102, %v2107
    %s2110 = sld [smem:[#allocation5]]
    %v2111 = vmax.f32 %v2108, 0.0
    %v2112 = vmax.f32 %v2109, 0.0
    %v2113 = vstv %s2110
    %v2114 = vmul.f32 %v2113, %v2111
    %v2115 = vmul.f32 %v2113, %v2112
    %v2116 = vadd.f32 %v2094, %v2114
    %v2117 = vadd.f32 %v2095, %v2115
    %2118 = vset.pattern.permute.xlu0 1
    %2119 = vperm.xlu0 %2118, %v560
    %v2120 = vpop.permute.xlu0 %2119
    %2122 = vset.pattern.permute.xlu0 1
    %2123 = vperm.xlu0 %2122, %v566
    %v2124 = vpop.permute.xlu0 %2123
    %v2126 = vlaneseq
    %v2127 = vshrl.u32 %v2126, 7
    %v2128 = vsub.s32 1, %v2127
    %v2129 = vrot.slane %v1090, %v2128
    %v2130 = vadd.f32 %v2120, %v2129
    %v2131 = vadd.f32 %v2124, %v2129
    %s2132 = sld [smem:[#allocation5 + $0x1]]
    %v2133 = vmax.f32 %v2130, 0.0
    %v2134 = vmax.f32 %v2131, 0.0
    %v2135 = vstv %s2132
    %v2136 = vmul.f32 %v2135, %v2133
    %v2137 = vmul.f32 %v2135, %v2134
    %v2138 = vadd.f32 %v2116, %v2136
    %v2139 = vadd.f32 %v2117, %v2137
    %2140 = vset.pattern.permute.xlu0 2
    %2141 = vperm.xlu0 %2140, %v560
    %v2142 = vpop.permute.xlu0 %2141
    %2144 = vset.pattern.permute.xlu0 2
    %2145 = vperm.xlu0 %2144, %v566
    %v2146 = vpop.permute.xlu0 %2145
    %v2148 = vlaneseq
    %v2149 = vshrl.u32 %v2148, 7
    %v2150 = vsub.s32 2, %v2149
    %v2151 = vrot.slane %v1090, %v2150
    %v2152 = vadd.f32 %v2142, %v2151
    %v2153 = vadd.f32 %v2146, %v2151
    %s2154 = sld [smem:[#allocation5 + $0x2]]
    %v2155 = vmax.f32 %v2152, 0.0
    %v2156 = vmax.f32 %v2153, 0.0
    %v2157 = vstv %s2154
    %v2158 = vmul.f32 %v2157, %v2155
    %v2159 = vmul.f32 %v2157, %v2156
    %v2160 = vadd.f32 %v2138, %v2158
    %v2161 = vadd.f32 %v2139, %v2159
    %2162 = vset.pattern.permute.xlu0 3
    %2163 = vperm.xlu0 %2162, %v560
    %v2164 = vpop.permute.xlu0 %2163
    %2166 = vset.pattern.permute.xlu0 3
    %2167 = vperm.xlu0 %2166, %v566
    %v2168 = vpop.permute.xlu0 %2167
    %v2170 = vlaneseq
    %v2171 = vshrl.u32 %v2170, 7
    %v2172 = vsub.s32 3, %v2171
    %v2173 = vrot.slane %v1090, %v2172
    %v2174 = vadd.f32 %v2164, %v2173
    %v2175 = vadd.f32 %v2168, %v2173
    %s2176 = sld [smem:[#allocation5 + $0x3]]
    %v2177 = vmax.f32 %v2174, 0.0
    %v2178 = vmax.f32 %v2175, 0.0
    %v2179 = vstv %s2176
    %v2180 = vmul.f32 %v2179, %v2177
    %v2181 = vmul.f32 %v2179, %v2178
    %v2182 = vadd.f32 %v2160, %v2180
    %v2183 = vadd.f32 %v2161, %v2181
    %2184 = vset.pattern.permute.xlu0 4
    %2185 = vperm.xlu0 %2184, %v560
    %v2186 = vpop.permute.xlu0 %2185
    %2188 = vset.pattern.permute.xlu0 4
    %2189 = vperm.xlu0 %2188, %v566
    %v2190 = vpop.permute.xlu0 %2189
    %v2192 = vlaneseq
    %v2193 = vshrl.u32 %v2192, 7
    %v2194 = vsub.s32 4, %v2193
    %v2195 = vrot.slane %v1090, %v2194
    %v2196 = vadd.f32 %v2186, %v2195
    %v2197 = vadd.f32 %v2190, %v2195
    %s2198 = sld [smem:[#allocation5 + $0x4]]
    %v2199 = vmax.f32 %v2196, 0.0
    %v2200 = vmax.f32 %v2197, 0.0
    %v2201 = vstv %s2198
    %v2202 = vmul.f32 %v2201, %v2199
    %v2203 = vmul.f32 %v2201, %v2200
    %v2204 = vadd.f32 %v2182, %v2202
    %v2205 = vadd.f32 %v2183, %v2203
    %2206 = vset.pattern.permute.xlu0 5
    %2207 = vperm.xlu0 %2206, %v560
    %v2208 = vpop.permute.xlu0 %2207
    %2210 = vset.pattern.permute.xlu0 5
    %2211 = vperm.xlu0 %2210, %v566
    %v2212 = vpop.permute.xlu0 %2211
    %v2214 = vlaneseq
    %v2215 = vshrl.u32 %v2214, 7
    %v2216 = vsub.s32 5, %v2215
    %v2217 = vrot.slane %v1090, %v2216
    %v2218 = vadd.f32 %v2208, %v2217
    %v2219 = vadd.f32 %v2212, %v2217
    %s2220 = sld [smem:[#allocation5 + $0x5]]
    %v2221 = vmax.f32 %v2218, 0.0
    %v2222 = vmax.f32 %v2219, 0.0
    %v2223 = vstv %s2220
    %v2224 = vmul.f32 %v2223, %v2221
    %v2225 = vmul.f32 %v2223, %v2222
    %v2226 = vadd.f32 %v2204, %v2224
    %v2227 = vadd.f32 %v2205, %v2225
    %2228 = vset.pattern.permute.xlu0 6
    %2229 = vperm.xlu0 %2228, %v560
    %v2230 = vpop.permute.xlu0 %2229
    %2232 = vset.pattern.permute.xlu0 6
    %2233 = vperm.xlu0 %2232, %v566
    %v2234 = vpop.permute.xlu0 %2233
    %v2236 = vlaneseq
    %v2237 = vshrl.u32 %v2236, 7
    %v2238 = vsub.s32 6, %v2237
    %v2239 = vrot.slane %v1090, %v2238
    %v2240 = vadd.f32 %v2230, %v2239
    %v2241 = vadd.f32 %v2234, %v2239
    %s2242 = sld [smem:[#allocation5 + $0x6]]
    %v2243 = vmax.f32 %v2240, 0.0
    %v2244 = vmax.f32 %v2241, 0.0
    %v2245 = vstv %s2242
    %v2246 = vmul.f32 %v2245, %v2243
    %v2247 = vmul.f32 %v2245, %v2244
    %v2248 = vadd.f32 %v2226, %v2246
    %v2249 = vadd.f32 %v2227, %v2247
    %2250 = vset.pattern.permute.xlu0 7
    %2251 = vperm.xlu0 %2250, %v560
    %v2252 = vpop.permute.xlu0 %2251
    %2254 = vset.pattern.permute.xlu0 7
    %2255 = vperm.xlu0 %2254, %v566
    %v2256 = vpop.permute.xlu0 %2255
    %v2258 = vlaneseq
    %v2259 = vshrl.u32 %v2258, 7
    %v2260 = vsub.s32 7, %v2259
    %v2261 = vrot.slane %v1090, %v2260
    %v2262 = vadd.f32 %v2252, %v2261
    %v2263 = vadd.f32 %v2256, %v2261
    %s2264 = sld [smem:[#allocation5 + $0x7]]
    %v2265 = vmax.f32 %v2262, 0.0
    %v2266 = vmax.f32 %v2263, 0.0
    %v2267 = vstv %s2264
    %v2268 = vmul.f32 %v2267, %v2265
    %v2269 = vmul.f32 %v2267, %v2266
    %v2270 = vadd.f32 %v2248, %v2268
    %v2271 = vadd.f32 %v2249, %v2269
    %v2272 = vsel %vm1119, %v2270, -1e+30
    %v2273 = vsel %vm1120, %v2271, -1e+30
    %v2274 = vld [vmem:[#allocation2] sm:$0xff]
    %v2275 = vld [vmem:[#allocation2 + $0x8] sm:$0xff]
    %v2276 = vsel %vm1122, %v2272, -inf
    %2277 = vmax.xlane.f32.xlu0 %v2276
    %v2278 = vpop.xlane.xlu0 %2277
    %v2279 = vsel %vm1122, %v2273, -inf
    %2280 = vmax.xlane.f32.xlu0 %v2279
    %v2281 = vpop.xlane.xlu0 %2280
    %v2282 = vmax.f32 %v2274, %v2278
    %v2283 = vmax.f32 %v2275, %v2281
    %v2284 = vsub.f32 %v2274, %v2282
    %v2285 = vsub.f32 %v2275, %v2283
    %v2286 = vmul.f32 %v2284, 1.442695
    %v2287 = vpow.pop %v2286
    %v2288 = vmul.f32 %v2285, 1.442695
    %v2289 = vpow.pop %v2288
    %2291 = vset.pattern.permute.xlu0 0
    %2292 = vperm.xlu0 %2291, %v2282
    %v2293 = vpop.permute.xlu0 %2292
    %2296 = vset.pattern.permute.xlu0 0
    %2297 = vperm.xlu0 %2296, %v2283
    %v2298 = vpop.permute.xlu0 %2297
    %v2300 = vsub.f32 %v2272, %v2293
    %v2301 = vsub.f32 %v2273, %v2298
    %v2302 = vmul.f32 %v2300, 1.442695
    %v2303 = vpow.pop %v2302
    %v2304 = vmul.f32 %v2301, 1.442695
    %v2305 = vpow.pop %v2304
    %v2306 = vld [vmem:[#allocation3] sm:$0xff]
    %v2307 = vld [vmem:[#allocation3 + $0x8] sm:$0xff]
    %v2308 = vmul.f32 %v2287, %v2306
    %v2309 = vmul.f32 %v2289, %v2307
    %v2310 = vsel %vm1122, %v2303, 0.0
    %2311 = vadd.xlane.f32.xlu0 %v2310
    %v2312 = vpop.xlane.xlu0 %2311
    %v2313 = vsel %vm1122, %v2305, 0.0
    %2314 = vadd.xlane.f32.xlu0 %v2313
    %v2315 = vpop.xlane.xlu0 %2314
    %v2316 = vadd.f32 %v2308, %v2312
    %v2317 = vadd.f32 %v2309, %v2315
    %vm2318 = vcmask 7168
    %2319 = vst.msk [vmem:[#allocation3] sm:$0xff] %vm2318, %v2316
    %2320 = vst.msk [vmem:[#allocation3 + $0x8] sm:$0xff] %vm2318, %v2317
    %v2321 = vld [vmem:[#allocation4] sm:$0xff]
    %v2322 = vld [vmem:[#allocation4 + $0x8] sm:$0xff]
    %2324 = vset.pattern.permute.xlu0 0
    %2325 = vperm.xlu0 %2324, %v2287
    %v2326 = vpop.permute.xlu0 %2325
    %2329 = vset.pattern.permute.xlu0 0
    %2330 = vperm.xlu0 %2329, %v2289
    %v2331 = vpop.permute.xlu0 %2330
    %v2333 = vmul.f32 %v2326, %v2321
    %v2334 = vmul.f32 %v2331, %v2322
    %v2336 = vsel %vm1122, %v2303, 0
    %v2339 = vsel %vm1122, %v2305, 0
    %2341 = vmatprep.subr.mxu0 0.0
    %v2342 = vand.u32 %v1065, 4294901760
    %2343 = vmatpush1.msra.mxu0 %v2342
    %2344 = vmatprep.subr.mxu0 0.0
    %v2345 = vand.u32 %v1071, 4294901760
    %2346 = vmatpush1.msra.mxu0 %v2345
    %2347 = vmatprep.subr.mxu0 0.0
    %2348 = vmatpush1.msra.mxu0 0.0
    %2349 = vmatprep.subr.mxu0 0.0
    %2350 = vmatpush1.msra.mxu0 0.0
    %2351 = vmatprep.subr.mxu0 0.0
    %2352 = vmatpush1.msra.mxu0 0.0
    %2353 = vmatprep.subr.mxu0 0.0
    %2354 = vmatpush1.msra.mxu0 0.0
    %2355 = vmatprep.subr.mxu0 0.0
    %2356 = vmatpush1.msra.mxu0 0.0
    %2357 = vmatprep.subr.mxu0 0.0
    %2358 = vmatpush1.msra.mxu0 0.0
    %2359 = vmatprep.subr.mxu0 0.0
    %2360 = vmatpush1.msra.mxu0 0.0
    %2361 = vmatprep.subr.mxu0 0.0
    %2362 = vmatpush1.msra.mxu0 0.0
    %2363 = vmatprep.subr.mxu0 0.0
    %2364 = vmatpush1.msra.mxu0 0.0
    %2365 = vmatprep.subr.mxu0 0.0
    %2366 = vmatpush1.msra.mxu0 0.0
    %2367 = vmatprep.subr.mxu0 0.0
    %2368 = vmatpush1.msra.mxu0 0.0
    %2369 = vmatprep.subr.mxu0 0.0
    %2370 = vmatpush1.msra.mxu0 0.0
    %2371 = vmatprep.subr.mxu0 0.0
    %2372 = vmatpush1.msra.mxu0 0.0
    %2373 = vmatprep.subr.mxu0 0.0
    %2374 = vmatpush1.msra.mxu0 0.0
    %2375 = vmatprep.subr.mxu0 0.0
    %2376 = vmatpush1.msra.mxu0 0.0
    %2377 = vmatprep.subr.mxu0 0.0
    %2378 = vmatpush1.msra.mxu0 0.0
    %2379 = vmatprep.subr.mxu0 0.0
    %2380 = vmatpush1.msra.mxu0 0.0
    %2381 = vmatprep.subr.mxu0 0.0
    %2382 = vmatpush1.msra.mxu0 0.0
    %2383 = vmatprep.subr.mxu0 0.0
    %2384 = vmatpush1.msra.mxu0 0.0
    %2385 = vmatprep.subr.mxu0 0.0
    %2386 = vmatpush1.msra.mxu0 0.0
    %2387 = vmatprep.subr.mxu0 0.0
    %2388 = vmatpush1.msra.mxu0 0.0
    %2389 = vmatprep.subr.mxu0 0.0
    %2390 = vmatpush1.msra.mxu0 0.0
    %2391 = vmatprep.subr.mxu0 0.0
    %2392 = vmatpush1.msra.mxu0 0.0
    %2393 = vmatprep.subr.mxu0 0.0
    %2394 = vmatpush1.msra.mxu0 0.0
    %2395 = vmatprep.subr.mxu0 0.0
    %2396 = vmatpush1.msra.mxu0 0.0
    %2397 = vmatprep.subr.mxu0 0.0
    %2398 = vmatpush1.msra.mxu0 0.0
    %2399 = vmatprep.subr.mxu0 0.0
    %2400 = vmatpush1.msra.mxu0 0.0
    %2401 = vmatprep.subr.mxu0 0.0
    %2402 = vmatpush1.msra.mxu0 0.0
    %2403 = vmatprep.subr.mxu0 0.0
    %2404 = vmatpush1.msra.mxu0 0.0
    %2405 = vmatprep.subr.mxu0 0.0
    %2406 = vmatpush1.msra.mxu0 0.0
    %2407 = vmatprep.mubr.f32.mxu0 0.0
    %v2408 = vand.u32 %v2336, 4294901760
    %v2409 = vsub.f32 %v2336, %v2408
    %v2410 = vand.u32 %v2409, 4294901760
    %v2411 = vsub.f32 %v2409, %v2410
    %v2412 = vand.u32 %v2411, 4294901760
    %2413 = vmatmul.mubr.f32.gmra.mrb[0].mxu0 %v2412
    %v2414 = vpop.f32.mrb[0].mxu0
    %v2415 = vadd.f32 0.0, %v2414
    %v2416 = vpop.f32.mrb[0].mxu0
    %2417 = vmatprep.mubr.f32.mxu0 0.0
    %v2418 = vand.u32 %v2339, 4294901760
    %v2419 = vsub.f32 %v2339, %v2418
    %v2420 = vand.u32 %v2419, 4294901760
    %v2421 = vsub.f32 %v2419, %v2420
    %v2422 = vand.u32 %v2421, 4294901760
    %2423 = vmatmul.mubr.f32.gmra.mrb[0].mxu0 %v2422
    %v2424 = vpop.f32.mrb[0].mxu0
    %v2425 = vadd.f32 0.0, %v2424
    %v2426 = vpop.f32.mrb[0].mxu0
    %2427 = vdwg.mxu0
    %2428 = vmatprep.subr.mxu0 0.0
    %v2429 = vand.u32 %v1065, 4294901760
    %v2430 = vsub.f32 %v1065, %v2429
    %v2431 = vand.u32 %v2430, 4294901760
    %v2432 = vsub.f32 %v2430, %v2431
    %v2433 = vand.u32 %v2432, 4294901760
    %2434 = vmatpush1.msra.mxu0 %v2433
    %2435 = vmatprep.subr.mxu0 0.0
    %v2436 = vand.u32 %v1071, 4294901760
    %v2437 = vsub.f32 %v1071, %v2436
    %v2438 = vand.u32 %v2437, 4294901760
    %v2439 = vsub.f32 %v2437, %v2438
    %v2440 = vand.u32 %v2439, 4294901760
    %2441 = vmatpush1.msra.mxu0 %v2440
    %2442 = vmatprep.subr.mxu0 0.0
    %2443 = vmatpush1.msra.mxu0 0.0
    %2444 = vmatprep.subr.mxu0 0.0
    %2445 = vmatpush1.msra.mxu0 0.0
    %2446 = vmatprep.subr.mxu0 0.0
    %2447 = vmatpush1.msra.mxu0 0.0
    %2448 = vmatprep.subr.mxu0 0.0
    %2449 = vmatpush1.msra.mxu0 0.0
    %2450 = vmatprep.subr.mxu0 0.0
    %2451 = vmatpush1.msra.mxu0 0.0
    %2452 = vmatprep.subr.mxu0 0.0
    %2453 = vmatpush1.msra.mxu0 0.0
    %2454 = vmatprep.subr.mxu0 0.0
    %2455 = vmatpush1.msra.mxu0 0.0
    %2456 = vmatprep.subr.mxu0 0.0
    %2457 = vmatpush1.msra.mxu0 0.0
    %2458 = vmatprep.subr.mxu0 0.0
    %2459 = vmatpush1.msra.mxu0 0.0
    %2460 = vmatprep.subr.mxu0 0.0
    %2461 = vmatpush1.msra.mxu0 0.0
    %2462 = vmatprep.subr.mxu0 0.0
    %2463 = vmatpush1.msra.mxu0 0.0
    %2464 = vmatprep.subr.mxu0 0.0
    %2465 = vmatpush1.msra.mxu0 0.0
    %2466 = vmatprep.subr.mxu0 0.0
    %2467 = vmatpush1.msra.mxu0 0.0
    %2468 = vmatprep.subr.mxu0 0.0
    %2469 = vmatpush1.msra.mxu0 0.0
    %2470 = vmatprep.subr.mxu0 0.0
    %2471 = vmatpush1.msra.mxu0 0.0
    %2472 = vmatprep.subr.mxu0 0.0
    %2473 = vmatpush1.msra.mxu0 0.0
    %2474 = vmatprep.subr.mxu0 0.0
    %2475 = vmatpush1.msra.mxu0 0.0
    %2476 = vmatprep.subr.mxu0 0.0
    %2477 = vmatpush1.msra.mxu0 0.0
    %2478 = vmatprep.subr.mxu0 0.0
    %2479 = vmatpush1.msra.mxu0 0.0
    %2480 = vmatprep.subr.mxu0 0.0
    %2481 = vmatpush1.msra.mxu0 0.0
    %2482 = vmatprep.subr.mxu0 0.0
    %2483 = vmatpush1.msra.mxu0 0.0
    %2484 = vmatprep.subr.mxu0 0.0
    %2485 = vmatpush1.msra.mxu0 0.0
    %2486 = vmatprep.subr.mxu0 0.0
    %2487 = vmatpush1.msra.mxu0 0.0
    %2488 = vmatprep.subr.mxu0 0.0
    %2489 = vmatpush1.msra.mxu0 0.0
    %2490 = vmatprep.subr.mxu0 0.0
    %2491 = vmatpush1.msra.mxu0 0.0
    %2492 = vmatprep.subr.mxu0 0.0
    %2493 = vmatpush1.msra.mxu0 0.0
    %2494 = vmatprep.subr.mxu0 0.0
    %2495 = vmatpush1.msra.mxu0 0.0
    %2496 = vmatprep.subr.mxu0 0.0
    %2497 = vmatpush1.msra.mxu0 0.0
    %2498 = vmatprep.subr.mxu0 0.0
    %2499 = vmatpush1.msra.mxu0 0.0
    %2500 = vmatprep.subr.mxu0 0.0
    %2501 = vmatpush1.msra.mxu0 0.0
    %2502 = vmatprep.mubr.f32.mxu0 0.0
    %v2503 = vand.u32 %v2336, 4294901760
    %2504 = vmatmul.mubr.f32.gmra.mrb[0].mxu0 %v2503
    %v2505 = vpop.f32.mrb[0].mxu0
    %v2506 = vadd.f32 %v2415, %v2505
    %v2507 = vpop.f32.mrb[0].mxu0
    %2508 = vmatprep.mubr.f32.mxu0 0.0
    %v2509 = vand.u32 %v2339, 4294901760
    %2510 = vmatmul.mubr.f32.gmra.mrb[0].mxu0 %v2509
    %v2511 = vpop.f32.mrb[0].mxu0
    %v2512 = vadd.f32 %v2425, %v2511
    %v2513 = vpop.f32.mrb[0].mxu0
    %2514 = vdwg.mxu0
    %2515 = vmatprep.subr.mxu0 0.0
    %v2516 = vand.u32 %v1065, 4294901760
    %v2517 = vsub.f32 %v1065, %v2516
    %2518 = vmatpush1.msra.mxu0 %v2517
    %2519 = vmatprep.subr.mxu0 0.0
    %v2520 = vand.u32 %v1071, 4294901760
    %v2521 = vsub.f32 %v1071, %v2520
    %2522 = vmatpush1.msra.mxu0 %v2521
    %2523 = vmatprep.subr.mxu0 0.0
    %2524 = vmatpush1.msra.mxu0 0.0
    %2525 = vmatprep.subr.mxu0 0.0
    %2526 = vmatpush1.msra.mxu0 0.0
    %2527 = vmatprep.subr.mxu0 0.0
    %2528 = vmatpush1.msra.mxu0 0.0
    %2529 = vmatprep.subr.mxu0 0.0
    %2530 = vmatpush1.msra.mxu0 0.0
    %2531 = vmatprep.subr.mxu0 0.0
    %2532 = vmatpush1.msra.mxu0 0.0
    %2533 = vmatprep.subr.mxu0 0.0
    %2534 = vmatpush1.msra.mxu0 0.0
    %2535 = vmatprep.subr.mxu0 0.0
    %2536 = vmatpush1.msra.mxu0 0.0
    %2537 = vmatprep.subr.mxu0 0.0
    %2538 = vmatpush1.msra.mxu0 0.0
    %2539 = vmatprep.subr.mxu0 0.0
    %2540 = vmatpush1.msra.mxu0 0.0
    %2541 = vmatprep.subr.mxu0 0.0
    %2542 = vmatpush1.msra.mxu0 0.0
    %2543 = vmatprep.subr.mxu0 0.0
    %2544 = vmatpush1.msra.mxu0 0.0
    %2545 = vmatprep.subr.mxu0 0.0
    %2546 = vmatpush1.msra.mxu0 0.0
    %2547 = vmatprep.subr.mxu0 0.0
    %2548 = vmatpush1.msra.mxu0 0.0
    %2549 = vmatprep.subr.mxu0 0.0
    %2550 = vmatpush1.msra.mxu0 0.0
    %2551 = vmatprep.subr.mxu0 0.0
    %2552 = vmatpush1.msra.mxu0 0.0
    %2553 = vmatprep.subr.mxu0 0.0
    %2554 = vmatpush1.msra.mxu0 0.0
    %2555 = vmatprep.subr.mxu0 0.0
    %2556 = vmatpush1.msra.mxu0 0.0
    %2557 = vmatprep.subr.mxu0 0.0
    %2558 = vmatpush1.msra.mxu0 0.0
    %2559 = vmatprep.subr.mxu0 0.0
    %2560 = vmatpush1.msra.mxu0 0.0
    %2561 = vmatprep.subr.mxu0 0.0
    %2562 = vmatpush1.msra.mxu0 0.0
    %2563 = vmatprep.subr.mxu0 0.0
    %2564 = vmatpush1.msra.mxu0 0.0
    %2565 = vmatprep.subr.mxu0 0.0
    %2566 = vmatpush1.msra.mxu0 0.0
    %2567 = vmatprep.subr.mxu0 0.0
    %2568 = vmatpush1.msra.mxu0 0.0
    %2569 = vmatprep.subr.mxu0 0.0
    %2570 = vmatpush1.msra.mxu0 0.0
    %2571 = vmatprep.subr.mxu0 0.0
    %2572 = vmatpush1.msra.mxu0 0.0
    %2573 = vmatprep.subr.mxu0 0.0
    %2574 = vmatpush1.msra.mxu0 0.0
    %2575 = vmatprep.subr.mxu0 0.0
    %2576 = vmatpush1.msra.mxu0 0.0
    %2577 = vmatprep.subr.mxu0 0.0
    %2578 = vmatpush1.msra.mxu0 0.0
    %2579 = vmatprep.subr.mxu0 0.0
    %2580 = vmatpush1.msra.mxu0 0.0
    %2581 = vmatprep.subr.mxu0 0.0
    %2582 = vmatpush1.msra.mxu0 0.0
    %2583 = vmatprep.mubr.f32.mxu0 0.0
    %v2584 = vand.u32 %v2336, 4294901760
    %v2585 = vsub.f32 %v2336, %v2584
    %2586 = vmatmul.mubr.f32.gmra.mrb[0].mxu0 %v2585
    %v2587 = vpop.f32.mrb[0].mxu0
    %v2588 = vadd.f32 %v2506, %v2587
    %v2589 = vpop.f32.mrb[0].mxu0
    %2590 = vmatprep.mubr.f32.mxu0 0.0
    %v2591 = vand.u32 %v2339, 4294901760
    %v2592 = vsub.f32 %v2339, %v2591
    %2593 = vmatmul.mubr.f32.gmra.mrb[0].mxu0 %v2592
    %v2594 = vpop.f32.mrb[0].mxu0
    %v2595 = vadd.f32 %v2512, %v2594
    %v2596 = vpop.f32.mrb[0].mxu0
    %2597 = vdwg.mxu0
    %2598 = vmatprep.subr.mxu0 0.0
    %v2599 = vand.u32 %v1065, 4294901760
    %2600 = vmatpush1.msra.mxu0 %v2599
    %2601 = vmatprep.subr.mxu0 0.0
    %v2602 = vand.u32 %v1071, 4294901760
    %2603 = vmatpush1.msra.mxu0 %v2602
    %2604 = vmatprep.subr.mxu0 0.0
    %2605 = vmatpush1.msra.mxu0 0.0
    %2606 = vmatprep.subr.mxu0 0.0
    %2607 = vmatpush1.msra.mxu0 0.0
    %2608 = vmatprep.subr.mxu0 0.0
    %2609 = vmatpush1.msra.mxu0 0.0
    %2610 = vmatprep.subr.mxu0 0.0
    %2611 = vmatpush1.msra.mxu0 0.0
    %2612 = vmatprep.subr.mxu0 0.0
    %2613 = vmatpush1.msra.mxu0 0.0
    %2614 = vmatprep.subr.mxu0 0.0
    %2615 = vmatpush1.msra.mxu0 0.0
    %2616 = vmatprep.subr.mxu0 0.0
    %2617 = vmatpush1.msra.mxu0 0.0
    %2618 = vmatprep.subr.mxu0 0.0
    %2619 = vmatpush1.msra.mxu0 0.0
    %2620 = vmatprep.subr.mxu0 0.0
    %2621 = vmatpush1.msra.mxu0 0.0
    %2622 = vmatprep.subr.mxu0 0.0
    %2623 = vmatpush1.msra.mxu0 0.0
    %2624 = vmatprep.subr.mxu0 0.0
    %2625 = vmatpush1.msra.mxu0 0.0
    %2626 = vmatprep.subr.mxu0 0.0
    %2627 = vmatpush1.msra.mxu0 0.0
    %2628 = vmatprep.subr.mxu0 0.0
    %2629 = vmatpush1.msra.mxu0 0.0
    %2630 = vmatprep.subr.mxu0 0.0
    %2631 = vmatpush1.msra.mxu0 0.0
    %2632 = vmatprep.subr.mxu0 0.0
    %2633 = vmatpush1.msra.mxu0 0.0
    %2634 = vmatprep.subr.mxu0 0.0
    %2635 = vmatpush1.msra.mxu0 0.0
    %2636 = vmatprep.subr.mxu0 0.0
    %2637 = vmatpush1.msra.mxu0 0.0
    %2638 = vmatprep.subr.mxu0 0.0
    %2639 = vmatpush1.msra.mxu0 0.0
    %2640 = vmatprep.subr.mxu0 0.0
    %2641 = vmatpush1.msra.mxu0 0.0
    %2642 = vmatprep.subr.mxu0 0.0
    %2643 = vmatpush1.msra.mxu0 0.0
    %2644 = vmatprep.subr.mxu0 0.0
    %2645 = vmatpush1.msra.mxu0 0.0
    %2646 = vmatprep.subr.mxu0 0.0
    %2647 = vmatpush1.msra.mxu0 0.0
    %2648 = vmatprep.subr.mxu0 0.0
    %2649 = vmatpush1.msra.mxu0 0.0
    %2650 = vmatprep.subr.mxu0 0.0
    %2651 = vmatpush1.msra.mxu0 0.0
    %2652 = vmatprep.subr.mxu0 0.0
    %2653 = vmatpush1.msra.mxu0 0.0
    %2654 = vmatprep.subr.mxu0 0.0
    %2655 = vmatpush1.msra.mxu0 0.0
    %2656 = vmatprep.subr.mxu0 0.0
    %2657 = vmatpush1.msra.mxu0 0.0
    %2658 = vmatprep.subr.mxu0 0.0
    %2659 = vmatpush1.msra.mxu0 0.0
    %2660 = vmatprep.subr.mxu0 0.0
    %2661 = vmatpush1.msra.mxu0 0.0
    %2662 = vmatprep.subr.mxu0 0.0
    %2663 = vmatpush1.msra.mxu0 0.0
    %2664 = vmatprep.mubr.f32.mxu0 0.0
    %v2665 = vand.u32 %v2336, 4294901760
    %v2666 = vsub.f32 %v2336, %v2665
    %v2667 = vand.u32 %v2666, 4294901760
    %2668 = vmatmul.mubr.f32.gmra.mrb[0].mxu0 %v2667
    %v2669 = vpop.f32.mrb[0].mxu0
    %v2670 = vadd.f32 %v2588, %v2669
    %v2671 = vpop.f32.mrb[0].mxu0
    %2672 = vmatprep.mubr.f32.mxu0 0.0
    %v2673 = vand.u32 %v2339, 4294901760
    %v2674 = vsub.f32 %v2339, %v2673
    %v2675 = vand.u32 %v2674, 4294901760
    %2676 = vmatmul.mubr.f32.gmra.mrb[0].mxu0 %v2675
    %v2677 = vpop.f32.mrb[0].mxu0
    %v2678 = vadd.f32 %v2595, %v2677
    %v2679 = vpop.f32.mrb[0].mxu0
    %2680 = vdwg.mxu0
    %2681 = vmatprep.subr.mxu0 0.0
    %v2682 = vand.u32 %v1065, 4294901760
    %v2683 = vsub.f32 %v1065, %v2682
    %v2684 = vand.u32 %v2683, 4294901760
    %2685 = vmatpush1.msra.mxu0 %v2684
    %2686 = vmatprep.subr.mxu0 0.0
    %v2687 = vand.u32 %v1071, 4294901760
    %v2688 = vsub.f32 %v1071, %v2687
    %v2689 = vand.u32 %v2688, 4294901760
    %2690 = vmatpush1.msra.mxu0 %v2689
    %2691 = vmatprep.subr.mxu0 0.0
    %2692 = vmatpush1.msra.mxu0 0.0
    %2693 = vmatprep.subr.mxu0 0.0
    %2694 = vmatpush1.msra.mxu0 0.0
    %2695 = vmatprep.subr.mxu0 0.0
    %2696 = vmatpush1.msra.mxu0 0.0
    %2697 = vmatprep.subr.mxu0 0.0
    %2698 = vmatpush1.msra.mxu0 0.0
    %2699 = vmatprep.subr.mxu0 0.0
    %2700 = vmatpush1.msra.mxu0 0.0
    %2701 = vmatprep.subr.mxu0 0.0
    %2702 = vmatpush1.msra.mxu0 0.0
    %2703 = vmatprep.subr.mxu0 0.0
    %2704 = vmatpush1.msra.mxu0 0.0
    %2705 = vmatprep.subr.mxu0 0.0
    %2706 = vmatpush1.msra.mxu0 0.0
    %2707 = vmatprep.subr.mxu0 0.0
    %2708 = vmatpush1.msra.mxu0 0.0
    %2709 = vmatprep.subr.mxu0 0.0
    %2710 = vmatpush1.msra.mxu0 0.0
    %2711 = vmatprep.subr.mxu0 0.0
    %2712 = vmatpush1.msra.mxu0 0.0
    %2713 = vmatprep.subr.mxu0 0.0
    %2714 = vmatpush1.msra.mxu0 0.0
    %2715 = vmatprep.subr.mxu0 0.0
    %2716 = vmatpush1.msra.mxu0 0.0
    %2717 = vmatprep.subr.mxu0 0.0
    %2718 = vmatpush1.msra.mxu0 0.0
    %2719 = vmatprep.subr.mxu0 0.0
    %2720 = vmatpush1.msra.mxu0 0.0
    %2721 = vmatprep.subr.mxu0 0.0
    %2722 = vmatpush1.msra.mxu0 0.0
    %2723 = vmatprep.subr.mxu0 0.0
    %2724 = vmatpush1.msra.mxu0 0.0
    %2725 = vmatprep.subr.mxu0 0.0
    %2726 = vmatpush1.msra.mxu0 0.0
    %2727 = vmatprep.subr.mxu0 0.0
    %2728 = vmatpush1.msra.mxu0 0.0
    %2729 = vmatprep.subr.mxu0 0.0
    %2730 = vmatpush1.msra.mxu0 0.0
    %2731 = vmatprep.subr.mxu0 0.0
    %2732 = vmatpush1.msra.mxu0 0.0
    %2733 = vmatprep.subr.mxu0 0.0
    %2734 = vmatpush1.msra.mxu0 0.0
    %2735 = vmatprep.subr.mxu0 0.0
    %2736 = vmatpush1.msra.mxu0 0.0
    %2737 = vmatprep.subr.mxu0 0.0
    %2738 = vmatpush1.msra.mxu0 0.0
    %2739 = vmatprep.subr.mxu0 0.0
    %2740 = vmatpush1.msra.mxu0 0.0
    %2741 = vmatprep.subr.mxu0 0.0
    %2742 = vmatpush1.msra.mxu0 0.0
    %2743 = vmatprep.subr.mxu0 0.0
    %2744 = vmatpush1.msra.mxu0 0.0
    %2745 = vmatprep.subr.mxu0 0.0
    %2746 = vmatpush1.msra.mxu0 0.0
    %2747 = vmatprep.subr.mxu0 0.0
    %2748 = vmatpush1.msra.mxu0 0.0
    %2749 = vmatprep.subr.mxu0 0.0
    %2750 = vmatpush1.msra.mxu0 0.0
    %2751 = vmatprep.mubr.f32.mxu0 0.0
    %v2752 = vand.u32 %v2336, 4294901760
    %2753 = vmatmul.mubr.f32.gmra.mrb[0].mxu0 %v2752
    %v2754 = vpop.f32.mrb[0].mxu0
    %v2755 = vadd.f32 %v2670, %v2754
    %v2756 = vpop.f32.mrb[0].mxu0
    %2757 = vmatprep.mubr.f32.mxu0 0.0
    %v2758 = vand.u32 %v2339, 4294901760
    %2759 = vmatmul.mubr.f32.gmra.mrb[0].mxu0 %v2758
    %v2760 = vpop.f32.mrb[0].mxu0
    %v2761 = vadd.f32 %v2678, %v2760
    %v2762 = vpop.f32.mrb[0].mxu0
    %2763 = vdwg.mxu0
    %2764 = vmatprep.subr.mxu0 0.0
    %v2765 = vand.u32 %v1065, 4294901760
    %2766 = vmatpush1.msra.mxu0 %v2765
    %2767 = vmatprep.subr.mxu0 0.0
    %v2768 = vand.u32 %v1071, 4294901760
    %2769 = vmatpush1.msra.mxu0 %v2768
    %2770 = vmatprep.subr.mxu0 0.0
    %2771 = vmatpush1.msra.mxu0 0.0
    %2772 = vmatprep.subr.mxu0 0.0
    %2773 = vmatpush1.msra.mxu0 0.0
    %2774 = vmatprep.subr.mxu0 0.0
    %2775 = vmatpush1.msra.mxu0 0.0
    %2776 = vmatprep.subr.mxu0 0.0
    %2777 = vmatpush1.msra.mxu0 0.0
    %2778 = vmatprep.subr.mxu0 0.0
    %2779 = vmatpush1.msra.mxu0 0.0
    %2780 = vmatprep.subr.mxu0 0.0
    %2781 = vmatpush1.msra.mxu0 0.0
    %2782 = vmatprep.subr.mxu0 0.0
    %2783 = vmatpush1.msra.mxu0 0.0
    %2784 = vmatprep.subr.mxu0 0.0
    %2785 = vmatpush1.msra.mxu0 0.0
    %2786 = vmatprep.subr.mxu0 0.0
    %2787 = vmatpush1.msra.mxu0 0.0
    %2788 = vmatprep.subr.mxu0 0.0
    %2789 = vmatpush1.msra.mxu0 0.0
    %2790 = vmatprep.subr.mxu0 0.0
    %2791 = vmatpush1.msra.mxu0 0.0
    %2792 = vmatprep.subr.mxu0 0.0
    %2793 = vmatpush1.msra.mxu0 0.0
    %2794 = vmatprep.subr.mxu0 0.0
    %2795 = vmatpush1.msra.mxu0 0.0
    %2796 = vmatprep.subr.mxu0 0.0
    %2797 = vmatpush1.msra.mxu0 0.0
    %2798 = vmatprep.subr.mxu0 0.0
    %2799 = vmatpush1.msra.mxu0 0.0
    %2800 = vmatprep.subr.mxu0 0.0
    %2801 = vmatpush1.msra.mxu0 0.0
    %2802 = vmatprep.subr.mxu0 0.0
    %2803 = vmatpush1.msra.mxu0 0.0
    %2804 = vmatprep.subr.mxu0 0.0
    %2805 = vmatpush1.msra.mxu0 0.0
    %2806 = vmatprep.subr.mxu0 0.0
    %2807 = vmatpush1.msra.mxu0 0.0
    %2808 = vmatprep.subr.mxu0 0.0
    %2809 = vmatpush1.msra.mxu0 0.0
    %2810 = vmatprep.subr.mxu0 0.0
    %2811 = vmatpush1.msra.mxu0 0.0
    %2812 = vmatprep.subr.mxu0 0.0
    %2813 = vmatpush1.msra.mxu0 0.0
    %2814 = vmatprep.subr.mxu0 0.0
    %2815 = vmatpush1.msra.mxu0 0.0
    %2816 = vmatprep.subr.mxu0 0.0
    %2817 = vmatpush1.msra.mxu0 0.0
    %2818 = vmatprep.subr.mxu0 0.0
    %2819 = vmatpush1.msra.mxu0 0.0
    %2820 = vmatprep.subr.mxu0 0.0
    %2821 = vmatpush1.msra.mxu0 0.0
    %2822 = vmatprep.subr.mxu0 0.0
    %2823 = vmatpush1.msra.mxu0 0.0
    %2824 = vmatprep.subr.mxu0 0.0
    %2825 = vmatpush1.msra.mxu0 0.0
    %2826 = vmatprep.subr.mxu0 0.0
    %2827 = vmatpush1.msra.mxu0 0.0
    %2828 = vmatprep.subr.mxu0 0.0
    %2829 = vmatpush1.msra.mxu0 0.0
    %2830 = vmatprep.mubr.f32.mxu0 0.0
    %v2831 = vand.u32 %v2336, 4294901760
    %2832 = vmatmul.mubr.f32.gmra.mrb[0].mxu0 %v2831
    %v2833 = vpop.f32.mrb[0].mxu0
    %v2834 = vadd.f32 %v2755, %v2833
    %v2835 = vpop.f32.mrb[0].mxu0
    %2836 = vmatprep.mubr.f32.mxu0 0.0
    %v2837 = vand.u32 %v2339, 4294901760
    %2838 = vmatmul.mubr.f32.gmra.mrb[0].mxu0 %v2837
    %v2839 = vpop.f32.mrb[0].mxu0
    %v2840 = vadd.f32 %v2761, %v2839
    %v2841 = vpop.f32.mrb[0].mxu0
    %2842 = vdwg.mxu0
    %v2843 = vadd.f32 %v2333, %v2834
    %v2844 = vadd.f32 %v2334, %v2840
    %2845 = vst.msk [vmem:[#allocation4] sm:$0xff] %vm73, %v2843
    %2846 = vst.msk [vmem:[#allocation4 + $0x8] sm:$0xff] %vm73, %v2844
    %2847 = vst.msk [vmem:[#allocation2] sm:$0xff] %vm2318, %v2282
    %2848 = vst.msk [vmem:[#allocation2 + $0x8] sm:$0xff] %vm2318, %v2283
    %2849 = vset.pattern.permute.xlu0 1
    %2850 = vperm.xlu0 %2849, %v1612
    %v2851 = vpop.permute.xlu0 %2850
    %2853 = vset.pattern.permute.xlu0 1
    %2854 = vperm.xlu0 %2853, %v1618
    %v2855 = vpop.permute.xlu0 %2854
    %v2857 = vlaneseq
    %v2858 = vshrl.u32 %v2857, 7
    %v2859 = vsub.s32 1, %v2858
    %v2860 = vrot.slane %v2077, %v2859
    %v2861 = vadd.f32 %v2851, %v2860
    %v2862 = vadd.f32 %v2855, %v2860
    %2863 = vset.pattern.permute.xlu0 8
    %2864 = vperm.xlu0 %2863, %v560
    %v2865 = vpop.permute.xlu0 %2864
    %2867 = vset.pattern.permute.xlu0 8
    %2868 = vperm.xlu0 %2867, %v566
    %v2869 = vpop.permute.xlu0 %2868
    %v2871 = vlaneseq
    %v2872 = vshrl.u32 %v2871, 7
    %v2873 = vsub.s32 0, %v2872
    %v2874 = vrot.slane %v1091, %v2873
    %v2875 = vadd.f32 %v2865, %v2874
    %v2876 = vadd.f32 %v2869, %v2874
    %s2877 = sld [smem:[#allocation5 + $0x80]]
    %v2878 = vmax.f32 %v2875, 0.0
    %v2879 = vmax.f32 %v2876, 0.0
    %v2880 = vstv %s2877
    %v2881 = vmul.f32 %v2880, %v2878
    %v2882 = vmul.f32 %v2880, %v2879
    %v2883 = vadd.f32 %v2861, %v2881
    %v2884 = vadd.f32 %v2862, %v2882
    %2885 = vset.pattern.permute.xlu0 9
    %2886 = vperm.xlu0 %2885, %v560
    %v2887 = vpop.permute.xlu0 %2886
    %2889 = vset.pattern.permute.xlu0 9
    %2890 = vperm.xlu0 %2889, %v566
    %v2891 = vpop.permute.xlu0 %2890
    %v2893 = vlaneseq
    %v2894 = vshrl.u32 %v2893, 7
    %v2895 = vsub.s32 1, %v2894
    %v2896 = vrot.slane %v1091, %v2895
    %v2897 = vadd.f32 %v2887, %v2896
    %v2898 = vadd.f32 %v2891, %v2896
    %s2899 = sld [smem:[#allocation5 + $0x81]]
    %v2900 = vmax.f32 %v2897, 0.0
    %v2901 = vmax.f32 %v2898, 0.0
    %v2902 = vstv %s2899
    %v2903 = vmul.f32 %v2902, %v2900
    %v2904 = vmul.f32 %v2902, %v2901
    %v2905 = vadd.f32 %v2883, %v2903
    %v2906 = vadd.f32 %v2884, %v2904
    %2907 = vset.pattern.permute.xlu0 10
    %2908 = vperm.xlu0 %2907, %v560
    %v2909 = vpop.permute.xlu0 %2908
    %2911 = vset.pattern.permute.xlu0 10
    %2912 = vperm.xlu0 %2911, %v566
    %v2913 = vpop.permute.xlu0 %2912
    %v2915 = vlaneseq
    %v2916 = vshrl.u32 %v2915, 7
    %v2917 = vsub.s32 2, %v2916
    %v2918 = vrot.slane %v1091, %v2917
    %v2919 = vadd.f32 %v2909, %v2918
    %v2920 = vadd.f32 %v2913, %v2918
    %s2921 = sld [smem:[#allocation5 + $0x82]]
    %v2922 = vmax.f32 %v2919, 0.0
    %v2923 = vmax.f32 %v2920, 0.0
    %v2924 = vstv %s2921
    %v2925 = vmul.f32 %v2924, %v2922
    %v2926 = vmul.f32 %v2924, %v2923
    %v2927 = vadd.f32 %v2905, %v2925
    %v2928 = vadd.f32 %v2906, %v2926
    %2929 = vset.pattern.permute.xlu0 11
    %2930 = vperm.xlu0 %2929, %v560
    %v2931 = vpop.permute.xlu0 %2930
    %2933 = vset.pattern.permute.xlu0 11
    %2934 = vperm.xlu0 %2933, %v566
    %v2935 = vpop.permute.xlu0 %2934
    %v2937 = vlaneseq
    %v2938 = vshrl.u32 %v2937, 7
    %v2939 = vsub.s32 3, %v2938
    %v2940 = vrot.slane %v1091, %v2939
    %v2941 = vadd.f32 %v2931, %v2940
    %v2942 = vadd.f32 %v2935, %v2940
    %s2943 = sld [smem:[#allocation5 + $0x83]]
    %v2944 = vmax.f32 %v2941, 0.0
    %v2945 = vmax.f32 %v2942, 0.0
    %v2946 = vstv %s2943
    %v2947 = vmul.f32 %v2946, %v2944
    %v2948 = vmul.f32 %v2946, %v2945
    %v2949 = vadd.f32 %v2927, %v2947
    %v2950 = vadd.f32 %v2928, %v2948
    %2951 = vset.pattern.permute.xlu0 12
    %2952 = vperm.xlu0 %2951, %v560
    %v2953 = vpop.permute.xlu0 %2952
    %2955 = vset.pattern.permute.xlu0 12
    %2956 = vperm.xlu0 %2955, %v566
    %v2957 = vpop.permute.xlu0 %2956
    %v2959 = vlaneseq
    %v2960 = vshrl.u32 %v2959, 7
    %v2961 = vsub.s32 4, %v2960
    %v2962 = vrot.slane %v1091, %v2961
    %v2963 = vadd.f32 %v2953, %v2962
    %v2964 = vadd.f32 %v2957, %v2962
    %s2965 = sld [smem:[#allocation5 + $0x84]]
    %v2966 = vmax.f32 %v2963, 0.0
    %v2967 = vmax.f32 %v2964, 0.0
    %v2968 = vstv %s2965
    %v2969 = vmul.f32 %v2968, %v2966
    %v2970 = vmul.f32 %v2968, %v2967
    %v2971 = vadd.f32 %v2949, %v2969
    %v2972 = vadd.f32 %v2950, %v2970
    %2973 = vset.pattern.permute.xlu0 13
    %2974 = vperm.xlu0 %2973, %v560
    %v2975 = vpop.permute.xlu0 %2974
    %2977 = vset.pattern.permute.xlu0 13
    %2978 = vperm.xlu0 %2977, %v566
    %v2979 = vpop.permute.xlu0 %2978
    %v2981 = vlaneseq
    %v2982 = vshrl.u32 %v2981, 7
    %v2983 = vsub.s32 5, %v2982
    %v2984 = vrot.slane %v1091, %v2983
    %v2985 = vadd.f32 %v2975, %v2984
    %v2986 = vadd.f32 %v2979, %v2984
    %s2987 = sld [smem:[#allocation5 + $0x85]]
    %v2988 = vmax.f32 %v2985, 0.0
    %v2989 = vmax.f32 %v2986, 0.0
    %v2990 = vstv %s2987
    %v2991 = vmul.f32 %v2990, %v2988
    %v2992 = vmul.f32 %v2990, %v2989
    %v2993 = vadd.f32 %v2971, %v2991
    %v2994 = vadd.f32 %v2972, %v2992
    %2995 = vset.pattern.permute.xlu0 14
    %2996 = vperm.xlu0 %2995, %v560
    %v2997 = vpop.permute.xlu0 %2996
    %2999 = vset.pattern.permute.xlu0 14
    %3000 = vperm.xlu0 %2999, %v566
    %v3001 = vpop.permute.xlu0 %3000
    %v3003 = vlaneseq
    %v3004 = vshrl.u32 %v3003, 7
    %v3005 = vsub.s32 6, %v3004
    %v3006 = vrot.slane %v1091, %v3005
    %v3007 = vadd.f32 %v2997, %v3006
    %v3008 = vadd.f32 %v3001, %v3006
    %s3009 = sld [smem:[#allocation5 + $0x86]]
    %v3010 = vmax.f32 %v3007, 0.0
    %v3011 = vmax.f32 %v3008, 0.0
    %v3012 = vstv %s3009
    %v3013 = vmul.f32 %v3012, %v3010
    %v3014 = vmul.f32 %v3012, %v3011
    %v3015 = vadd.f32 %v2993, %v3013
    %v3016 = vadd.f32 %v2994, %v3014
    %3017 = vset.pattern.permute.xlu0 15
    %3018 = vperm.xlu0 %3017, %v560
    %v3019 = vpop.permute.xlu0 %3018
    %3021 = vset.pattern.permute.xlu0 15
    %3022 = vperm.xlu0 %3021, %v566
    %v3023 = vpop.permute.xlu0 %3022
    %v3025 = vlaneseq
    %v3026 = vshrl.u32 %v3025, 7
    %v3027 = vsub.s32 7, %v3026
    %v3028 = vrot.slane %v1091, %v3027
    %v3029 = vadd.f32 %v3019, %v3028
    %v3030 = vadd.f32 %v3023, %v3028
    %s3031 = sld [smem:[#allocation5 + $0x87]]
    %v3032 = vmax.f32 %v3029, 0.0
    %v3033 = vmax.f32 %v3030, 0.0
    %v3034 = vstv %s3031
    %v3035 = vmul.f32 %v3034, %v3032
    %v3036 = vmul.f32 %v3034, %v3033
    %v3037 = vadd.f32 %v3015, %v3035
    %v3038 = vadd.f32 %v3016, %v3036
    %v3039 = vsel %vm1119, %v3037, -1e+30
    %v3040 = vsel %vm1120, %v3038, -1e+30
    %v3041 = vld [vmem:[#allocation2] sm:$0xff]
    %v3042 = vld [vmem:[#allocation2 + $0x8] sm:$0xff]
    %v3043 = vsel %vm1122, %v3039, -inf
    %3044 = vmax.xlane.f32.xlu0 %v3043
    %v3045 = vpop.xlane.xlu0 %3044
    %v3046 = vsel %vm1122, %v3040, -inf
    %3047 = vmax.xlane.f32.xlu0 %v3046
    %v3048 = vpop.xlane.xlu0 %3047
    %v3049 = vmax.f32 %v3041, %v3045
    %v3050 = vmax.f32 %v3042, %v3048
    %v3051 = vsub.f32 %v3041, %v3049
    %v3052 = vsub.f32 %v3042, %v3050
    %v3053 = vmul.f32 %v3051, 1.442695
    %v3054 = vpow.pop %v3053
    %v3055 = vmul.f32 %v3052, 1.442695
    %v3056 = vpow.pop %v3055
    %3058 = vset.pattern.permute.xlu0 1
    %3059 = vperm.xlu0 %3058, %v3049
    %v3060 = vpop.permute.xlu0 %3059
    %3063 = vset.pattern.permute.xlu0 1
    %3064 = vperm.xlu0 %3063, %v3050
    %v3065 = vpop.permute.xlu0 %3064
    %v3067 = vsub.f32 %v3039, %v3060
    %v3068 = vsub.f32 %v3040, %v3065
    %v3069 = vmul.f32 %v3067, 1.442695
    %v3070 = vpow.pop %v3069
    %v3071 = vmul.f32 %v3068, 1.442695
    %v3072 = vpow.pop %v3071
    %v3073 = vld [vmem:[#allocation3] sm:$0xff]
    %v3074 = vld [vmem:[#allocation3 + $0x8] sm:$0xff]
    %v3075 = vmul.f32 %v3054, %v3073
    %v3076 = vmul.f32 %v3056, %v3074
    %v3077 = vsel %vm1122, %v3070, 0.0
    %3078 = vadd.xlane.f32.xlu0 %v3077
    %v3079 = vpop.xlane.xlu0 %3078
    %v3080 = vsel %vm1122, %v3072, 0.0
    %3081 = vadd.xlane.f32.xlu0 %v3080
    %v3082 = vpop.xlane.xlu0 %3081
    %v3083 = vadd.f32 %v3075, %v3079
    %v3084 = vadd.f32 %v3076, %v3082
    %vm3085 = vcmask 15368
    %3086 = vst.msk [vmem:[#allocation3] sm:$0xff] %vm3085, %v3083
    %3087 = vst.msk [vmem:[#allocation3 + $0x8] sm:$0xff] %vm3085, %v3084
    %v3088 = vld [vmem:[#allocation4] sm:$0xff]
    %v3089 = vld [vmem:[#allocation4 + $0x8] sm:$0xff]
    %3091 = vset.pattern.permute.xlu0 1
    %3092 = vperm.xlu0 %3091, %v3054
    %v3093 = vpop.permute.xlu0 %3092
    %3096 = vset.pattern.permute.xlu0 1
    %3097 = vperm.xlu0 %3096, %v3056
    %v3098 = vpop.permute.xlu0 %3097
    %v3100 = vmul.f32 %v3093, %v3088
    %v3101 = vmul.f32 %v3098, %v3089
    %3104 = vrot.lane.b32.xlu0 %v1065, 120
    %v3105 = vpop.permute.xlu0 %3104
    %3106 = vrot.lane.b32.xlu0 %v1071, 120
    %v3107 = vpop.permute.xlu0 %3106
    %v3111 = vsel %vm1122, %v3070, 0
    %v3114 = vsel %vm1122, %v3072, 0
    %3116 = vmatprep.subr.mxu0 0.0
    %v3117 = vand.u32 %v3105, 4294901760
    %3118 = vmatpush1.msra.mxu0 %v3117
    %3119 = vmatprep.subr.mxu0 0.0
    %v3120 = vand.u32 %v3107, 4294901760
    %3121 = vmatpush1.msra.mxu0 %v3120
    %3122 = vmatprep.subr.mxu0 0.0
    %3123 = vmatpush1.msra.mxu0 0.0
    %3124 = vmatprep.subr.mxu0 0.0
    %3125 = vmatpush1.msra.mxu0 0.0
    %3126 = vmatprep.subr.mxu0 0.0
    %3127 = vmatpush1.msra.mxu0 0.0
    %3128 = vmatprep.subr.mxu0 0.0
    %3129 = vmatpush1.msra.mxu0 0.0
    %3130 = vmatprep.subr.mxu0 0.0
    %3131 = vmatpush1.msra.mxu0 0.0
    %3132 = vmatprep.subr.mxu0 0.0
    %3133 = vmatpush1.msra.mxu0 0.0
    %3134 = vmatprep.subr.mxu0 0.0
    %3135 = vmatpush1.msra.mxu0 0.0
    %3136 = vmatprep.subr.mxu0 0.0
    %3137 = vmatpush1.msra.mxu0 0.0
    %3138 = vmatprep.subr.mxu0 0.0
    %3139 = vmatpush1.msra.mxu0 0.0
    %3140 = vmatprep.subr.mxu0 0.0
    %3141 = vmatpush1.msra.mxu0 0.0
    %3142 = vmatprep.subr.mxu0 0.0
    %3143 = vmatpush1.msra.mxu0 0.0
    %3144 = vmatprep.subr.mxu0 0.0
    %3145 = vmatpush1.msra.mxu0 0.0
    %3146 = vmatprep.subr.mxu0 0.0
    %3147 = vmatpush1.msra.mxu0 0.0
    %3148 = vmatprep.subr.mxu0 0.0
    %3149 = vmatpush1.msra.mxu0 0.0
    %3150 = vmatprep.subr.mxu0 0.0
    %3151 = vmatpush1.msra.mxu0 0.0
    %3152 = vmatprep.subr.mxu0 0.0
    %3153 = vmatpush1.msra.mxu0 0.0
    %3154 = vmatprep.subr.mxu0 0.0
    %3155 = vmatpush1.msra.mxu0 0.0
    %3156 = vmatprep.subr.mxu0 0.0
    %3157 = vmatpush1.msra.mxu0 0.0
    %3158 = vmatprep.subr.mxu0 0.0
    %3159 = vmatpush1.msra.mxu0 0.0
    %3160 = vmatprep.subr.mxu0 0.0
    %3161 = vmatpush1.msra.mxu0 0.0
    %3162 = vmatprep.subr.mxu0 0.0
    %3163 = vmatpush1.msra.mxu0 0.0
    %3164 = vmatprep.subr.mxu0 0.0
    %3165 = vmatpush1.msra.mxu0 0.0
    %3166 = vmatprep.subr.mxu0 0.0
    %3167 = vmatpush1.msra.mxu0 0.0
    %3168 = vmatprep.subr.mxu0 0.0
    %3169 = vmatpush1.msra.mxu0 0.0
    %3170 = vmatprep.subr.mxu0 0.0
    %3171 = vmatpush1.msra.mxu0 0.0
    %3172 = vmatprep.subr.mxu0 0.0
    %3173 = vmatpush1.msra.mxu0 0.0
    %3174 = vmatprep.subr.mxu0 0.0
    %3175 = vmatpush1.msra.mxu0 0.0
    %3176 = vmatprep.subr.mxu0 0.0
    %3177 = vmatpush1.msra.mxu0 0.0
    %3178 = vmatprep.subr.mxu0 0.0
    %3179 = vmatpush1.msra.mxu0 0.0
    %3180 = vmatprep.subr.mxu0 0.0
    %3181 = vmatpush1.msra.mxu0 0.0
    %3182 = vmatprep.mubr.f32.mxu0 0.0
    %v3183 = vand.u32 %v3111, 4294901760
    %v3184 = vsub.f32 %v3111, %v3183
    %v3185 = vand.u32 %v3184, 4294901760
    %v3186 = vsub.f32 %v3184, %v3185
    %v3187 = vand.u32 %v3186, 4294901760
    %3188 = vmatmul.mubr.f32.gmra.mrb[0].mxu0 %v3187
    %v3189 = vpop.f32.mrb[0].mxu0
    %v3190 = vadd.f32 0.0, %v3189
    %v3191 = vpop.f32.mrb[0].mxu0
    %3192 = vmatprep.mubr.f32.mxu0 0.0
    %v3193 = vand.u32 %v3114, 4294901760
    %v3194 = vsub.f32 %v3114, %v3193
    %v3195 = vand.u32 %v3194, 4294901760
    %v3196 = vsub.f32 %v3194, %v3195
    %v3197 = vand.u32 %v3196, 4294901760
    %3198 = vmatmul.mubr.f32.gmra.mrb[0].mxu0 %v3197
    %v3199 = vpop.f32.mrb[0].mxu0
    %v3200 = vadd.f32 0.0, %v3199
    %v3201 = vpop.f32.mrb[0].mxu0
    %3202 = vdwg.mxu0
    %3203 = vmatprep.subr.mxu0 0.0
    %v3204 = vand.u32 %v3105, 4294901760
    %v3205 = vsub.f32 %v3105, %v3204
    %v3206 = vand.u32 %v3205, 4294901760
    %v3207 = vsub.f32 %v3205, %v3206
    %v3208 = vand.u32 %v3207, 4294901760
    %3209 = vmatpush1.msra.mxu0 %v3208
    %3210 = vmatprep.subr.mxu0 0.0
    %v3211 = vand.u32 %v3107, 4294901760
    %v3212 = vsub.f32 %v3107, %v3211
    %v3213 = vand.u32 %v3212, 4294901760
    %v3214 = vsub.f32 %v3212, %v3213
    %v3215 = vand.u32 %v3214, 4294901760
    %3216 = vmatpush1.msra.mxu0 %v3215
    %3217 = vmatprep.subr.mxu0 0.0
    %3218 = vmatpush1.msra.mxu0 0.0
    %3219 = vmatprep.subr.mxu0 0.0
    %3220 = vmatpush1.msra.mxu0 0.0
    %3221 = vmatprep.subr.mxu0 0.0
    %3222 = vmatpush1.msra.mxu0 0.0
    %3223 = vmatprep.subr.mxu0 0.0
    %3224 = vmatpush1.msra.mxu0 0.0
    %3225 = vmatprep.subr.mxu0 0.0
    %3226 = vmatpush1.msra.mxu0 0.0
    %3227 = vmatprep.subr.mxu0 0.0
    %3228 = vmatpush1.msra.mxu0 0.0
    %3229 = vmatprep.subr.mxu0 0.0
    %3230 = vmatpush1.msra.mxu0 0.0
    %3231 = vmatprep.subr.mxu0 0.0
    %3232 = vmatpush1.msra.mxu0 0.0
    %3233 = vmatprep.subr.mxu0 0.0
    %3234 = vmatpush1.msra.mxu0 0.0
    %3235 = vmatprep.subr.mxu0 0.0
    %3236 = vmatpush1.msra.mxu0 0.0
    %3237 = vmatprep.subr.mxu0 0.0
    %3238 = vmatpush1.msra.mxu0 0.0
    %3239 = vmatprep.subr.mxu0 0.0
    %3240 = vmatpush1.msra.mxu0 0.0
    %3241 = vmatprep.subr.mxu0 0.0
    %3242 = vmatpush1.msra.mxu0 0.0
    %3243 = vmatprep.subr.mxu0 0.0
    %3244 = vmatpush1.msra.mxu0 0.0
    %3245 = vmatprep.subr.mxu0 0.0
    %3246 = vmatpush1.msra.mxu0 0.0
    %3247 = vmatprep.subr.mxu0 0.0
    %3248 = vmatpush1.msra.mxu0 0.0
    %3249 = vmatprep.subr.mxu0 0.0
    %3250 = vmatpush1.msra.mxu0 0.0
    %3251 = vmatprep.subr.mxu0 0.0
    %3252 = vmatpush1.msra.mxu0 0.0
    %3253 = vmatprep.subr.mxu0 0.0
    %3254 = vmatpush1.msra.mxu0 0.0
    %3255 = vmatprep.subr.mxu0 0.0
    %3256 = vmatpush1.msra.mxu0 0.0
    %3257 = vmatprep.subr.mxu0 0.0
    %3258 = vmatpush1.msra.mxu0 0.0
    %3259 = vmatprep.subr.mxu0 0.0
    %3260 = vmatpush1.msra.mxu0 0.0
    %3261 = vmatprep.subr.mxu0 0.0
    %3262 = vmatpush1.msra.mxu0 0.0
    %3263 = vmatprep.subr.mxu0 0.0
    %3264 = vmatpush1.msra.mxu0 0.0
    %3265 = vmatprep.subr.mxu0 0.0
    %3266 = vmatpush1.msra.mxu0 0.0
    %3267 = vmatprep.subr.mxu0 0.0
    %3268 = vmatpush1.msra.mxu0 0.0
    %3269 = vmatprep.subr.mxu0 0.0
    %3270 = vmatpush1.msra.mxu0 0.0
    %3271 = vmatprep.subr.mxu0 0.0
    %3272 = vmatpush1.msra.mxu0 0.0
    %3273 = vmatprep.subr.mxu0 0.0
    %3274 = vmatpush1.msra.mxu0 0.0
    %3275 = vmatprep.subr.mxu0 0.0
    %3276 = vmatpush1.msra.mxu0 0.0
    %3277 = vmatprep.mubr.f32.mxu0 0.0
    %v3278 = vand.u32 %v3111, 4294901760
    %3279 = vmatmul.mubr.f32.gmra.mrb[0].mxu0 %v3278
    %v3280 = vpop.f32.mrb[0].mxu0
    %v3281 = vadd.f32 %v3190, %v3280
    %v3282 = vpop.f32.mrb[0].mxu0
    %3283 = vmatprep.mubr.f32.mxu0 0.0
    %v3284 = vand.u32 %v3114, 4294901760
    %3285 = vmatmul.mubr.f32.gmra.mrb[0].mxu0 %v3284
    %v3286 = vpop.f32.mrb[0].mxu0
    %v3287 = vadd.f32 %v3200, %v3286
    %v3288 = vpop.f32.mrb[0].mxu0
    %3289 = vdwg.mxu0
    %3290 = vmatprep.subr.mxu0 0.0
    %v3291 = vand.u32 %v3105, 4294901760
    %v3292 = vsub.f32 %v3105, %v3291
    %3293 = vmatpush1.msra.mxu0 %v3292
    %3294 = vmatprep.subr.mxu0 0.0
    %v3295 = vand.u32 %v3107, 4294901760
    %v3296 = vsub.f32 %v3107, %v3295
    %3297 = vmatpush1.msra.mxu0 %v3296
    %3298 = vmatprep.subr.mxu0 0.0
    %3299 = vmatpush1.msra.mxu0 0.0
    %3300 = vmatprep.subr.mxu0 0.0
    %3301 = vmatpush1.msra.mxu0 0.0
    %3302 = vmatprep.subr.mxu0 0.0
    %3303 = vmatpush1.msra.mxu0 0.0
    %3304 = vmatprep.subr.mxu0 0.0
    %3305 = vmatpush1.msra.mxu0 0.0
    %3306 = vmatprep.subr.mxu0 0.0
    %3307 = vmatpush1.msra.mxu0 0.0
    %3308 = vmatprep.subr.mxu0 0.0
    %3309 = vmatpush1.msra.mxu0 0.0
    %3310 = vmatprep.subr.mxu0 0.0
    %3311 = vmatpush1.msra.mxu0 0.0
    %3312 = vmatprep.subr.mxu0 0.0
    %3313 = vmatpush1.msra.mxu0 0.0
    %3314 = vmatprep.subr.mxu0 0.0
    %3315 = vmatpush1.msra.mxu0 0.0
    %3316 = vmatprep.subr.mxu0 0.0
    %3317 = vmatpush1.msra.mxu0 0.0
    %3318 = vmatprep.subr.mxu0 0.0
    %3319 = vmatpush1.msra.mxu0 0.0
    %3320 = vmatprep.subr.mxu0 0.0
    %3321 = vmatpush1.msra.mxu0 0.0
    %3322 = vmatprep.subr.mxu0 0.0
    %3323 = vmatpush1.msra.mxu0 0.0
    %3324 = vmatprep.subr.mxu0 0.0
    %3325 = vmatpush1.msra.mxu0 0.0
    %3326 = vmatprep.subr.mxu0 0.0
    %3327 = vmatpush1.msra.mxu0 0.0
    %3328 = vmatprep.subr.mxu0 0.0
    %3329 = vmatpush1.msra.mxu0 0.0
    %3330 = vmatprep.subr.mxu0 0.0
    %3331 = vmatpush1.msra.mxu0 0.0
    %3332 = vmatprep.subr.mxu0 0.0
    %3333 = vmatpush1.msra.mxu0 0.0
    %3334 = vmatprep.subr.mxu0 0.0
    %3335 = vmatpush1.msra.mxu0 0.0
    %3336 = vmatprep.subr.mxu0 0.0
    %3337 = vmatpush1.msra.mxu0 0.0
    %3338 = vmatprep.subr.mxu0 0.0
    %3339 = vmatpush1.msra.mxu0 0.0
    %3340 = vmatprep.subr.mxu0 0.0
    %3341 = vmatpush1.msra.mxu0 0.0
    %3342 = vmatprep.subr.mxu0 0.0
    %3343 = vmatpush1.msra.mxu0 0.0
    %3344 = vmatprep.subr.mxu0 0.0
    %3345 = vmatpush1.msra.mxu0 0.0
    %3346 = vmatprep.subr.mxu0 0.0
    %3347 = vmatpush1.msra.mxu0 0.0
    %3348 = vmatprep.subr.mxu0 0.0
    %3349 = vmatpush1.msra.mxu0 0.0
    %3350 = vmatprep.subr.mxu0 0.0
    %3351 = vmatpush1.msra.mxu0 0.0
    %3352 = vmatprep.subr.mxu0 0.0
    %3353 = vmatpush1.msra.mxu0 0.0
    %3354 = vmatprep.subr.mxu0 0.0
    %3355 = vmatpush1.msra.mxu0 0.0
    %3356 = vmatprep.subr.mxu0 0.0
    %3357 = vmatpush1.msra.mxu0 0.0
    %3358 = vmatprep.mubr.f32.mxu0 0.0
    %v3359 = vand.u32 %v3111, 4294901760
    %v3360 = vsub.f32 %v3111, %v3359
    %3361 = vmatmul.mubr.f32.gmra.mrb[0].mxu0 %v3360
    %v3362 = vpop.f32.mrb[0].mxu0
    %v3363 = vadd.f32 %v3281, %v3362
    %v3364 = vpop.f32.mrb[0].mxu0
    %3365 = vmatprep.mubr.f32.mxu0 0.0
    %v3366 = vand.u32 %v3114, 4294901760
    %v3367 = vsub.f32 %v3114, %v3366
    %3368 = vmatmul.mubr.f32.gmra.mrb[0].mxu0 %v3367
    %v3369 = vpop.f32.mrb[0].mxu0
    %v3370 = vadd.f32 %v3287, %v3369
    %v3371 = vpop.f32.mrb[0].mxu0
    %3372 = vdwg.mxu0
    %3373 = vmatprep.subr.mxu0 0.0
    %v3374 = vand.u32 %v3105, 4294901760
    %3375 = vmatpush1.msra.mxu0 %v3374
    %3376 = vmatprep.subr.mxu0 0.0
    %v3377 = vand.u32 %v3107, 4294901760
    %3378 = vmatpush1.msra.mxu0 %v3377
    %3379 = vmatprep.subr.mxu0 0.0
    %3380 = vmatpush1.msra.mxu0 0.0
    %3381 = vmatprep.subr.mxu0 0.0
    %3382 = vmatpush1.msra.mxu0 0.0
    %3383 = vmatprep.subr.mxu0 0.0
    %3384 = vmatpush1.msra.mxu0 0.0
    %3385 = vmatprep.subr.mxu0 0.0
    %3386 = vmatpush1.msra.mxu0 0.0
    %3387 = vmatprep.subr.mxu0 0.0
    %3388 = vmatpush1.msra.mxu0 0.0
    %3389 = vmatprep.subr.mxu0 0.0
    %3390 = vmatpush1.msra.mxu0 0.0
    %3391 = vmatprep.subr.mxu0 0.0
    %3392 = vmatpush1.msra.mxu0 0.0
    %3393 = vmatprep.subr.mxu0 0.0
    %3394 = vmatpush1.msra.mxu0 0.0
    %3395 = vmatprep.subr.mxu0 0.0
    %3396 = vmatpush1.msra.mxu0 0.0
    %3397 = vmatprep.subr.mxu0 0.0
    %3398 = vmatpush1.msra.mxu0 0.0
    %3399 = vmatprep.subr.mxu0 0.0
    %3400 = vmatpush1.msra.mxu0 0.0
    %3401 = vmatprep.subr.mxu0 0.0
    %3402 = vmatpush1.msra.mxu0 0.0
    %3403 = vmatprep.subr.mxu0 0.0
    %3404 = vmatpush1.msra.mxu0 0.0
    %3405 = vmatprep.subr.mxu0 0.0
    %3406 = vmatpush1.msra.mxu0 0.0
    %3407 = vmatprep.subr.mxu0 0.0
    %3408 = vmatpush1.msra.mxu0 0.0
    %3409 = vmatprep.subr.mxu0 0.0
    %3410 = vmatpush1.msra.mxu0 0.0
    %3411 = vmatprep.subr.mxu0 0.0
    %3412 = vmatpush1.msra.mxu0 0.0
    %3413 = vmatprep.subr.mxu0 0.0
    %3414 = vmatpush1.msra.mxu0 0.0
    %3415 = vmatprep.subr.mxu0 0.0
    %3416 = vmatpush1.msra.mxu0 0.0
    %3417 = vmatprep.subr.mxu0 0.0
    %3418 = vmatpush1.msra.mxu0 0.0
    %3419 = vmatprep.subr.mxu0 0.0
    %3420 = vmatpush1.msra.mxu0 0.0
    %3421 = vmatprep.subr.mxu0 0.0
    %3422 = vmatpush1.msra.mxu0 0.0
    %3423 = vmatprep.subr.mxu0 0.0
    %3424 = vmatpush1.msra.mxu0 0.0
    %3425 = vmatprep.subr.mxu0 0.0
    %3426 = vmatpush1.msra.mxu0 0.0
    %3427 = vmatprep.subr.mxu0 0.0
    %3428 = vmatpush1.msra.mxu0 0.0
    %3429 = vmatprep.subr.mxu0 0.0
    %3430 = vmatpush1.msra.mxu0 0.0
    %3431 = vmatprep.subr.mxu0 0.0
    %3432 = vmatpush1.msra.mxu0 0.0
    %3433 = vmatprep.subr.mxu0 0.0
    %3434 = vmatpush1.msra.mxu0 0.0
    %3435 = vmatprep.subr.mxu0 0.0
    %3436 = vmatpush1.msra.mxu0 0.0
    %3437 = vmatprep.subr.mxu0 0.0
    %3438 = vmatpush1.msra.mxu0 0.0
    %3439 = vmatprep.mubr.f32.mxu0 0.0
    %v3440 = vand.u32 %v3111, 4294901760
    %v3441 = vsub.f32 %v3111, %v3440
    %v3442 = vand.u32 %v3441, 4294901760
    %3443 = vmatmul.mubr.f32.gmra.mrb[0].mxu0 %v3442
    %v3444 = vpop.f32.mrb[0].mxu0
    %v3445 = vadd.f32 %v3363, %v3444
    %v3446 = vpop.f32.mrb[0].mxu0
    %3447 = vmatprep.mubr.f32.mxu0 0.0
    %v3448 = vand.u32 %v3114, 4294901760
    %v3449 = vsub.f32 %v3114, %v3448
    %v3450 = vand.u32 %v3449, 4294901760
    %3451 = vmatmul.mubr.f32.gmra.mrb[0].mxu0 %v3450
    %v3452 = vpop.f32.mrb[0].mxu0
    %v3453 = vadd.f32 %v3370, %v3452
    %v3454 = vpop.f32.mrb[0].mxu0
    %3455 = vdwg.mxu0
    %3456 = vmatprep.subr.mxu0 0.0
    %v3457 = vand.u32 %v3105, 4294901760
    %v3458 = vsub.f32 %v3105, %v3457
    %v3459 = vand.u32 %v3458, 4294901760
    %3460 = vmatpush1.msra.mxu0 %v3459
    %3461 = vmatprep.subr.mxu0 0.0
    %v3462 = vand.u32 %v3107, 4294901760
    %v3463 = vsub.f32 %v3107, %v3462
    %v3464 = vand.u32 %v3463, 4294901760
    %3465 = vmatpush1.msra.mxu0 %v3464
    %3466 = vmatprep.subr.mxu0 0.0
    %3467 = vmatpush1.msra.mxu0 0.0
    %3468 = vmatprep.subr.mxu0 0.0
    %3469 = vmatpush1.msra.mxu0 0.0
    %3470 = vmatprep.subr.mxu0 0.0
    %3471 = vmatpush1.msra.mxu0 0.0
    %3472 = vmatprep.subr.mxu0 0.0
    %3473 = vmatpush1.msra.mxu0 0.0
    %3474 = vmatprep.subr.mxu0 0.0
    %3475 = vmatpush1.msra.mxu0 0.0
    %3476 = vmatprep.subr.mxu0 0.0
    %3477 = vmatpush1.msra.mxu0 0.0
    %3478 = vmatprep.subr.mxu0 0.0
    %3479 = vmatpush1.msra.mxu0 0.0
    %3480 = vmatprep.subr.mxu0 0.0
    %3481 = vmatpush1.msra.mxu0 0.0
    %3482 = vmatprep.subr.mxu0 0.0
    %3483 = vmatpush1.msra.mxu0 0.0
    %3484 = vmatprep.subr.mxu0 0.0
    %3485 = vmatpush1.msra.mxu0 0.0
    %3486 = vmatprep.subr.mxu0 0.0
    %3487 = vmatpush1.msra.mxu0 0.0
    %3488 = vmatprep.subr.mxu0 0.0
    %3489 = vmatpush1.msra.mxu0 0.0
    %3490 = vmatprep.subr.mxu0 0.0
    %3491 = vmatpush1.msra.mxu0 0.0
    %3492 = vmatprep.subr.mxu0 0.0
    %3493 = vmatpush1.msra.mxu0 0.0
    %3494 = vmatprep.subr.mxu0 0.0
    %3495 = vmatpush1.msra.mxu0 0.0
    %3496 = vmatprep.subr.mxu0 0.0
    %3497 = vmatpush1.msra.mxu0 0.0
    %3498 = vmatprep.subr.mxu0 0.0
    %3499 = vmatpush1.msra.mxu0 0.0
    %3500 = vmatprep.subr.mxu0 0.0
    %3501 = vmatpush1.msra.mxu0 0.0
    %3502 = vmatprep.subr.mxu0 0.0
    %3503 = vmatpush1.msra.mxu0 0.0
    %3504 = vmatprep.subr.mxu0 0.0
    %3505 = vmatpush1.msra.mxu0 0.0
    %3506 = vmatprep.subr.mxu0 0.0
    %3507 = vmatpush1.msra.mxu0 0.0
    %3508 = vmatprep.subr.mxu0 0.0
    %3509 = vmatpush1.msra.mxu0 0.0
    %3510 = vmatprep.subr.mxu0 0.0
    %3511 = vmatpush1.msra.mxu0 0.0
    %3512 = vmatprep.subr.mxu0 0.0
    %3513 = vmatpush1.msra.mxu0 0.0
    %3514 = vmatprep.subr.mxu0 0.0
    %3515 = vmatpush1.msra.mxu0 0.0
    %3516 = vmatprep.subr.mxu0 0.0
    %3517 = vmatpush1.msra.mxu0 0.0
    %3518 = vmatprep.subr.mxu0 0.0
    %3519 = vmatpush1.msra.mxu0 0.0
    %3520 = vmatprep.subr.mxu0 0.0
    %3521 = vmatpush1.msra.mxu0 0.0
    %3522 = vmatprep.subr.mxu0 0.0
    %3523 = vmatpush1.msra.mxu0 0.0
    %3524 = vmatprep.subr.mxu0 0.0
    %3525 = vmatpush1.msra.mxu0 0.0
    %3526 = vmatprep.mubr.f32.mxu0 0.0
    %v3527 = vand.u32 %v3111, 4294901760
    %3528 = vmatmul.mubr.f32.gmra.mrb[0].mxu0 %v3527
    %v3529 = vpop.f32.mrb[0].mxu0
    %v3530 = vadd.f32 %v3445, %v3529
    %v3531 = vpop.f32.mrb[0].mxu0
    %3532 = vmatprep.mubr.f32.mxu0 0.0
    %v3533 = vand.u32 %v3114, 4294901760
    %3534 = vmatmul.mubr.f32.gmra.mrb[0].mxu0 %v3533
    %v3535 = vpop.f32.mrb[0].mxu0
    %v3536 = vadd.f32 %v3453, %v3535
    %v3537 = vpop.f32.mrb[0].mxu0
    %3538 = vdwg.mxu0
    %3539 = vmatprep.subr.mxu0 0.0
    %v3540 = vand.u32 %v3105, 4294901760
    %3541 = vmatpush1.msra.mxu0 %v3540
    %3542 = vmatprep.subr.mxu0 0.0
    %v3543 = vand.u32 %v3107, 4294901760
    %3544 = vmatpush1.msra.mxu0 %v3543
    %3545 = vmatprep.subr.mxu0 0.0
    %3546 = vmatpush1.msra.mxu0 0.0
    %3547 = vmatprep.subr.mxu0 0.0
    %3548 = vmatpush1.msra.mxu0 0.0
    %3549 = vmatprep.subr.mxu0 0.0
    %3550 = vmatpush1.msra.mxu0 0.0
    %3551 = vmatprep.subr.mxu0 0.0
    %3552 = vmatpush1.msra.mxu0 0.0
    %3553 = vmatprep.subr.mxu0 0.0
    %3554 = vmatpush1.msra.mxu0 0.0
    %3555 = vmatprep.subr.mxu0 0.0
    %3556 = vmatpush1.msra.mxu0 0.0
    %3557 = vmatprep.subr.mxu0 0.0
    %3558 = vmatpush1.msra.mxu0 0.0
    %3559 = vmatprep.subr.mxu0 0.0
    %3560 = vmatpush1.msra.mxu0 0.0
    %3561 = vmatprep.subr.mxu0 0.0
    %3562 = vmatpush1.msra.mxu0 0.0
    %3563 = vmatprep.subr.mxu0 0.0
    %3564 = vmatpush1.msra.mxu0 0.0
    %3565 = vmatprep.subr.mxu0 0.0
    %3566 = vmatpush1.msra.mxu0 0.0
    %3567 = vmatprep.subr.mxu0 0.0
    %3568 = vmatpush1.msra.mxu0 0.0
    %3569 = vmatprep.subr.mxu0 0.0
    %3570 = vmatpush1.msra.mxu0 0.0
    %3571 = vmatprep.subr.mxu0 0.0
    %3572 = vmatpush1.msra.mxu0 0.0
    %3573 = vmatprep.subr.mxu0 0.0
    %3574 = vmatpush1.msra.mxu0 0.0
    %3575 = vmatprep.subr.mxu0 0.0
    %3576 = vmatpush1.msra.mxu0 0.0
    %3577 = vmatprep.subr.mxu0 0.0
    %3578 = vmatpush1.msra.mxu0 0.0
    %3579 = vmatprep.subr.mxu0 0.0
    %3580 = vmatpush1.msra.mxu0 0.0
    %3581 = vmatprep.subr.mxu0 0.0
    %3582 = vmatpush1.msra.mxu0 0.0
    %3583 = vmatprep.subr.mxu0 0.0
    %3584 = vmatpush1.msra.mxu0 0.0
    %3585 = vmatprep.subr.mxu0 0.0
    %3586 = vmatpush1.msra.mxu0 0.0
    %3587 = vmatprep.subr.mxu0 0.0
    %3588 = vmatpush1.msra.mxu0 0.0
    %3589 = vmatprep.subr.mxu0 0.0
    %3590 = vmatpush1.msra.mxu0 0.0
    %3591 = vmatprep.subr.mxu0 0.0
    %3592 = vmatpush1.msra.mxu0 0.0
    %3593 = vmatprep.subr.mxu0 0.0
    %3594 = vmatpush1.msra.mxu0 0.0
    %3595 = vmatprep.subr.mxu0 0.0
    %3596 = vmatpush1.msra.mxu0 0.0
    %3597 = vmatprep.subr.mxu0 0.0
    %3598 = vmatpush1.msra.mxu0 0.0
    %3599 = vmatprep.subr.mxu0 0.0
    %3600 = vmatpush1.msra.mxu0 0.0
    %3601 = vmatprep.subr.mxu0 0.0
    %3602 = vmatpush1.msra.mxu0 0.0
    %3603 = vmatprep.subr.mxu0 0.0
    %3604 = vmatpush1.msra.mxu0 0.0
    %3605 = vmatprep.mubr.f32.mxu0 0.0
    %v3606 = vand.u32 %v3111, 4294901760
    %3607 = vmatmul.mubr.f32.gmra.mrb[0].mxu0 %v3606
    %v3608 = vpop.f32.mrb[0].mxu0
    %v3609 = vadd.f32 %v3530, %v3608
    %v3610 = vpop.f32.mrb[0].mxu0
    %3611 = vmatprep.mubr.f32.mxu0 0.0
    %v3612 = vand.u32 %v3114, 4294901760
    %3613 = vmatmul.mubr.f32.gmra.mrb[0].mxu0 %v3612
    %v3614 = vpop.f32.mrb[0].mxu0
    %v3615 = vadd.f32 %v3536, %v3614
    %v3616 = vpop.f32.mrb[0].mxu0
    %3617 = vdwg.mxu0
    %3620 = vrot.lane.b32.xlu0 %v3609, 8
    %v3621 = vpop.permute.xlu0 %3620
    %3622 = vrot.lane.b32.xlu0 %v3615, 8
    %v3623 = vpop.permute.xlu0 %3622
    %v3626 = vadd.f32 %v3100, %v3621
    %v3627 = vadd.f32 %v3101, %v3623
    %vm3628 = vcmask 130112
    %3629 = vst.msk [vmem:[#allocation4] sm:$0xff] %vm3628, %v3626
    %3630 = vst.msk [vmem:[#allocation4 + $0x8] sm:$0xff] %vm3628, %v3627
    %3631 = vst.msk [vmem:[#allocation2] sm:$0xff] %vm3085, %v3049
    %3632 = vst.msk [vmem:[#allocation2 + $0x8] sm:$0xff] %vm3085, %v3050
    // Predicated region
    $region54: #{tpu_custom_call.1} parent=1 // pred_check
      %p3633 = pneg %p51
    $region55: #{tpu_custom_call.1} parent=1 // pred_check_branch
      %3635 = sbr.rel (%p3633) target = $region57
    $region56: #{tpu_custom_call.1} parent=1 // pred_region
      %v3636 = vld [vmem:[#allocation4] sm:$0xff]
      %v3637 = vld [vmem:[#allocation4 + $0x8] sm:$0xff]
      %v3638 = vld [vmem:[#allocation3] sm:$0xff]
      %v3639 = vld [vmem:[#allocation3 + $0x8] sm:$0xff]
      %3641 = vset.pattern.permute.xlu0 0
      %3642 = vperm.xlu0 %3641, %v3638
      %v3643 = vpop.permute.xlu0 %3642
      %3646 = vset.pattern.permute.xlu0 0
      %3647 = vperm.xlu0 %3646, %v3639
      %v3648 = vpop.permute.xlu0 %3647
      %v3650 = vrcp.pop %v3643
      %v3651 = vmul.f32 %v3636, %v3650
      %v3652 = vrcp.pop %v3648
      %v3653 = vmul.f32 %v3637, %v3652
      %v3654 = vadd.f32 %v3651, 0.0
      %v3655 = vadd.f32 %v3653, 0.0
      %3656 = vset.pattern.permute.xlu0 1
      %3657 = vperm.xlu0 %3656, %v3638
      %v3658 = vpop.permute.xlu0 %3657
      %3660 = vset.pattern.permute.xlu0 1
      %3661 = vperm.xlu0 %3660, %v3639
      %v3662 = vpop.permute.xlu0 %3661
      %v3664 = vrcp.pop %v3658
      %v3665 = vmul.f32 %v3636, %v3664
      %v3666 = vrcp.pop %v3662
      %v3667 = vmul.f32 %v3637, %v3666
      %3670 = vrot.lane.b32.xlu0 %v3665, 120
      %v3671 = vpop.permute.xlu0 %3670
      %3672 = vrot.lane.b32.xlu0 %v3667, 120
      %v3673 = vpop.permute.xlu0 %3672
      %v3676 = vadd.f32 %v3654, %v3671
      %v3677 = vadd.f32 %v3655, %v3673
      %v3678 = vmul.f32 %v3676, 0.5
      %v3679 = vmul.f32 %v3677, 0.5
      %v3680 = vld [vmem:[%s10] sm:$0x1]
      %v3682 = vlaneseq
      %v3683 = vshrl.u32 %v3682, 7
      %v3684 = vsub.s32 0, %v3683
      %v3685 = vrot.slane %v3680, %v3684
      %v3687 = vadd.f32 %v3678, %v3685
      %v3688 = vadd.f32 %v3679, %v3685
      %3689 = vst.msk [vmem:[%s11] sm:$0xff] %vm73, %v3687
      %3690 = vst.msk [vmem:[%s11 + $0x8] sm:$0xff] %vm73, %v3688
    $region57: #{tpu_custom_call.1} parent=1 // pred_fallthru
      _
    // Predicated region
    $region58: #{tpu_custom_call.1} parent=1 // pred_check
      _
    $region59: #{tpu_custom_call.1} parent=1 // pred_check_branch
      %3692 = sbr.rel (0) target = $region61
    $region60: #{tpu_custom_call.1} parent=1 // pred_region
      _
    $region61: #{tpu_custom_call.1} parent=1 // pred_fallthru
      _
    // Predicated region
    $region62: #{tpu_custom_call.1} parent=1 // pred_check
      _
    $region63: #{tpu_custom_call.1} parent=1 // pred_check_branch
      %3694 = sbr.rel (0) target = $region65
    $region64: #{tpu_custom_call.1} parent=1 // pred_region
      _
    $region65: #{tpu_custom_call.1} parent=1 // pred_fallthru
      _
    %3695 = vsyncpa [#allocation6], 1

</llo_original>
